<compile_context>
chip_gen: v7x
topology: tpu7x:2x2x1
jax: 0.10.0
libtpu: 0.0.40
codegen_flags: <defaults>
</compile_context>

<pallas_src>
import functools

import numpy as np
import jax
import jax.numpy as jnp
from jax import lax
from jax.experimental import pallas as pl
from jax.experimental.pallas import tpu as pltpu

BT = 32          # images per grid step (folded into the sublane dim)
K = 5            # conv kernel size
LANE_PAD = 128   # lane-dense width for fc activations / final output

# Lane widths of the pooled activations (max used lane + 1).
P1_W = 138       # pool1 output: lanes (2*wp)*6 + c,  wp in [0,12), c in [0,6)
P2_W = 112       # pool2 output: lanes (2*wp)*16 + c, wp in [0,4),  c in [0,16)


# ------------------------------ fused kernel -------------------------------

def _fused_forward_kernel(x_ref, t1_ref, b1_ref, t2_ref, b2_ref,
                          v1_ref, bf1_ref, w2_ref, bf2_ref, w3_ref, bf3_ref,
                          out_ref, *, bt):
    """One batch tile: x (28*bt, 28) f32 -> logits (bt, 128) f32."""
    cdt = t1_ref.dtype                       # compute (MXU operand) dtype
    dot = functools.partial(jnp.dot, preferred_element_type=jnp.float32)
    relu = lambda v: jnp.maximum(v, 0.0)     # VPU math stays f32

    x = x_ref[...].astype(cdt)                                   # (28*bt, 28)

    # ---- conv1 (valid, 1->6, k=5) + ReLU: one deep dot, K fused over the
    # 5 kernel rows (shifted row slices concatenated along lanes).
    a1 = jnp.concatenate([x[i * bt:(i + 24) * bt, :] for i in range(K)],
                         axis=1)                                 # (24*bt, 140)
    y1 = relu(dot(a1, t1_ref[...]) + b1_ref[...])                # (24*bt, 144) f32

    # ---- maxpool1 (2x2 / stride 2), entirely off the MXU -------------------
    # rows: VPU max of even/odd h row blocks; lanes: shift-by-C slice + max.
    y1 = y1.reshape(12, 2 * bt, 144)
    rp1 = jnp.maximum(y1[:, :bt, :], y1[:, bt:, :]).reshape(12 * bt, 144)
    p1 = jnp.maximum(rp1[:, :P1_W], rp1[:, 6:]).astype(cdt)      # (12*bt, 138)
    # valid pooled values live at lanes (2*wp)*6 + c; odd-w lanes are junk and
    # hit zero rows of t2 below.

    # ---- conv2 (valid, 6->16, k=5) + ReLU: one deep dot, K fused ------------
    a2 = jnp.concatenate([p1[i * bt:(i + 8) * bt, :] for i in range(K)],
                         axis=1)                                 # (8*bt, 690)
    y2 = relu(dot(a2, t2_ref[...]) + b2_ref[...])                # (8*bt, 128) f32

    # ---- maxpool2 (2x2 / stride 2) ------------------------------------------
    y2 = y2.reshape(4, 2 * bt, 128)
    rp2 = jnp.maximum(y2[:, :bt, :], y2[:, bt:, :]).reshape(4 * bt, 128)
    p2 = jnp.maximum(rp2[:, :P2_W], rp2[:, 16:]).astype(cdt)     # (4*bt, 112)

    # ---- fc1 + ReLU: torch NCHW flatten and even-w selection folded into v1,
    # K fused over the 4 pooled rows.
    a3 = jnp.concatenate([p2[hp * bt:(hp + 1) * bt, :] for hp in range(4)],
                         axis=1)                                 # (bt, 448)
    h1 = relu(dot(a3, v1_ref[...]) + bf1_ref[...])               # (bt, 128) f32

    # ---- fc2 + ReLU, fc3 (all lane-padded to 128) ----------------------------
    h2 = relu(dot(h1.astype(cdt), w2_ref[...]) + bf2_ref[...])   # (bt, 128)
    out_ref[...] = dot(h2.astype(cdt), w3_ref[...]) + bf3_ref[...]


# --------------------- host-side operand precomputation ---------------------

def _conv1_fused_toeplitz(w1):
    """T[i*28 + w, wo*6 + co] = w1[co, 0, i, w-wo]  -> (140, 144)."""
    w = np.asarray(w1, np.float32)
    t = np.zeros((K * 28, 24 * 6), np.float32)
    for i in range(K):
        for wo in range(24):
            for j in range(K):
                t[i * 28 + wo + j, wo * 6:(wo + 1) * 6] = w[:, 0, i, j]
    return t


def _conv2_fused_toeplitz(w2):
    """Toeplitz against the UNCOMPACTED pool1 lanes (2*wp)*6 + ci -> (690, 128).

    Zero rows implement the "keep even columns" part of maxpool1."""
    w = np.asarray(w2, np.float32)
    t = np.zeros((K * P1_W, 8 * 16), np.float32)
    for i in range(K):
        for wo in range(8):
            for j in range(K):
                wp = wo + j                      # pooled-1 width index, [0,12)
                for ci in range(6):
                    t[i * P1_W + (2 * wp) * 6 + ci,
                      wo * 16:(wo + 1) * 16] = w[:, ci, i, j]
    return t


def _fc1_fused(w_fc1):
    """V[hp*112 + (2*wp)*16 + c, n] = fc1_w[n, c*16 + hp*4 + wp] -> (448, 128).

    Folds the torch NCHW flatten AND maxpool2's even-column selection."""
    w = np.asarray(w_fc1, np.float32)
    v = np.zeros((4 * P2_W, LANE_PAD), np.float32)
    for hp in range(4):
        for wp in range(4):
            for c in range(16):
                v[hp * P2_W + (2 * wp) * 16 + c, :120] = w[:, c * 16 + hp * 4 + wp]
    return v


def _pad_linear(w, b):
    """Torch (out,in) Linear -> lane-padded (128, 128) weight + (1, 128) bias."""
    w = np.asarray(w, np.float32)
    n_out, k_in = w.shape
    wp = np.zeros((LANE_PAD, LANE_PAD), np.float32)
    wp[:k_in, :n_out] = w.T
    bp = np.zeros((1, LANE_PAD), np.float32)
    bp[0, :n_out] = np.asarray(b, np.float32)
    return wp, bp


def prepare_operands(params, compute_dtype=jnp.bfloat16):
    """Precompute fused/folded weight matrices (cast to compute_dtype) + f32 biases."""
    p = {k: np.asarray(v, np.float32) for k, v in params.items()}
    w2p, bf2 = _pad_linear(p["fc2_w"], p["fc2_b"])
    w3p, bf3 = _pad_linear(p["fc3_w"], p["fc3_b"])
    bf1 = np.zeros((1, LANE_PAD), np.float32)
    bf1[0, :120] = p["fc1_b"]

    weights = {
        "t1": _conv1_fused_toeplitz(p["conv1_w"]),   # (140, 144)
        "t2": _conv2_fused_toeplitz(p["conv2_w"]),   # (690, 128)
        "v1": _fc1_fused(p["fc1_w"]),                # (448, 128)
        "w2": w2p,                                   # (128, 128)
        "w3": w3p,                                   # (128, 128)
    }
    biases = {
        "b1": np.tile(p["conv1_b"], 24)[None, :],    # (1, 144) lane = wo*6+co
        "b2": np.tile(p["conv2_b"], 8)[None, :],     # (1, 128) lane = wo*16+co
        "bf1": bf1, "bf2": bf2, "bf3": bf3,          # (1, 128)
    }
    ops = {k: jnp.asarray(v, compute_dtype) for k, v in weights.items()}
    ops.update({k: jnp.asarray(v, jnp.float32) for k, v in biases.items()})
    return ops


# ------------------------------ forward pass --------------------------------

def garment_classifier_forward(x_nchw, ops, *, bt=BT):
    """x_nchw: (B, 1, 28, 28) float32 -> logits (B, 10)."""
    B, C, H, W = x_nchw.shape
    assert (C, H, W) == (1, 28, 28), (C, H, W)
    assert bt % 8 == 0 and bt >= 8
    n_tiles = -(-B // bt)
    b_pad = n_tiles * bt

    # Host repack into the kernel's row layout (row = h*bt + bt_idx, lane = w).
    # Input is tiny (~3 KB/image) so this pass is cheap relative to the kernel.
    x = jnp.pad(x_nchw.astype(jnp.float32).reshape(B, 28, 28),
                ((0, b_pad - B), (0, 0), (0, 0)))
    x = x.reshape(n_tiles, bt, 28, 28)
    x = jnp.transpose(x, (0, 2, 1, 3))                    # (tiles, h, bt, w)
    x = x.reshape(n_tiles * 28 * bt, 28)

    consts = (ops["t1"], ops["b1"], ops["t2"], ops["b2"], ops["v1"],
              ops["bf1"], ops["w2"], ops["bf2"], ops["w3"], ops["bf3"])

    in_specs = [pl.BlockSpec((28 * bt, 28), lambda b: (b, 0))]
    in_specs += [pl.BlockSpec(c.shape, lambda b, _nd=c.ndim: (0,) * _nd)
                 for c in consts]

    out = pl.pallas_call(
        functools.partial(_fused_forward_kernel, bt=bt),
        out_shape=jax.ShapeDtypeStruct((b_pad, LANE_PAD), jnp.float32),
        grid=(n_tiles,),
        in_specs=in_specs,
        out_specs=pl.BlockSpec((bt, LANE_PAD), lambda b: (b, 0)),
        compiler_params=pltpu.CompilerParams(
            dimension_semantics=("parallel",)),
    )(x, *consts)

    return out[:B, :10]


# ----------------------------- parameters -----------------------------------

def init_params(key):
    """Deterministic PyTorch-default-style init (uniform(-1/sqrt(fan_in), ...))."""
    def uniform(k, shape, fan_in):
        bound = float(fan_in) ** -0.5
        return jax.random.uniform(k, shape, jnp.float32, -bound, bound)

    ks = jax.random.split(key, 10)
    return {
        "conv1_w": uniform(ks[0], (6, 1, 5, 5), 25),
        "conv1_b": uniform(ks[1], (6,), 25),
        "conv2_w": uniform(ks[2], (16, 6, 5, 5), 150),
        "conv2_b": uniform(ks[3], (16,), 150),
        "fc1_w": uniform(ks[4], (120, 16 * 4 * 4), 256),
        "fc1_b": uniform(ks[5], (120,), 256),
        "fc2_w": uniform(ks[6], (84, 120), 120),
        "fc2_b": uniform(ks[7], (84,), 120),
        "fc3_w": uniform(ks[8], (10, 84), 84),
        "fc3_b": uniform(ks[9], (10,), 84),
    }


def reference_forward(x_nchw, params):
    """Plain-JAX (XLA) reference matching the PyTorch module."""
    hi = lax.Precision.HIGHEST
    x = lax.conv_general_dilated(x_nchw, params["conv1_w"], (1, 1), "VALID",
                                 dimension_numbers=("NCHW", "OIHW", "NCHW"),
                                 precision=hi)
    x = jax.nn.relu(x + params["conv1_b"][None, :, None, None])
    x = lax.reduce_window(x, -jnp.inf, lax.max, (1, 1, 2, 2), (1, 1, 2, 2), "VALID")
    x = lax.conv_general_dilated(x, params["conv2_w"], (1, 1), "VALID",
                                 dimension_numbers=("NCHW", "OIHW", "NCHW"),
                                 precision=hi)
    x = jax.nn.relu(x + params["conv2_b"][None, :, None, None])
    x = lax.reduce_window(x, -jnp.inf, lax.max, (1, 1, 2, 2), (1, 1, 2, 2), "VALID")
    x = x.reshape(x.shape[0], 16 * 4 * 4)
    x = jax.nn.relu(jnp.dot(x, params["fc1_w"].T, precision=hi) + params["fc1_b"])
    x = jax.nn.relu(jnp.dot(x, params["fc2_w"].T, precision=hi) + params["fc2_b"])
    return jnp.dot(x, params["fc3_w"].T, precision=hi) + params["fc3_b"]


if __name__ == "__main__":
    # fc1 expects 16*4*4 features => (B, 1, 28, 28) NCHW input.
    # B=48 exercises two grid tiles (keeps both v7x TCs busy) plus tail padding.
    x = jax.random.normal(jax.random.PRNGKey(0), (48, 1, 28, 28), jnp.float32)
    params = init_params(jax.random.PRNGKey(42))
    ref = jax.block_until_ready(reference_forward(x, params))

    fwd = jax.jit(garment_classifier_forward)

    # 1) f32-operand path: proves the fused/folded algorithm is exact.
    ops_f32 = prepare_operands(params, jnp.float32)
    out_f32 = jax.block_until_ready(fwd(x, ops_f32))
    assert out_f32.shape == (48, 10), out_f32.shape
    assert out_f32.dtype == jnp.float32
    err32 = float(jnp.max(jnp.abs(out_f32 - ref)))
    assert err32 < 2e-3, f"f32 max abs err vs reference: {err32}"

    # 2) bf16-operand fast path (f32 accumulation / VPU math): perf config.
    ops_bf16 = prepare_operands(params, jnp.bfloat16)
    out_bf16 = jax.block_until_ready(fwd(x, ops_bf16))
    err16 = float(jnp.max(jnp.abs(out_bf16 - ref)))
    assert err16 < 8e-2, f"bf16 max abs err vs reference: {err16}"

    print("KERNEL_OK")
</pallas_src>

<mosaic_0001>
module attributes {stable_mosaic.version = 11 : i64} {
  func.func @_fused_forward_kernel(%arg0: i32, %arg1: memref<896x28xf32, #tpu.memory_space<vmem>>, %arg2: memref<140x144xf32, #tpu.memory_space<vmem>>, %arg3: memref<1x144xf32, #tpu.memory_space<vmem>>, %arg4: memref<690x128xf32, #tpu.memory_space<vmem>>, %arg5: memref<1x128xf32, #tpu.memory_space<vmem>>, %arg6: memref<448x128xf32, #tpu.memory_space<vmem>>, %arg7: memref<1x128xf32, #tpu.memory_space<vmem>>, %arg8: memref<128x128xf32, #tpu.memory_space<vmem>>, %arg9: memref<1x128xf32, #tpu.memory_space<vmem>>, %arg10: memref<128x128xf32, #tpu.memory_space<vmem>>, %arg11: memref<1x128xf32, #tpu.memory_space<vmem>>, %arg12: memref<32x128xf32, #tpu.memory_space<vmem>>) attributes {dimension_semantics = [#tpu.dimension_semantics<parallel>], iteration_bounds = array<i64: 2>, scalar_prefetch = 0 : i64, scratch_operands = 0 : i64, tpu.core_type = #tpu.core_type<tc>, window_params = [{transform_indices = @transform_0, window_bounds = array<i64: 896, 28>}, {pipeline_mode = #tpu.pipeline_mode<synchronous>, transform_indices = @transform_1, window_bounds = array<i64: 140, 144>}, {pipeline_mode = #tpu.pipeline_mode<synchronous>, transform_indices = @transform_2, window_bounds = array<i64: 1, 144>}, {pipeline_mode = #tpu.pipeline_mode<synchronous>, transform_indices = @transform_3, window_bounds = array<i64: 690, 128>}, {pipeline_mode = #tpu.pipeline_mode<synchronous>, transform_indices = @transform_4, window_bounds = array<i64: 1, 128>}, {pipeline_mode = #tpu.pipeline_mode<synchronous>, transform_indices = @transform_5, window_bounds = array<i64: 448, 128>}, {pipeline_mode = #tpu.pipeline_mode<synchronous>, transform_indices = @transform_6, window_bounds = array<i64: 1, 128>}, {pipeline_mode = #tpu.pipeline_mode<synchronous>, transform_indices = @transform_7, window_bounds = array<i64: 128, 128>}, {pipeline_mode = #tpu.pipeline_mode<synchronous>, transform_indices = @transform_8, window_bounds = array<i64: 1, 128>}, {pipeline_mode = #tpu.pipeline_mode<synchronous>, transform_indices = @transform_9, window_bounds = array<i64: 128, 128>}, {pipeline_mode = #tpu.pipeline_mode<synchronous>, transform_indices = @transform_10, window_bounds = array<i64: 1, 128>}, {transform_indices = @transform_11, window_bounds = array<i64: 32, 128>}]} {
    %c0 = arith.constant 0 : index
    %c0_0 = arith.constant 0 : index
    %0 = vector.load %arg1[%c0, %c0_0] : memref<896x28xf32, #tpu.memory_space<vmem>>, vector<896x28xf32>
    %1 = vector.extract_strided_slice %0 {offsets = [0, 0], sizes = [768, 28], strides = [1, 1]} : vector<896x28xf32> to vector<768x28xf32>
    %2 = vector.extract_strided_slice %0 {offsets = [32, 0], sizes = [768, 28], strides = [1, 1]} : vector<896x28xf32> to vector<768x28xf32>
    %3 = vector.extract_strided_slice %0 {offsets = [64, 0], sizes = [768, 28], strides = [1, 1]} : vector<896x28xf32> to vector<768x28xf32>
    %4 = vector.extract_strided_slice %0 {offsets = [96, 0], sizes = [768, 28], strides = [1, 1]} : vector<896x28xf32> to vector<768x28xf32>
    %5 = vector.extract_strided_slice %0 {offsets = [128, 0], sizes = [768, 28], strides = [1, 1]} : vector<896x28xf32> to vector<768x28xf32>
    %6 = tpu.concatenate %1, %2, %3, %4, %5 in 1 : vector<768x28xf32>, vector<768x28xf32>, vector<768x28xf32>, vector<768x28xf32>, vector<768x28xf32> -> vector<768x140xf32>
    %c0_1 = arith.constant 0 : index
    %c0_2 = arith.constant 0 : index
    %7 = vector.load %arg2[%c0_1, %c0_2] : memref<140x144xf32, #tpu.memory_space<vmem>>, vector<140x144xf32>
    %cst = arith.constant dense<0.000000e+00> : vector<768x144xf32>
    %8 = tpu.matmul %6, %7, %cst {dimension_numbers = #tpu.dot_dimension_numbers<[1], [0], [0], [1], [0, 0, 1, 1], [], []>} : vector<768x140xf32>, vector<140x144xf32>, vector<768x144xf32> -> vector<768x144xf32>
    %c0_3 = arith.constant 0 : index
    %c0_4 = arith.constant 0 : index
    %9 = vector.load %arg3[%c0_3, %c0_4] : memref<1x144xf32, #tpu.memory_space<vmem>>, vector<1x144xf32>
    %10 = vector.broadcast %9 : vector<1x144xf32> to vector<768x144xf32>
    %11 = arith.addf %8, %10 : vector<768x144xf32>
    %cst_5 = arith.constant 0.000000e+00 : f32
    %12 = vector.broadcast %cst_5 : f32 to vector<768x144xf32>
    %13 = arith.maximumf %11, %12 : vector<768x144xf32>
    %14 = vector.shape_cast %13 : vector<768x144xf32> to vector<12x64x144xf32>
    %15 = vector.extract_strided_slice %14 {offsets = [0, 0, 0], sizes = [12, 32, 144], strides = [1, 1, 1]} : vector<12x64x144xf32> to vector<12x32x144xf32>
    %16 = vector.extract_strided_slice %14 {offsets = [0, 32, 0], sizes = [12, 32, 144], strides = [1, 1, 1]} : vector<12x64x144xf32> to vector<12x32x144xf32>
    %17 = arith.maximumf %15, %16 : vector<12x32x144xf32>
    %18 = vector.shape_cast %17 : vector<12x32x144xf32> to vector<384x144xf32>
    %19 = vector.extract_strided_slice %18 {offsets = [0, 0], sizes = [384, 138], strides = [1, 1]} : vector<384x144xf32> to vector<384x138xf32>
    %20 = vector.extract_strided_slice %18 {offsets = [0, 6], sizes = [384, 138], strides = [1, 1]} : vector<384x144xf32> to vector<384x138xf32>
    %21 = arith.maximumf %19, %20 : vector<384x138xf32>
    %22 = vector.extract_strided_slice %21 {offsets = [0, 0], sizes = [256, 138], strides = [1, 1]} : vector<384x138xf32> to vector<256x138xf32>
    %23 = vector.extract_strided_slice %21 {offsets = [32, 0], sizes = [256, 138], strides = [1, 1]} : vector<384x138xf32> to vector<256x138xf32>
    %24 = vector.extract_strided_slice %21 {offsets = [64, 0], sizes = [256, 138], strides = [1, 1]} : vector<384x138xf32> to vector<256x138xf32>
    %25 = vector.extract_strided_slice %21 {offsets = [96, 0], sizes = [256, 138], strides = [1, 1]} : vector<384x138xf32> to vector<256x138xf32>
    %26 = vector.extract_strided_slice %21 {offsets = [128, 0], sizes = [256, 138], strides = [1, 1]} : vector<384x138xf32> to vector<256x138xf32>
    %27 = tpu.concatenate %22, %23, %24, %25, %26 in 1 : vector<256x138xf32>, vector<256x138xf32>, vector<256x138xf32>, vector<256x138xf32>, vector<256x138xf32> -> vector<256x690xf32>
    %c0_6 = arith.constant 0 : index
    %c0_7 = arith.constant 0 : index
    %28 = vector.load %arg4[%c0_6, %c0_7] : memref<690x128xf32, #tpu.memory_space<vmem>>, vector<690x128xf32>
    %cst_8 = arith.constant dense<0.000000e+00> : vector<256x128xf32>
    %29 = tpu.matmul %27, %28, %cst_8 {dimension_numbers = #tpu.dot_dimension_numbers<[1], [0], [0], [1], [0, 0, 1, 1], [], []>} : vector<256x690xf32>, vector<690x128xf32>, vector<256x128xf32> -> vector<256x128xf32>
    %c0_9 = arith.constant 0 : index
    %c0_10 = arith.constant 0 : index
    %30 = vector.load %arg5[%c0_9, %c0_10] : memref<1x128xf32, #tpu.memory_space<vmem>>, vector<1x128xf32>
    %31 = vector.broadcast %30 : vector<1x128xf32> to vector<256x128xf32>
    %32 = arith.addf %29, %31 : vector<256x128xf32>
    %cst_11 = arith.constant 0.000000e+00 : f32
    %33 = vector.broadcast %cst_11 : f32 to vector<256x128xf32>
    %34 = arith.maximumf %32, %33 : vector<256x128xf32>
    %35 = vector.shape_cast %34 : vector<256x128xf32> to vector<4x64x128xf32>
    %36 = vector.extract_strided_slice %35 {offsets = [0, 0, 0], sizes = [4, 32, 128], strides = [1, 1, 1]} : vector<4x64x128xf32> to vector<4x32x128xf32>
    %37 = vector.extract_strided_slice %35 {offsets = [0, 32, 0], sizes = [4, 32, 128], strides = [1, 1, 1]} : vector<4x64x128xf32> to vector<4x32x128xf32>
    %38 = arith.maximumf %36, %37 : vector<4x32x128xf32>
    %39 = vector.shape_cast %38 : vector<4x32x128xf32> to vector<128x128xf32>
    %40 = vector.extract_strided_slice %39 {offsets = [0, 0], sizes = [128, 112], strides = [1, 1]} : vector<128x128xf32> to vector<128x112xf32>
    %41 = vector.extract_strided_slice %39 {offsets = [0, 16], sizes = [128, 112], strides = [1, 1]} : vector<128x128xf32> to vector<128x112xf32>
    %42 = arith.maximumf %40, %41 : vector<128x112xf32>
    %43 = vector.extract_strided_slice %42 {offsets = [0, 0], sizes = [32, 112], strides = [1, 1]} : vector<128x112xf32> to vector<32x112xf32>
    %44 = vector.extract_strided_slice %42 {offsets = [32, 0], sizes = [32, 112], strides = [1, 1]} : vector<128x112xf32> to vector<32x112xf32>
    %45 = vector.extract_strided_slice %42 {offsets = [64, 0], sizes = [32, 112], strides = [1, 1]} : vector<128x112xf32> to vector<32x112xf32>
    %46 = vector.extract_strided_slice %42 {offsets = [96, 0], sizes = [32, 112], strides = [1, 1]} : vector<128x112xf32> to vector<32x112xf32>
    %47 = tpu.concatenate %43, %44, %45, %46 in 1 : vector<32x112xf32>, vector<32x112xf32>, vector<32x112xf32>, vector<32x112xf32> -> vector<32x448xf32>
    %c0_12 = arith.constant 0 : index
    %c0_13 = arith.constant 0 : index
    %48 = vector.load %arg6[%c0_12, %c0_13] : memref<448x128xf32, #tpu.memory_space<vmem>>, vector<448x128xf32>
    %cst_14 = arith.constant dense<0.000000e+00> : vector<32x128xf32>
    %49 = tpu.matmul %47, %48, %cst_14 {dimension_numbers = #tpu.dot_dimension_numbers<[1], [0], [0], [1], [0, 0, 1, 1], [], []>} : vector<32x448xf32>, vector<448x128xf32>, vector<32x128xf32> -> vector<32x128xf32>
    %c0_15 = arith.constant 0 : index
    %c0_16 = arith.constant 0 : index
    %50 = vector.load %arg7[%c0_15, %c0_16] : memref<1x128xf32, #tpu.memory_space<vmem>>, vector<1x128xf32>
    %51 = vector.broadcast %50 : vector<1x128xf32> to vector<32x128xf32>
    %52 = arith.addf %49, %51 : vector<32x128xf32>
    %cst_17 = arith.constant 0.000000e+00 : f32
    %53 = vector.broadcast %cst_17 : f32 to vector<32x128xf32>
    %54 = arith.maximumf %52, %53 : vector<32x128xf32>
    %c0_18 = arith.constant 0 : index
    %c0_19 = arith.constant 0 : index
    %55 = vector.load %arg8[%c0_18, %c0_19] : memref<128x128xf32, #tpu.memory_space<vmem>>, vector<128x128xf32>
    %cst_20 = arith.constant dense<0.000000e+00> : vector<32x128xf32>
    %56 = tpu.matmul %54, %55, %cst_20 {dimension_numbers = #tpu.dot_dimension_numbers<[1], [0], [0], [1], [0, 0, 1, 1], [], []>} : vector<32x128xf32>, vector<128x128xf32>, vector<32x128xf32> -> vector<32x128xf32>
    %c0_21 = arith.constant 0 : index
    %c0_22 = arith.constant 0 : index
    %57 = vector.load %arg9[%c0_21, %c0_22] : memref<1x128xf32, #tpu.memory_space<vmem>>, vector<1x128xf32>
    %58 = vector.broadcast %57 : vector<1x128xf32> to vector<32x128xf32>
    %59 = arith.addf %56, %58 : vector<32x128xf32>
    %cst_23 = arith.constant 0.000000e+00 : f32
    %60 = vector.broadcast %cst_23 : f32 to vector<32x128xf32>
    %61 = arith.maximumf %59, %60 : vector<32x128xf32>
    %c0_24 = arith.constant 0 : index
    %c0_25 = arith.constant 0 : index
    %62 = vector.load %arg10[%c0_24, %c0_25] : memref<128x128xf32, #tpu.memory_space<vmem>>, vector<128x128xf32>
    %cst_26 = arith.constant dense<0.000000e+00> : vector<32x128xf32>
    %63 = tpu.matmul %61, %62, %cst_26 {dimension_numbers = #tpu.dot_dimension_numbers<[1], [0], [0], [1], [0, 0, 1, 1], [], []>} : vector<32x128xf32>, vector<128x128xf32>, vector<32x128xf32> -> vector<32x128xf32>
    %c0_27 = arith.constant 0 : index
    %c0_28 = arith.constant 0 : index
    %64 = vector.load %arg11[%c0_27, %c0_28] : memref<1x128xf32, #tpu.memory_space<vmem>>, vector<1x128xf32>
    %65 = vector.broadcast %64 : vector<1x128xf32> to vector<32x128xf32>
    %66 = arith.addf %63, %65 : vector<32x128xf32>
    %c0_29 = arith.constant 0 : index
    %c0_30 = arith.constant 0 : index
    %67 = vector.load %arg12[%c0_29, %c0_30] : memref<32x128xf32, #tpu.memory_space<vmem>>, vector<32x128xf32>
    tpu.vector_store %arg12[%c0_29, %c0_30], %66 {strides = array<i32>} : memref<32x128xf32, #tpu.memory_space<vmem>>, vector<32x128xf32>,
    return
  }
  func.func @transform_0(%arg0: i32) -> (i32, i32) {
    %c0_i32 = arith.constant 0 : i32
    %c0_i32_0 = arith.constant 0 : i32
    return %arg0, %c0_i32 : i32, i32
  }
  func.func @transform_1(%arg0: i32) -> (i32, i32) {
    %c0_i32 = arith.constant 0 : i32
    %c0_i32_0 = arith.constant 0 : i32
    %c0_i32_1 = arith.constant 0 : i32
    return %c0_i32, %c0_i32_0 : i32, i32
  }
  func.func @transform_2(%arg0: i32) -> (i32, i32) {
    %c0_i32 = arith.constant 0 : i32
    %c0_i32_0 = arith.constant 0 : i32
    %c0_i32_1 = arith.constant 0 : i32
    return %c0_i32, %c0_i32_0 : i32, i32
  }
  func.func @transform_3(%arg0: i32) -> (i32, i32) {
    %c0_i32 = arith.constant 0 : i32
    %c0_i32_0 = arith.constant 0 : i32
    %c0_i32_1 = arith.constant 0 : i32
    return %c0_i32, %c0_i32_0 : i32, i32
  }
  func.func @transform_4(%arg0: i32) -> (i32, i32) {
    %c0_i32 = arith.constant 0 : i32
    %c0_i32_0 = arith.constant 0 : i32
    %c0_i32_1 = arith.constant 0 : i32
    return %c0_i32, %c0_i32_0 : i32, i32
  }
  func.func @transform_5(%arg0: i32) -> (i32, i32) {
    %c0_i32 = arith.constant 0 : i32
    %c0_i32_0 = arith.constant 0 : i32
    %c0_i32_1 = arith.constant 0 : i32
    return %c0_i32, %c0_i32_0 : i32, i32
  }
  func.func @transform_6(%arg0: i32) -> (i32, i32) {
    %c0_i32 = arith.constant 0 : i32
    %c0_i32_0 = arith.constant 0 : i32
    %c0_i32_1 = arith.constant 0 : i32
    return %c0_i32, %c0_i32_0 : i32, i32
  }
  func.func @transform_7(%arg0: i32) -> (i32, i32) {
    %c0_i32 = arith.constant 0 : i32
    %c0_i32_0 = arith.constant 0 : i32
    %c0_i32_1 = arith.constant 0 : i32
    return %c0_i32, %c0_i32_0 : i32, i32
  }
  func.func @transform_8(%arg0: i32) -> (i32, i32) {
    %c0_i32 = arith.constant 0 : i32
    %c0_i32_0 = arith.constant 0 : i32
    %c0_i32_1 = arith.constant 0 : i32
    return %c0_i32, %c0_i32_0 : i32, i32
  }
  func.func @transform_9(%arg0: i32) -> (i32, i32) {
    %c0_i32 = arith.constant 0 : i32
    %c0_i32_0 = arith.constant 0 : i32
    %c0_i32_1 = arith.constant 0 : i32
    return %c0_i32, %c0_i32_0 : i32, i32
  }
  func.func @transform_10(%arg0: i32) -> (i32, i32) {
    %c0_i32 = arith.constant 0 : i32
    %c0_i32_0 = arith.constant 0 : i32
    %c0_i32_1 = arith.constant 0 : i32
    return %c0_i32, %c0_i32_0 : i32, i32
  }
  func.func @transform_11(%arg0: i32) -> (i32, i32) {
    %c0_i32 = arith.constant 0 : i32
    %c0_i32_0 = arith.constant 0 : i32
    return %arg0, %c0_i32 : i32, i32
  }
}

</mosaic_0001>

<llo_original>
// kernel: garment_classifier_forward.1
$region0: #{garment_classifier_forward.1}
  #allocation0 [shape = 'u32[]', space=smem, size = 0x4, offset = 0x4, fixed_abs, tag = 'smem constant byte address 0x4 - core index']
  #allocation1 [shape = 'u32[144,128]{1,0:T(1,128)}', space=vmem, size = 0x12000, scoped, tag = 'internal scratch']
  %s0 = inlined_call_operand.vmem [shape: f32[1792,28], index: 0, kind: input, shape index: {}]
  %s1 = inlined_call_operand.vmem [shape: f32[140,144], index: 1, kind: input, shape index: {}]
  %s2 = inlined_call_operand.vmem [shape: f32[1,144], index: 2, kind: input, shape index: {}]
  %s3 = inlined_call_operand.vmem [shape: f32[690,128], index: 3, kind: input, shape index: {}]
  %s4 = inlined_call_operand.vmem [shape: f32[1,128], index: 4, kind: input, shape index: {}]
  %s5 = inlined_call_operand.vmem [shape: f32[448,128], index: 5, kind: input, shape index: {}]
  %s6 = inlined_call_operand.vmem [shape: f32[1,128], index: 6, kind: input, shape index: {}]
  %s7 = inlined_call_operand.vmem [shape: f32[128,128], index: 7, kind: input, shape index: {}]
  %s8 = inlined_call_operand.vmem [shape: f32[1,128], index: 8, kind: input, shape index: {}]
  %s9 = inlined_call_operand.vmem [shape: f32[128,128], index: 9, kind: input, shape index: {}]
  %s10 = inlined_call_operand.vmem [shape: f32[1,128], index: 10, kind: input, shape index: {}]
  %s11 = inlined_call_operand.vmem [shape: f32[64,128], index: 11, kind: output, shape index: {}]
  %s12 = sld [smem:[#allocation0]]
  $region77: #{garment_classifier_forward.1} parent=0
    _
  %s14 = ssub.s32 1, %s12
  %s15 = scalar_select 0, %s14, %s12
  loop: start=0, step=1, limit=4
  $region2: #{garment_classifier_forward.1} parent=0 // loop_pre_header
    _
  $region3: #{garment_classifier_forward.1} parent=0 // loop_header
    %s17 = sphi 0, %s21
    %p18 = scmp.ge.s32.totalorder %s17, 4
    %s27 = sphi 0, %s29
    %s30 = sphi 0, %s27
    %s31 = sphi 0, %s30
    %s47 = sphi 0, %s31
    %s51 = sphi 0, %s51
    %s53 = sphi 0, %s51
    %s54 = sphi 0, %s53
    %s68 = sphi 0, %s54
    %s72 = sphi 0, %s72
    %s74 = sphi 0, %s72
    %s75 = sphi 0, %s74
    %s89 = sphi 0, %s75
    %s93 = sphi 0, %s93
    %s95 = sphi 0, %s93
    %s96 = sphi 0, %s95
    %s110 = sphi 0, %s96
    %s114 = sphi 0, %s114
    %s116 = sphi 0, %s114
    %s117 = sphi 0, %s116
    %s131 = sphi 0, %s117
    %s135 = sphi 0, %s135
    %s137 = sphi 0, %s135
    %s138 = sphi 0, %s137
    %s152 = sphi 0, %s138
    %s156 = sphi 0, %s156
    %s158 = sphi 0, %s156
    %s159 = sphi 0, %s158
    %s173 = sphi 0, %s159
    %s177 = sphi 0, %s177
    %s179 = sphi 0, %s177
    %s180 = sphi 0, %s179
    %s194 = sphi 0, %s180
    %s198 = sphi 0, %s198
    %s200 = sphi 0, %s198
    %s201 = sphi 0, %s200
    %s215 = sphi 0, %s201
    %s219 = sphi 0, %s219
    %s221 = sphi 0, %s219
    %s222 = sphi 0, %s221
    %s236 = sphi 0, %s222
    %s240 = sphi 0, %s240
    %s242 = sphi 0, %s240
    %s243 = sphi 0, %s242
    %s257 = sphi 0, %s243
    %s263 = sphi 0, %s265
    %s266 = sphi 0, %s263
    %s267 = sphi 0, %s266
    %s283 = sphi 0, %s267
  $region4: #{garment_classifier_forward.1} parent=0 // loop_header_branch
    %20 = sbr.rel (%p18) target = $region8
  $region5: #{garment_classifier_forward.1} parent=0 // loop_body
    %s22 = ssub.s32 %s17, 1
    %s23 = ssub.s32 %s17, 2
    %s24 = sadd.s32 %s17, 1
    %s25 = ssub.s32 %s17, %s24
    %p26 = scmp.eq.s32.totalorder %s25, 0
    %s28 = sadd.s32 %s27, 1
    %s29 = scalar_select %p26, %s27, %s28
    %p32 = pneg %p26
    %p33 = scmp.eq.s32.totalorder %s17, 1
    %p34 = por %p32, %p33
    %p35 = scmp.ne.s32.totalorder %s27, %s30
    %p36 = scmp.eq.s32.totalorder %s17, 0
    %p37 = por %p35, %p36
    %p38 = scmp.ne.s32.totalorder %s27, %s30
    %p39 = scmp.eq.s32.totalorder %s22, 1
    %p40 = por %p38, %p39
    %p41 = scmp.ne.s32.totalorder %s30, %s31
    %p42 = scmp.eq.s32.totalorder %s22, 0
    %p43 = por %p41, %p42
    %p44 = scmp.ne.s32.totalorder %s30, %s31
    %p45 = scmp.eq.s32.totalorder %s23, 1
    %p46 = por %p44, %p45
    %p48 = scmp.ne.s32.totalorder %s31, %s47
    %p49 = scmp.eq.s32.totalorder %s23, 0
    %p50 = por %p48, %p49
    %s52 = sadd.s32 %s51, 1
    %p55 = scmp.eq.s32.totalorder %s17, 1
    %p56 = scmp.ne.s32.totalorder %s51, %s53
    %p57 = scmp.eq.s32.totalorder %s17, 0
    %p58 = por %p56, %p57
    %p59 = scmp.ne.s32.totalorder %s51, %s53
    %p60 = scmp.eq.s32.totalorder %s22, 1
    %p61 = por %p59, %p60
    %p62 = scmp.ne.s32.totalorder %s53, %s54
    %p63 = scmp.eq.s32.totalorder %s22, 0
    %p64 = por %p62, %p63
    %p65 = scmp.ne.s32.totalorder %s53, %s54
    %p66 = scmp.eq.s32.totalorder %s23, 1
    %p67 = por %p65, %p66
    %p69 = scmp.ne.s32.totalorder %s54, %s68
    %p70 = scmp.eq.s32.totalorder %s23, 0
    %p71 = por %p69, %p70
    %s73 = sadd.s32 %s72, 1
    %p76 = scmp.eq.s32.totalorder %s17, 1
    %p77 = scmp.ne.s32.totalorder %s72, %s74
    %p78 = scmp.eq.s32.totalorder %s17, 0
    %p79 = por %p77, %p78
    %p80 = scmp.ne.s32.totalorder %s72, %s74
    %p81 = scmp.eq.s32.totalorder %s22, 1
    %p82 = por %p80, %p81
    %p83 = scmp.ne.s32.totalorder %s74, %s75
    %p84 = scmp.eq.s32.totalorder %s22, 0
    %p85 = por %p83, %p84
    %p86 = scmp.ne.s32.totalorder %s74, %s75
    %p87 = scmp.eq.s32.totalorder %s23, 1
    %p88 = por %p86, %p87
    %p90 = scmp.ne.s32.totalorder %s75, %s89
    %p91 = scmp.eq.s32.totalorder %s23, 0
    %p92 = por %p90, %p91
    %s94 = sadd.s32 %s93, 1
    %p97 = scmp.eq.s32.totalorder %s17, 1
    %p98 = scmp.ne.s32.totalorder %s93, %s95
    %p99 = scmp.eq.s32.totalorder %s17, 0
    %p100 = por %p98, %p99
    %p101 = scmp.ne.s32.totalorder %s93, %s95
    %p102 = scmp.eq.s32.totalorder %s22, 1
    %p103 = por %p101, %p102
    %p104 = scmp.ne.s32.totalorder %s95, %s96
    %p105 = scmp.eq.s32.totalorder %s22, 0
    %p106 = por %p104, %p105
    %p107 = scmp.ne.s32.totalorder %s95, %s96
    %p108 = scmp.eq.s32.totalorder %s23, 1
    %p109 = por %p107, %p108
    %p111 = scmp.ne.s32.totalorder %s96, %s110
    %p112 = scmp.eq.s32.totalorder %s23, 0
    %p113 = por %p111, %p112
    %s115 = sadd.s32 %s114, 1
    %p118 = scmp.eq.s32.totalorder %s17, 1
    %p119 = scmp.ne.s32.totalorder %s114, %s116
    %p120 = scmp.eq.s32.totalorder %s17, 0
    %p121 = por %p119, %p120
    %p122 = scmp.ne.s32.totalorder %s114, %s116
    %p123 = scmp.eq.s32.totalorder %s22, 1
    %p124 = por %p122, %p123
    %p125 = scmp.ne.s32.totalorder %s116, %s117
    %p126 = scmp.eq.s32.totalorder %s22, 0
    %p127 = por %p125, %p126
    %p128 = scmp.ne.s32.totalorder %s116, %s117
    %p129 = scmp.eq.s32.totalorder %s23, 1
    %p130 = por %p128, %p129
    %p132 = scmp.ne.s32.totalorder %s117, %s131
    %p133 = scmp.eq.s32.totalorder %s23, 0
    %p134 = por %p132, %p133
    %s136 = sadd.s32 %s135, 1
    %p139 = scmp.eq.s32.totalorder %s17, 1
    %p140 = scmp.ne.s32.totalorder %s135, %s137
    %p141 = scmp.eq.s32.totalorder %s17, 0
    %p142 = por %p140, %p141
    %p143 = scmp.ne.s32.totalorder %s135, %s137
    %p144 = scmp.eq.s32.totalorder %s22, 1
    %p145 = por %p143, %p144
    %p146 = scmp.ne.s32.totalorder %s137, %s138
    %p147 = scmp.eq.s32.totalorder %s22, 0
    %p148 = por %p146, %p147
    %p149 = scmp.ne.s32.totalorder %s137, %s138
    %p150 = scmp.eq.s32.totalorder %s23, 1
    %p151 = por %p149, %p150
    %p153 = scmp.ne.s32.totalorder %s138, %s152
    %p154 = scmp.eq.s32.totalorder %s23, 0
    %p155 = por %p153, %p154
    %s157 = sadd.s32 %s156, 1
    %p160 = scmp.eq.s32.totalorder %s17, 1
    %p161 = scmp.ne.s32.totalorder %s156, %s158
    %p162 = scmp.eq.s32.totalorder %s17, 0
    %p163 = por %p161, %p162
    %p164 = scmp.ne.s32.totalorder %s156, %s158
    %p165 = scmp.eq.s32.totalorder %s22, 1
    %p166 = por %p164, %p165
    %p167 = scmp.ne.s32.totalorder %s158, %s159
    %p168 = scmp.eq.s32.totalorder %s22, 0
    %p169 = por %p167, %p168
    %p170 = scmp.ne.s32.totalorder %s158, %s159
    %p171 = scmp.eq.s32.totalorder %s23, 1
    %p172 = por %p170, %p171
    %p174 = scmp.ne.s32.totalorder %s159, %s173
    %p175 = scmp.eq.s32.totalorder %s23, 0
    %p176 = por %p174, %p175
    %s178 = sadd.s32 %s177, 1
    %p181 = scmp.eq.s32.totalorder %s17, 1
    %p182 = scmp.ne.s32.totalorder %s177, %s179
    %p183 = scmp.eq.s32.totalorder %s17, 0
    %p184 = por %p182, %p183
    %p185 = scmp.ne.s32.totalorder %s177, %s179
    %p186 = scmp.eq.s32.totalorder %s22, 1
    %p187 = por %p185, %p186
    %p188 = scmp.ne.s32.totalorder %s179, %s180
    %p189 = scmp.eq.s32.totalorder %s22, 0
    %p190 = por %p188, %p189
    %p191 = scmp.ne.s32.totalorder %s179, %s180
    %p192 = scmp.eq.s32.totalorder %s23, 1
    %p193 = por %p191, %p192
    %p195 = scmp.ne.s32.totalorder %s180, %s194
    %p196 = scmp.eq.s32.totalorder %s23, 0
    %p197 = por %p195, %p196
    %s199 = sadd.s32 %s198, 1
    %p202 = scmp.eq.s32.totalorder %s17, 1
    %p203 = scmp.ne.s32.totalorder %s198, %s200
    %p204 = scmp.eq.s32.totalorder %s17, 0
    %p205 = por %p203, %p204
    %p206 = scmp.ne.s32.totalorder %s198, %s200
    %p207 = scmp.eq.s32.totalorder %s22, 1
    %p208 = por %p206, %p207
    %p209 = scmp.ne.s32.totalorder %s200, %s201
    %p210 = scmp.eq.s32.totalorder %s22, 0
    %p211 = por %p209, %p210
    %p212 = scmp.ne.s32.totalorder %s200, %s201
    %p213 = scmp.eq.s32.totalorder %s23, 1
    %p214 = por %p212, %p213
    %p216 = scmp.ne.s32.totalorder %s201, %s215
    %p217 = scmp.eq.s32.totalorder %s23, 0
    %p218 = por %p216, %p217
    %s220 = sadd.s32 %s219, 1
    %p223 = scmp.eq.s32.totalorder %s17, 1
    %p224 = scmp.ne.s32.totalorder %s219, %s221
    %p225 = scmp.eq.s32.totalorder %s17, 0
    %p226 = por %p224, %p225
    %p227 = scmp.ne.s32.totalorder %s219, %s221
    %p228 = scmp.eq.s32.totalorder %s22, 1
    %p229 = por %p227, %p228
    %p230 = scmp.ne.s32.totalorder %s221, %s222
    %p231 = scmp.eq.s32.totalorder %s22, 0
    %p232 = por %p230, %p231
    %p233 = scmp.ne.s32.totalorder %s221, %s222
    %p234 = scmp.eq.s32.totalorder %s23, 1
    %p235 = por %p233, %p234
    %p237 = scmp.ne.s32.totalorder %s222, %s236
    %p238 = scmp.eq.s32.totalorder %s23, 0
    %p239 = por %p237, %p238
    %s241 = sadd.s32 %s240, 1
    %p244 = scmp.eq.s32.totalorder %s17, 1
    %p245 = scmp.ne.s32.totalorder %s240, %s242
    %p246 = scmp.eq.s32.totalorder %s17, 0
    %p247 = por %p245, %p246
    %p248 = scmp.ne.s32.totalorder %s240, %s242
    %p249 = scmp.eq.s32.totalorder %s22, 1
    %p250 = por %p248, %p249
    %p251 = scmp.ne.s32.totalorder %s242, %s243
    %p252 = scmp.eq.s32.totalorder %s22, 0
    %p253 = por %p251, %p252
    %p254 = scmp.ne.s32.totalorder %s242, %s243
    %p255 = scmp.eq.s32.totalorder %s23, 1
    %p256 = por %p254, %p255
    %p258 = scmp.ne.s32.totalorder %s243, %s257
    %p259 = scmp.eq.s32.totalorder %s23, 0
    %p260 = por %p258, %p259
    %s261 = ssub.s32 %s17, %s24
    %p262 = scmp.eq.s32.totalorder %s261, 0
    %s264 = sadd.s32 %s263, 1
    %s265 = scalar_select %p262, %s263, %s264
    %p268 = pneg %p262
    %p269 = scmp.eq.s32.totalorder %s17, 1
    %p270 = por %p268, %p269
    %p271 = scmp.ne.s32.totalorder %s263, %s266
    %p272 = scmp.eq.s32.totalorder %s17, 0
    %p273 = por %p271, %p272
    %p274 = scmp.ne.s32.totalorder %s263, %s266
    %p275 = scmp.eq.s32.totalorder %s22, 1
    %p276 = por %p274, %p275
    %p277 = scmp.ne.s32.totalorder %s266, %s267
    %p278 = scmp.eq.s32.totalorder %s22, 0
    %p279 = por %p277, %p278
    %p280 = scmp.ne.s32.totalorder %s266, %s267
    %p281 = scmp.eq.s32.totalorder %s23, 1
    %p282 = por %p280, %p281
    %p284 = scmp.ne.s32.totalorder %s267, %s283
    %p285 = scmp.eq.s32.totalorder %s23, 0
    %p286 = por %p284, %p285
    %p287 = scmp.le.s32.totalorder 1, %s17
    %p288 = scmp.lt.s32.totalorder %s17, 3
    %p289 = pnand %p287, %p288
    %p290 = pneg %p289
    // Predicated region
    $region9: #{garment_classifier_forward.1} parent=5 // pred_check
      _
    $region10: #{garment_classifier_forward.1} parent=5 // pred_check_branch
      %292 = sbr.rel (%p289) target = $region12
    $region11: #{garment_classifier_forward.1} parent=5 // pred_region
      %s293 = ssub.s32 %s17, 1
      // Predicated region
      $region13: #{garment_classifier_forward.1} parent=11 // pred_check
        %p294 = pneg %p64
      $region14: #{garment_classifier_forward.1} parent=11 // pred_check_branch
        %296 = sbr.rel (%p294) target = $region16
      $region15: #{garment_classifier_forward.1} parent=11 // pred_region
        _
      $region16: #{garment_classifier_forward.1} parent=11 // pred_fallthru
        _
      // Predicated region
      $region17: #{garment_classifier_forward.1} parent=11 // pred_check
        %p297 = pneg %p85
      $region18: #{garment_classifier_forward.1} parent=11 // pred_check_branch
        %299 = sbr.rel (%p297) target = $region20
      $region19: #{garment_classifier_forward.1} parent=11 // pred_region
        _
      $region20: #{garment_classifier_forward.1} parent=11 // pred_fallthru
        _
      // Predicated region
      $region21: #{garment_classifier_forward.1} parent=11 // pred_check
        %p300 = pneg %p106
      $region22: #{garment_classifier_forward.1} parent=11 // pred_check_branch
        %302 = sbr.rel (%p300) target = $region24
      $region23: #{garment_classifier_forward.1} parent=11 // pred_region
        _
      $region24: #{garment_classifier_forward.1} parent=11 // pred_fallthru
        _
      // Predicated region
      $region25: #{garment_classifier_forward.1} parent=11 // pred_check
        %p303 = pneg %p127
      $region26: #{garment_classifier_forward.1} parent=11 // pred_check_branch
        %305 = sbr.rel (%p303) target = $region28
      $region27: #{garment_classifier_forward.1} parent=11 // pred_region
        _
      $region28: #{garment_classifier_forward.1} parent=11 // pred_fallthru
        _
      // Predicated region
      $region29: #{garment_classifier_forward.1} parent=11 // pred_check
        %p306 = pneg %p148
      $region30: #{garment_classifier_forward.1} parent=11 // pred_check_branch
        %308 = sbr.rel (%p306) target = $region32
      $region31: #{garment_classifier_forward.1} parent=11 // pred_region
        _
      $region32: #{garment_classifier_forward.1} parent=11 // pred_fallthru
        _
      // Predicated region
      $region33: #{garment_classifier_forward.1} parent=11 // pred_check
        %p309 = pneg %p169
      $region34: #{garment_classifier_forward.1} parent=11 // pred_check_branch
        %311 = sbr.rel (%p309) target = $region36
      $region35: #{garment_classifier_forward.1} parent=11 // pred_region
        _
      $region36: #{garment_classifier_forward.1} parent=11 // pred_fallthru
        _
      // Predicated region
      $region37: #{garment_classifier_forward.1} parent=11 // pred_check
        %p312 = pneg %p190
      $region38: #{garment_classifier_forward.1} parent=11 // pred_check_branch
        %314 = sbr.rel (%p312) target = $region40
      $region39: #{garment_classifier_forward.1} parent=11 // pred_region
        _
      $region40: #{garment_classifier_forward.1} parent=11 // pred_fallthru
        _
      // Predicated region
      $region41: #{garment_classifier_forward.1} parent=11 // pred_check
        %p315 = pneg %p211
      $region42: #{garment_classifier_forward.1} parent=11 // pred_check_branch
        %317 = sbr.rel (%p315) target = $region44
      $region43: #{garment_classifier_forward.1} parent=11 // pred_region
        _
      $region44: #{garment_classifier_forward.1} parent=11 // pred_fallthru
        _
      // Predicated region
      $region45: #{garment_classifier_forward.1} parent=11 // pred_check
        %p318 = pneg %p232
      $region46: #{garment_classifier_forward.1} parent=11 // pred_check_branch
        %320 = sbr.rel (%p318) target = $region48
      $region47: #{garment_classifier_forward.1} parent=11 // pred_region
        _
      $region48: #{garment_classifier_forward.1} parent=11 // pred_fallthru
        _
      // Predicated region
      $region49: #{garment_classifier_forward.1} parent=11 // pred_check
        %p321 = pneg %p253
      $region50: #{garment_classifier_forward.1} parent=11 // pred_check_branch
        %323 = sbr.rel (%p321) target = $region52
      $region51: #{garment_classifier_forward.1} parent=11 // pred_region
        _
      $region52: #{garment_classifier_forward.1} parent=11 // pred_fallthru
        _
    $region12: #{garment_classifier_forward.1} parent=5 // pred_fallthru
      _
    %p324 = scmp.lt.s32.totalorder %s17, 2
    // Predicated region
    $region53: #{garment_classifier_forward.1} parent=5 // pred_check
      %p325 = pneg %p324
    $region54: #{garment_classifier_forward.1} parent=5 // pred_check_branch
      %327 = sbr.rel (%p325) target = $region56
    $region55: #{garment_classifier_forward.1} parent=5 // pred_region
      // Predicated region
      $region57: #{garment_classifier_forward.1} parent=55 // pred_check
        %p328 = pneg %p37
      $region58: #{garment_classifier_forward.1} parent=55 // pred_check_branch
        %330 = sbr.rel (%p328) target = $region60
      $region59: #{garment_classifier_forward.1} parent=55 // pred_region
        %s331 = smul.u32 112, %s17
        %p332 = scmp.lt.s32.totalorder %s331, 223
        %s333 = scalar_select %p332, %s331, 223
        %s334 = smul.addr %s333, 8
        %s335 = scalar_lea.vmem %s0, %s334
        %s336 = smul.u32 112, %s17
      $region60: #{garment_classifier_forward.1} parent=55 // pred_fallthru
        _
    $region56: #{garment_classifier_forward.1} parent=5 // pred_fallthru
      _
    %p337 = scmp.le.s32.totalorder 1, %s17
    %p338 = scmp.lt.s32.totalorder %s17, 3
    %p339 = pnand %p337, %p338
    %p340 = pneg %p339
    // Predicated region
    $region61: #{garment_classifier_forward.1} parent=5 // pred_check
      _
    $region62: #{garment_classifier_forward.1} parent=5 // pred_check_branch
      %342 = sbr.rel (%p339) target = $region64
    $region63: #{garment_classifier_forward.1} parent=5 // pred_region
      %s343 = ssub.s32 %s17, 1
      %s344 = smul.u32 112, %s22
      %p345 = scmp.lt.s32.totalorder %s344, 223
      %s346 = scalar_select %p345, %s344, 223
      %s347 = smul.addr %s346, 8
      %s348 = scalar_lea.vmem %s0, %s347
      %p349 = pneg %p43
      %p350 = pneg %p40
      %p351 = pneg %p64
      %p352 = pneg %p61
      %p353 = pneg %p85
      %p354 = pneg %p82
      %p355 = pneg %p106
      %p356 = pneg %p103
      %p357 = pneg %p127
      %p358 = pneg %p124
      %p359 = pneg %p148
      %p360 = pneg %p145
      %p361 = pneg %p169
      %p362 = pneg %p166
      %p363 = pneg %p190
      %p364 = pneg %p187
      %p365 = pneg %p211
      %p366 = pneg %p208
      %p367 = pneg %p232
      %p368 = pneg %p229
      %p369 = pneg %p253
      %p370 = pneg %p250
      %p371 = pneg %p279
      %p372 = pneg %p276
      %s373 = smul.u32 4, %s22
      %p374 = scmp.lt.s32.totalorder %s373, 7
      %s375 = scalar_select %p374, %s373, 7
      %s376 = smul.addr %s375, 8
      %s377 = scalar_lea.vmem %s11, %s376
      %s378 = smul.u32 112, %s22
      %p379 = scmp.lt.s32.totalorder %s378, 223
      %s380 = scalar_select %p379, %s378, 223
      %s381 = smul.addr %s380, 8
      %s382 = scalar_lea.vmem %s0, %s381
      %s383 = smul.u32 112, %s22
      %s384 = smul.u32 4, %s22
      %p385 = scmp.lt.s32.totalorder %s384, 7
      %s386 = scalar_select %p385, %s384, 7
      %s387 = smul.addr %s386, 8
      %s388 = scalar_lea.vmem %s11, %s387
      %s389 = smul.u32 4, %s22
      %v390 = vld [vmem:[%s382] sm:$0xff]
      %v391 = vld [vmem:[%s382 + $0x8] sm:$0xff]
      %v392 = vld [vmem:[%s382 + $0x10] sm:$0xff]
      %v393 = vld [vmem:[%s382 + $0x18] sm:$0xff]
      %v394 = vld [vmem:[%s382 + $0x20] sm:$0xff]
      %v395 = vld [vmem:[%s382 + $0x28] sm:$0xff]
      %v396 = vld [vmem:[%s382 + $0x30] sm:$0xff]
      %v397 = vld [vmem:[%s382 + $0x38] sm:$0xff]
      %v398 = vld [vmem:[%s382 + $0x40] sm:$0xff]
      %v399 = vld [vmem:[%s382 + $0x48] sm:$0xff]
      %v400 = vld [vmem:[%s382 + $0x50] sm:$0xff]
      %v401 = vld [vmem:[%s382 + $0x58] sm:$0xff]
      %v402 = vld [vmem:[%s382 + $0x60] sm:$0xff]
      %v403 = vld [vmem:[%s382 + $0x68] sm:$0xff]
      %v404 = vld [vmem:[%s382 + $0x70] sm:$0xff]
      %v405 = vld [vmem:[%s382 + $0x78] sm:$0xff]
      %v406 = vld [vmem:[%s382 + $0x80] sm:$0xff]
      %v407 = vld [vmem:[%s382 + $0x88] sm:$0xff]
      %v408 = vld [vmem:[%s382 + $0x90] sm:$0xff]
      %v409 = vld [vmem:[%s382 + $0x98] sm:$0xff]
      %v410 = vld [vmem:[%s382 + $0xa0] sm:$0xff]
      %v411 = vld [vmem:[%s382 + $0xa8] sm:$0xff]
      %v412 = vld [vmem:[%s382 + $0xb0] sm:$0xff]
      %v413 = vld [vmem:[%s382 + $0xb8] sm:$0xff]
      %v414 = vld [vmem:[%s382 + $0xc0] sm:$0xff]
      %v415 = vld [vmem:[%s382 + $0xc8] sm:$0xff]
      %v416 = vld [vmem:[%s382 + $0xd0] sm:$0xff]
      %v417 = vld [vmem:[%s382 + $0xd8] sm:$0xff]
      %v418 = vld [vmem:[%s382 + $0xe0] sm:$0xff]
      %v419 = vld [vmem:[%s382 + $0xe8] sm:$0xff]
      %v420 = vld [vmem:[%s382 + $0xf0] sm:$0xff]
      %v421 = vld [vmem:[%s382 + $0xf8] sm:$0xff]
      %v422 = vld [vmem:[%s382 + $0x100] sm:$0xff]
      %v423 = vld [vmem:[%s382 + $0x108] sm:$0xff]
      %v424 = vld [vmem:[%s382 + $0x110] sm:$0xff]
      %v425 = vld [vmem:[%s382 + $0x118] sm:$0xff]
      %v426 = vld [vmem:[%s382 + $0x120] sm:$0xff]
      %v427 = vld [vmem:[%s382 + $0x128] sm:$0xff]
      %v428 = vld [vmem:[%s382 + $0x130] sm:$0xff]
      %v429 = vld [vmem:[%s382 + $0x138] sm:$0xff]
      %v430 = vld [vmem:[%s382 + $0x140] sm:$0xff]
      %v431 = vld [vmem:[%s382 + $0x148] sm:$0xff]
      %v432 = vld [vmem:[%s382 + $0x150] sm:$0xff]
      %v433 = vld [vmem:[%s382 + $0x158] sm:$0xff]
      %v434 = vld [vmem:[%s382 + $0x160] sm:$0xff]
      %v435 = vld [vmem:[%s382 + $0x168] sm:$0xff]
      %v436 = vld [vmem:[%s382 + $0x170] sm:$0xff]
      %v437 = vld [vmem:[%s382 + $0x178] sm:$0xff]
      %v438 = vld [vmem:[%s382 + $0x180] sm:$0xff]
      %v439 = vld [vmem:[%s382 + $0x188] sm:$0xff]
      %v440 = vld [vmem:[%s382 + $0x190] sm:$0xff]
      %v441 = vld [vmem:[%s382 + $0x198] sm:$0xff]
      %v442 = vld [vmem:[%s382 + $0x1a0] sm:$0xff]
      %v443 = vld [vmem:[%s382 + $0x1a8] sm:$0xff]
      %v444 = vld [vmem:[%s382 + $0x1b0] sm:$0xff]
      %v445 = vld [vmem:[%s382 + $0x1b8] sm:$0xff]
      %v446 = vld [vmem:[%s382 + $0x1c0] sm:$0xff]
      %v447 = vld [vmem:[%s382 + $0x1c8] sm:$0xff]
      %v448 = vld [vmem:[%s382 + $0x1d0] sm:$0xff]
      %v449 = vld [vmem:[%s382 + $0x1d8] sm:$0xff]
      %v450 = vld [vmem:[%s382 + $0x1e0] sm:$0xff]
      %v451 = vld [vmem:[%s382 + $0x1e8] sm:$0xff]
      %v452 = vld [vmem:[%s382 + $0x1f0] sm:$0xff]
      %v453 = vld [vmem:[%s382 + $0x1f8] sm:$0xff]
      %v454 = vld [vmem:[%s382 + $0x200] sm:$0xff]
      %v455 = vld [vmem:[%s382 + $0x208] sm:$0xff]
      %v456 = vld [vmem:[%s382 + $0x210] sm:$0xff]
      %v457 = vld [vmem:[%s382 + $0x218] sm:$0xff]
      %v458 = vld [vmem:[%s382 + $0x220] sm:$0xff]
      %v459 = vld [vmem:[%s382 + $0x228] sm:$0xff]
      %v460 = vld [vmem:[%s382 + $0x230] sm:$0xff]
      %v461 = vld [vmem:[%s382 + $0x238] sm:$0xff]
      %v462 = vld [vmem:[%s382 + $0x240] sm:$0xff]
      %v463 = vld [vmem:[%s382 + $0x248] sm:$0xff]
      %v464 = vld [vmem:[%s382 + $0x250] sm:$0xff]
      %v465 = vld [vmem:[%s382 + $0x258] sm:$0xff]
      %v466 = vld [vmem:[%s382 + $0x260] sm:$0xff]
      %v467 = vld [vmem:[%s382 + $0x268] sm:$0xff]
      %v468 = vld [vmem:[%s382 + $0x270] sm:$0xff]
      %v469 = vld [vmem:[%s382 + $0x278] sm:$0xff]
      %v470 = vld [vmem:[%s382 + $0x280] sm:$0xff]
      %v471 = vld [vmem:[%s382 + $0x288] sm:$0xff]
      %v472 = vld [vmem:[%s382 + $0x290] sm:$0xff]
      %v473 = vld [vmem:[%s382 + $0x298] sm:$0xff]
      %v474 = vld [vmem:[%s382 + $0x2a0] sm:$0xff]
      %v475 = vld [vmem:[%s382 + $0x2a8] sm:$0xff]
      %v476 = vld [vmem:[%s382 + $0x2b0] sm:$0xff]
      %v477 = vld [vmem:[%s382 + $0x2b8] sm:$0xff]
      %v478 = vld [vmem:[%s382 + $0x2c0] sm:$0xff]
      %v479 = vld [vmem:[%s382 + $0x2c8] sm:$0xff]
      %v480 = vld [vmem:[%s382 + $0x2d0] sm:$0xff]
      %v481 = vld [vmem:[%s382 + $0x2d8] sm:$0xff]
      %v482 = vld [vmem:[%s382 + $0x2e0] sm:$0xff]
      %v483 = vld [vmem:[%s382 + $0x2e8] sm:$0xff]
      %v484 = vld [vmem:[%s382 + $0x2f0] sm:$0xff]
      %v485 = vld [vmem:[%s382 + $0x2f8] sm:$0xff]
      %v486 = vld [vmem:[%s382 + $0x300] sm:$0xff]
      %v487 = vld [vmem:[%s382 + $0x308] sm:$0xff]
      %v488 = vld [vmem:[%s382 + $0x310] sm:$0xff]
      %v489 = vld [vmem:[%s382 + $0x318] sm:$0xff]
      %v490 = vld [vmem:[%s382 + $0x320] sm:$0xff]
      %v491 = vld [vmem:[%s382 + $0x328] sm:$0xff]
      %v492 = vld [vmem:[%s382 + $0x330] sm:$0xff]
      %v493 = vld [vmem:[%s382 + $0x338] sm:$0xff]
      %v494 = vld [vmem:[%s382 + $0x340] sm:$0xff]
      %v495 = vld [vmem:[%s382 + $0x348] sm:$0xff]
      %v496 = vld [vmem:[%s382 + $0x350] sm:$0xff]
      %v497 = vld [vmem:[%s382 + $0x358] sm:$0xff]
      %v498 = vld [vmem:[%s382 + $0x360] sm:$0xff]
      %v499 = vld [vmem:[%s382 + $0x368] sm:$0xff]
      %v500 = vld [vmem:[%s382 + $0x370] sm:$0xff]
      %v501 = vld [vmem:[%s382 + $0x378] sm:$0xff]
      %598 = vrot.lane.b32.xlu0 %v394, 28
      %v599 = vpop.permute.xlu0 %598
      %600 = vrot.lane.b32.xlu0 %v395, 28
      %v601 = vpop.permute.xlu0 %600
      %602 = vrot.lane.b32.xlu0 %v396, 28
      %v603 = vpop.permute.xlu0 %602
      %604 = vrot.lane.b32.xlu0 %v397, 28
      %v605 = vpop.permute.xlu0 %604
      %606 = vrot.lane.b32.xlu0 %v398, 28
      %v607 = vpop.permute.xlu0 %606
      %608 = vrot.lane.b32.xlu0 %v399, 28
      %v609 = vpop.permute.xlu0 %608
      %610 = vrot.lane.b32.xlu0 %v400, 28
      %v611 = vpop.permute.xlu0 %610
      %612 = vrot.lane.b32.xlu0 %v401, 28
      %v613 = vpop.permute.xlu0 %612
      %614 = vrot.lane.b32.xlu0 %v402, 28
      %v615 = vpop.permute.xlu0 %614
      %616 = vrot.lane.b32.xlu0 %v403, 28
      %v617 = vpop.permute.xlu0 %616
      %618 = vrot.lane.b32.xlu0 %v404, 28
      %v619 = vpop.permute.xlu0 %618
      %620 = vrot.lane.b32.xlu0 %v405, 28
      %v621 = vpop.permute.xlu0 %620
      %622 = vrot.lane.b32.xlu0 %v406, 28
      %v623 = vpop.permute.xlu0 %622
      %624 = vrot.lane.b32.xlu0 %v407, 28
      %v625 = vpop.permute.xlu0 %624
      %626 = vrot.lane.b32.xlu0 %v408, 28
      %v627 = vpop.permute.xlu0 %626
      %628 = vrot.lane.b32.xlu0 %v409, 28
      %v629 = vpop.permute.xlu0 %628
      %630 = vrot.lane.b32.xlu0 %v410, 28
      %v631 = vpop.permute.xlu0 %630
      %632 = vrot.lane.b32.xlu0 %v411, 28
      %v633 = vpop.permute.xlu0 %632
      %634 = vrot.lane.b32.xlu0 %v412, 28
      %v635 = vpop.permute.xlu0 %634
      %636 = vrot.lane.b32.xlu0 %v413, 28
      %v637 = vpop.permute.xlu0 %636
      %638 = vrot.lane.b32.xlu0 %v414, 28
      %v639 = vpop.permute.xlu0 %638
      %640 = vrot.lane.b32.xlu0 %v415, 28
      %v641 = vpop.permute.xlu0 %640
      %642 = vrot.lane.b32.xlu0 %v416, 28
      %v643 = vpop.permute.xlu0 %642
      %644 = vrot.lane.b32.xlu0 %v417, 28
      %v645 = vpop.permute.xlu0 %644
      %646 = vrot.lane.b32.xlu0 %v418, 28
      %v647 = vpop.permute.xlu0 %646
      %648 = vrot.lane.b32.xlu0 %v419, 28
      %v649 = vpop.permute.xlu0 %648
      %650 = vrot.lane.b32.xlu0 %v420, 28
      %v651 = vpop.permute.xlu0 %650
      %652 = vrot.lane.b32.xlu0 %v421, 28
      %v653 = vpop.permute.xlu0 %652
      %654 = vrot.lane.b32.xlu0 %v422, 28
      %v655 = vpop.permute.xlu0 %654
      %656 = vrot.lane.b32.xlu0 %v423, 28
      %v657 = vpop.permute.xlu0 %656
      %658 = vrot.lane.b32.xlu0 %v424, 28
      %v659 = vpop.permute.xlu0 %658
      %660 = vrot.lane.b32.xlu0 %v425, 28
      %v661 = vpop.permute.xlu0 %660
      %662 = vrot.lane.b32.xlu0 %v426, 28
      %v663 = vpop.permute.xlu0 %662
      %664 = vrot.lane.b32.xlu0 %v427, 28
      %v665 = vpop.permute.xlu0 %664
      %666 = vrot.lane.b32.xlu0 %v428, 28
      %v667 = vpop.permute.xlu0 %666
      %668 = vrot.lane.b32.xlu0 %v429, 28
      %v669 = vpop.permute.xlu0 %668
      %670 = vrot.lane.b32.xlu0 %v430, 28
      %v671 = vpop.permute.xlu0 %670
      %672 = vrot.lane.b32.xlu0 %v431, 28
      %v673 = vpop.permute.xlu0 %672
      %674 = vrot.lane.b32.xlu0 %v432, 28
      %v675 = vpop.permute.xlu0 %674
      %676 = vrot.lane.b32.xlu0 %v433, 28
      %v677 = vpop.permute.xlu0 %676
      %678 = vrot.lane.b32.xlu0 %v434, 28
      %v679 = vpop.permute.xlu0 %678
      %680 = vrot.lane.b32.xlu0 %v435, 28
      %v681 = vpop.permute.xlu0 %680
      %682 = vrot.lane.b32.xlu0 %v436, 28
      %v683 = vpop.permute.xlu0 %682
      %684 = vrot.lane.b32.xlu0 %v437, 28
      %v685 = vpop.permute.xlu0 %684
      %686 = vrot.lane.b32.xlu0 %v438, 28
      %v687 = vpop.permute.xlu0 %686
      %688 = vrot.lane.b32.xlu0 %v439, 28
      %v689 = vpop.permute.xlu0 %688
      %690 = vrot.lane.b32.xlu0 %v440, 28
      %v691 = vpop.permute.xlu0 %690
      %692 = vrot.lane.b32.xlu0 %v441, 28
      %v693 = vpop.permute.xlu0 %692
      %694 = vrot.lane.b32.xlu0 %v442, 28
      %v695 = vpop.permute.xlu0 %694
      %696 = vrot.lane.b32.xlu0 %v443, 28
      %v697 = vpop.permute.xlu0 %696
      %698 = vrot.lane.b32.xlu0 %v444, 28
      %v699 = vpop.permute.xlu0 %698
      %700 = vrot.lane.b32.xlu0 %v445, 28
      %v701 = vpop.permute.xlu0 %700
      %702 = vrot.lane.b32.xlu0 %v446, 28
      %v703 = vpop.permute.xlu0 %702
      %704 = vrot.lane.b32.xlu0 %v447, 28
      %v705 = vpop.permute.xlu0 %704
      %706 = vrot.lane.b32.xlu0 %v448, 28
      %v707 = vpop.permute.xlu0 %706
      %708 = vrot.lane.b32.xlu0 %v449, 28
      %v709 = vpop.permute.xlu0 %708
      %710 = vrot.lane.b32.xlu0 %v450, 28
      %v711 = vpop.permute.xlu0 %710
      %712 = vrot.lane.b32.xlu0 %v451, 28
      %v713 = vpop.permute.xlu0 %712
      %714 = vrot.lane.b32.xlu0 %v452, 28
      %v715 = vpop.permute.xlu0 %714
      %716 = vrot.lane.b32.xlu0 %v453, 28
      %v717 = vpop.permute.xlu0 %716
      %718 = vrot.lane.b32.xlu0 %v454, 28
      %v719 = vpop.permute.xlu0 %718
      %720 = vrot.lane.b32.xlu0 %v455, 28
      %v721 = vpop.permute.xlu0 %720
      %722 = vrot.lane.b32.xlu0 %v456, 28
      %v723 = vpop.permute.xlu0 %722
      %724 = vrot.lane.b32.xlu0 %v457, 28
      %v725 = vpop.permute.xlu0 %724
      %726 = vrot.lane.b32.xlu0 %v458, 28
      %v727 = vpop.permute.xlu0 %726
      %728 = vrot.lane.b32.xlu0 %v459, 28
      %v729 = vpop.permute.xlu0 %728
      %730 = vrot.lane.b32.xlu0 %v460, 28
      %v731 = vpop.permute.xlu0 %730
      %732 = vrot.lane.b32.xlu0 %v461, 28
      %v733 = vpop.permute.xlu0 %732
      %734 = vrot.lane.b32.xlu0 %v462, 28
      %v735 = vpop.permute.xlu0 %734
      %736 = vrot.lane.b32.xlu0 %v463, 28
      %v737 = vpop.permute.xlu0 %736
      %738 = vrot.lane.b32.xlu0 %v464, 28
      %v739 = vpop.permute.xlu0 %738
      %740 = vrot.lane.b32.xlu0 %v465, 28
      %v741 = vpop.permute.xlu0 %740
      %742 = vrot.lane.b32.xlu0 %v466, 28
      %v743 = vpop.permute.xlu0 %742
      %744 = vrot.lane.b32.xlu0 %v467, 28
      %v745 = vpop.permute.xlu0 %744
      %746 = vrot.lane.b32.xlu0 %v468, 28
      %v747 = vpop.permute.xlu0 %746
      %748 = vrot.lane.b32.xlu0 %v469, 28
      %v749 = vpop.permute.xlu0 %748
      %750 = vrot.lane.b32.xlu0 %v470, 28
      %v751 = vpop.permute.xlu0 %750
      %752 = vrot.lane.b32.xlu0 %v471, 28
      %v753 = vpop.permute.xlu0 %752
      %754 = vrot.lane.b32.xlu0 %v472, 28
      %v755 = vpop.permute.xlu0 %754
      %756 = vrot.lane.b32.xlu0 %v473, 28
      %v757 = vpop.permute.xlu0 %756
      %758 = vrot.lane.b32.xlu0 %v474, 28
      %v759 = vpop.permute.xlu0 %758
      %760 = vrot.lane.b32.xlu0 %v475, 28
      %v761 = vpop.permute.xlu0 %760
      %762 = vrot.lane.b32.xlu0 %v476, 28
      %v763 = vpop.permute.xlu0 %762
      %764 = vrot.lane.b32.xlu0 %v477, 28
      %v765 = vpop.permute.xlu0 %764
      %766 = vrot.lane.b32.xlu0 %v478, 28
      %v767 = vpop.permute.xlu0 %766
      %768 = vrot.lane.b32.xlu0 %v479, 28
      %v769 = vpop.permute.xlu0 %768
      %770 = vrot.lane.b32.xlu0 %v480, 28
      %v771 = vpop.permute.xlu0 %770
      %772 = vrot.lane.b32.xlu0 %v481, 28
      %v773 = vpop.permute.xlu0 %772
      %774 = vrot.lane.b32.xlu0 %v482, 28
      %v775 = vpop.permute.xlu0 %774
      %776 = vrot.lane.b32.xlu0 %v483, 28
      %v777 = vpop.permute.xlu0 %776
      %778 = vrot.lane.b32.xlu0 %v484, 28
      %v779 = vpop.permute.xlu0 %778
      %780 = vrot.lane.b32.xlu0 %v485, 28
      %v781 = vpop.permute.xlu0 %780
      %782 = vrot.lane.b32.xlu0 %v486, 28
      %v783 = vpop.permute.xlu0 %782
      %784 = vrot.lane.b32.xlu0 %v487, 28
      %v785 = vpop.permute.xlu0 %784
      %786 = vrot.lane.b32.xlu0 %v488, 28
      %v787 = vpop.permute.xlu0 %786
      %788 = vrot.lane.b32.xlu0 %v489, 28
      %v789 = vpop.permute.xlu0 %788
      %890 = vrot.lane.b32.xlu0 %v398, 56
      %v891 = vpop.permute.xlu0 %890
      %892 = vrot.lane.b32.xlu0 %v399, 56
      %v893 = vpop.permute.xlu0 %892
      %894 = vrot.lane.b32.xlu0 %v400, 56
      %v895 = vpop.permute.xlu0 %894
      %896 = vrot.lane.b32.xlu0 %v401, 56
      %v897 = vpop.permute.xlu0 %896
      %898 = vrot.lane.b32.xlu0 %v402, 56
      %v899 = vpop.permute.xlu0 %898
      %900 = vrot.lane.b32.xlu0 %v403, 56
      %v901 = vpop.permute.xlu0 %900
      %902 = vrot.lane.b32.xlu0 %v404, 56
      %v903 = vpop.permute.xlu0 %902
      %904 = vrot.lane.b32.xlu0 %v405, 56
      %v905 = vpop.permute.xlu0 %904
      %906 = vrot.lane.b32.xlu0 %v406, 56
      %v907 = vpop.permute.xlu0 %906
      %908 = vrot.lane.b32.xlu0 %v407, 56
      %v909 = vpop.permute.xlu0 %908
      %910 = vrot.lane.b32.xlu0 %v408, 56
      %v911 = vpop.permute.xlu0 %910
      %912 = vrot.lane.b32.xlu0 %v409, 56
      %v913 = vpop.permute.xlu0 %912
      %914 = vrot.lane.b32.xlu0 %v410, 56
      %v915 = vpop.permute.xlu0 %914
      %916 = vrot.lane.b32.xlu0 %v411, 56
      %v917 = vpop.permute.xlu0 %916
      %918 = vrot.lane.b32.xlu0 %v412, 56
      %v919 = vpop.permute.xlu0 %918
      %920 = vrot.lane.b32.xlu0 %v413, 56
      %v921 = vpop.permute.xlu0 %920
      %922 = vrot.lane.b32.xlu0 %v414, 56
      %v923 = vpop.permute.xlu0 %922
      %924 = vrot.lane.b32.xlu0 %v415, 56
      %v925 = vpop.permute.xlu0 %924
      %926 = vrot.lane.b32.xlu0 %v416, 56
      %v927 = vpop.permute.xlu0 %926
      %928 = vrot.lane.b32.xlu0 %v417, 56
      %v929 = vpop.permute.xlu0 %928
      %930 = vrot.lane.b32.xlu0 %v418, 56
      %v931 = vpop.permute.xlu0 %930
      %932 = vrot.lane.b32.xlu0 %v419, 56
      %v933 = vpop.permute.xlu0 %932
      %934 = vrot.lane.b32.xlu0 %v420, 56
      %v935 = vpop.permute.xlu0 %934
      %936 = vrot.lane.b32.xlu0 %v421, 56
      %v937 = vpop.permute.xlu0 %936
      %938 = vrot.lane.b32.xlu0 %v422, 56
      %v939 = vpop.permute.xlu0 %938
      %940 = vrot.lane.b32.xlu0 %v423, 56
      %v941 = vpop.permute.xlu0 %940
      %942 = vrot.lane.b32.xlu0 %v424, 56
      %v943 = vpop.permute.xlu0 %942
      %944 = vrot.lane.b32.xlu0 %v425, 56
      %v945 = vpop.permute.xlu0 %944
      %946 = vrot.lane.b32.xlu0 %v426, 56
      %v947 = vpop.permute.xlu0 %946
      %948 = vrot.lane.b32.xlu0 %v427, 56
      %v949 = vpop.permute.xlu0 %948
      %950 = vrot.lane.b32.xlu0 %v428, 56
      %v951 = vpop.permute.xlu0 %950
      %952 = vrot.lane.b32.xlu0 %v429, 56
      %v953 = vpop.permute.xlu0 %952
      %954 = vrot.lane.b32.xlu0 %v430, 56
      %v955 = vpop.permute.xlu0 %954
      %956 = vrot.lane.b32.xlu0 %v431, 56
      %v957 = vpop.permute.xlu0 %956
      %958 = vrot.lane.b32.xlu0 %v432, 56
      %v959 = vpop.permute.xlu0 %958
      %960 = vrot.lane.b32.xlu0 %v433, 56
      %v961 = vpop.permute.xlu0 %960
      %962 = vrot.lane.b32.xlu0 %v434, 56
      %v963 = vpop.permute.xlu0 %962
      %964 = vrot.lane.b32.xlu0 %v435, 56
      %v965 = vpop.permute.xlu0 %964
      %966 = vrot.lane.b32.xlu0 %v436, 56
      %v967 = vpop.permute.xlu0 %966
      %968 = vrot.lane.b32.xlu0 %v437, 56
      %v969 = vpop.permute.xlu0 %968
      %970 = vrot.lane.b32.xlu0 %v438, 56
      %v971 = vpop.permute.xlu0 %970
      %972 = vrot.lane.b32.xlu0 %v439, 56
      %v973 = vpop.permute.xlu0 %972
      %974 = vrot.lane.b32.xlu0 %v440, 56
      %v975 = vpop.permute.xlu0 %974
      %976 = vrot.lane.b32.xlu0 %v441, 56
      %v977 = vpop.permute.xlu0 %976
      %978 = vrot.lane.b32.xlu0 %v442, 56
      %v979 = vpop.permute.xlu0 %978
      %980 = vrot.lane.b32.xlu0 %v443, 56
      %v981 = vpop.permute.xlu0 %980
      %982 = vrot.lane.b32.xlu0 %v444, 56
      %v983 = vpop.permute.xlu0 %982
      %984 = vrot.lane.b32.xlu0 %v445, 56
      %v985 = vpop.permute.xlu0 %984
      %986 = vrot.lane.b32.xlu0 %v446, 56
      %v987 = vpop.permute.xlu0 %986
      %988 = vrot.lane.b32.xlu0 %v447, 56
      %v989 = vpop.permute.xlu0 %988
      %990 = vrot.lane.b32.xlu0 %v448, 56
      %v991 = vpop.permute.xlu0 %990
      %992 = vrot.lane.b32.xlu0 %v449, 56
      %v993 = vpop.permute.xlu0 %992
      %994 = vrot.lane.b32.xlu0 %v450, 56
      %v995 = vpop.permute.xlu0 %994
      %996 = vrot.lane.b32.xlu0 %v451, 56
      %v997 = vpop.permute.xlu0 %996
      %998 = vrot.lane.b32.xlu0 %v452, 56
      %v999 = vpop.permute.xlu0 %998
      %1000 = vrot.lane.b32.xlu0 %v453, 56
      %v1001 = vpop.permute.xlu0 %1000
      %1002 = vrot.lane.b32.xlu0 %v454, 56
      %v1003 = vpop.permute.xlu0 %1002
      %1004 = vrot.lane.b32.xlu0 %v455, 56
      %v1005 = vpop.permute.xlu0 %1004
      %1006 = vrot.lane.b32.xlu0 %v456, 56
      %v1007 = vpop.permute.xlu0 %1006
      %1008 = vrot.lane.b32.xlu0 %v457, 56
      %v1009 = vpop.permute.xlu0 %1008
      %1010 = vrot.lane.b32.xlu0 %v458, 56
      %v1011 = vpop.permute.xlu0 %1010
      %1012 = vrot.lane.b32.xlu0 %v459, 56
      %v1013 = vpop.permute.xlu0 %1012
      %1014 = vrot.lane.b32.xlu0 %v460, 56
      %v1015 = vpop.permute.xlu0 %1014
      %1016 = vrot.lane.b32.xlu0 %v461, 56
      %v1017 = vpop.permute.xlu0 %1016
      %1018 = vrot.lane.b32.xlu0 %v462, 56
      %v1019 = vpop.permute.xlu0 %1018
      %1020 = vrot.lane.b32.xlu0 %v463, 56
      %v1021 = vpop.permute.xlu0 %1020
      %1022 = vrot.lane.b32.xlu0 %v464, 56
      %v1023 = vpop.permute.xlu0 %1022
      %1024 = vrot.lane.b32.xlu0 %v465, 56
      %v1025 = vpop.permute.xlu0 %1024
      %1026 = vrot.lane.b32.xlu0 %v466, 56
      %v1027 = vpop.permute.xlu0 %1026
      %1028 = vrot.lane.b32.xlu0 %v467, 56
      %v1029 = vpop.permute.xlu0 %1028
      %1030 = vrot.lane.b32.xlu0 %v468, 56
      %v1031 = vpop.permute.xlu0 %1030
      %1032 = vrot.lane.b32.xlu0 %v469, 56
      %v1033 = vpop.permute.xlu0 %1032
      %1034 = vrot.lane.b32.xlu0 %v470, 56
      %v1035 = vpop.permute.xlu0 %1034
      %1036 = vrot.lane.b32.xlu0 %v471, 56
      %v1037 = vpop.permute.xlu0 %1036
      %1038 = vrot.lane.b32.xlu0 %v472, 56
      %v1039 = vpop.permute.xlu0 %1038
      %1040 = vrot.lane.b32.xlu0 %v473, 56
      %v1041 = vpop.permute.xlu0 %1040
      %1042 = vrot.lane.b32.xlu0 %v474, 56
      %v1043 = vpop.permute.xlu0 %1042
      %1044 = vrot.lane.b32.xlu0 %v475, 56
      %v1045 = vpop.permute.xlu0 %1044
      %1046 = vrot.lane.b32.xlu0 %v476, 56
      %v1047 = vpop.permute.xlu0 %1046
      %1048 = vrot.lane.b32.xlu0 %v477, 56
      %v1049 = vpop.permute.xlu0 %1048
      %1050 = vrot.lane.b32.xlu0 %v478, 56
      %v1051 = vpop.permute.xlu0 %1050
      %1052 = vrot.lane.b32.xlu0 %v479, 56
      %v1053 = vpop.permute.xlu0 %1052
      %1054 = vrot.lane.b32.xlu0 %v480, 56
      %v1055 = vpop.permute.xlu0 %1054
      %1056 = vrot.lane.b32.xlu0 %v481, 56
      %v1057 = vpop.permute.xlu0 %1056
      %1058 = vrot.lane.b32.xlu0 %v482, 56
      %v1059 = vpop.permute.xlu0 %1058
      %1060 = vrot.lane.b32.xlu0 %v483, 56
      %v1061 = vpop.permute.xlu0 %1060
      %1062 = vrot.lane.b32.xlu0 %v484, 56
      %v1063 = vpop.permute.xlu0 %1062
      %1064 = vrot.lane.b32.xlu0 %v485, 56
      %v1065 = vpop.permute.xlu0 %1064
      %1066 = vrot.lane.b32.xlu0 %v486, 56
      %v1067 = vpop.permute.xlu0 %1066
      %1068 = vrot.lane.b32.xlu0 %v487, 56
      %v1069 = vpop.permute.xlu0 %1068
      %1070 = vrot.lane.b32.xlu0 %v488, 56
      %v1071 = vpop.permute.xlu0 %1070
      %1072 = vrot.lane.b32.xlu0 %v489, 56
      %v1073 = vpop.permute.xlu0 %1072
      %1074 = vrot.lane.b32.xlu0 %v490, 56
      %v1075 = vpop.permute.xlu0 %1074
      %1076 = vrot.lane.b32.xlu0 %v491, 56
      %v1077 = vpop.permute.xlu0 %1076
      %1078 = vrot.lane.b32.xlu0 %v492, 56
      %v1079 = vpop.permute.xlu0 %1078
      %1080 = vrot.lane.b32.xlu0 %v493, 56
      %v1081 = vpop.permute.xlu0 %1080
      %1182 = vrot.lane.b32.xlu0 %v402, 84
      %v1183 = vpop.permute.xlu0 %1182
      %1184 = vrot.lane.b32.xlu0 %v403, 84
      %v1185 = vpop.permute.xlu0 %1184
      %1186 = vrot.lane.b32.xlu0 %v404, 84
      %v1187 = vpop.permute.xlu0 %1186
      %1188 = vrot.lane.b32.xlu0 %v405, 84
      %v1189 = vpop.permute.xlu0 %1188
      %1190 = vrot.lane.b32.xlu0 %v406, 84
      %v1191 = vpop.permute.xlu0 %1190
      %1192 = vrot.lane.b32.xlu0 %v407, 84
      %v1193 = vpop.permute.xlu0 %1192
      %1194 = vrot.lane.b32.xlu0 %v408, 84
      %v1195 = vpop.permute.xlu0 %1194
      %1196 = vrot.lane.b32.xlu0 %v409, 84
      %v1197 = vpop.permute.xlu0 %1196
      %1198 = vrot.lane.b32.xlu0 %v410, 84
      %v1199 = vpop.permute.xlu0 %1198
      %1200 = vrot.lane.b32.xlu0 %v411, 84
      %v1201 = vpop.permute.xlu0 %1200
      %1202 = vrot.lane.b32.xlu0 %v412, 84
      %v1203 = vpop.permute.xlu0 %1202
      %1204 = vrot.lane.b32.xlu0 %v413, 84
      %v1205 = vpop.permute.xlu0 %1204
      %1206 = vrot.lane.b32.xlu0 %v414, 84
      %v1207 = vpop.permute.xlu0 %1206
      %1208 = vrot.lane.b32.xlu0 %v415, 84
      %v1209 = vpop.permute.xlu0 %1208
      %1210 = vrot.lane.b32.xlu0 %v416, 84
      %v1211 = vpop.permute.xlu0 %1210
      %1212 = vrot.lane.b32.xlu0 %v417, 84
      %v1213 = vpop.permute.xlu0 %1212
      %1214 = vrot.lane.b32.xlu0 %v418, 84
      %v1215 = vpop.permute.xlu0 %1214
      %1216 = vrot.lane.b32.xlu0 %v419, 84
      %v1217 = vpop.permute.xlu0 %1216
      %1218 = vrot.lane.b32.xlu0 %v420, 84
      %v1219 = vpop.permute.xlu0 %1218
      %1220 = vrot.lane.b32.xlu0 %v421, 84
      %v1221 = vpop.permute.xlu0 %1220
      %1222 = vrot.lane.b32.xlu0 %v422, 84
      %v1223 = vpop.permute.xlu0 %1222
      %1224 = vrot.lane.b32.xlu0 %v423, 84
      %v1225 = vpop.permute.xlu0 %1224
      %1226 = vrot.lane.b32.xlu0 %v424, 84
      %v1227 = vpop.permute.xlu0 %1226
      %1228 = vrot.lane.b32.xlu0 %v425, 84
      %v1229 = vpop.permute.xlu0 %1228
      %1230 = vrot.lane.b32.xlu0 %v426, 84
      %v1231 = vpop.permute.xlu0 %1230
      %1232 = vrot.lane.b32.xlu0 %v427, 84
      %v1233 = vpop.permute.xlu0 %1232
      %1234 = vrot.lane.b32.xlu0 %v428, 84
      %v1235 = vpop.permute.xlu0 %1234
      %1236 = vrot.lane.b32.xlu0 %v429, 84
      %v1237 = vpop.permute.xlu0 %1236
      %1238 = vrot.lane.b32.xlu0 %v430, 84
      %v1239 = vpop.permute.xlu0 %1238
      %1240 = vrot.lane.b32.xlu0 %v431, 84
      %v1241 = vpop.permute.xlu0 %1240
      %1242 = vrot.lane.b32.xlu0 %v432, 84
      %v1243 = vpop.permute.xlu0 %1242
      %1244 = vrot.lane.b32.xlu0 %v433, 84
      %v1245 = vpop.permute.xlu0 %1244
      %1246 = vrot.lane.b32.xlu0 %v434, 84
      %v1247 = vpop.permute.xlu0 %1246
      %1248 = vrot.lane.b32.xlu0 %v435, 84
      %v1249 = vpop.permute.xlu0 %1248
      %1250 = vrot.lane.b32.xlu0 %v436, 84
      %v1251 = vpop.permute.xlu0 %1250
      %1252 = vrot.lane.b32.xlu0 %v437, 84
      %v1253 = vpop.permute.xlu0 %1252
      %1254 = vrot.lane.b32.xlu0 %v438, 84
      %v1255 = vpop.permute.xlu0 %1254
      %1256 = vrot.lane.b32.xlu0 %v439, 84
      %v1257 = vpop.permute.xlu0 %1256
      %1258 = vrot.lane.b32.xlu0 %v440, 84
      %v1259 = vpop.permute.xlu0 %1258
      %1260 = vrot.lane.b32.xlu0 %v441, 84
      %v1261 = vpop.permute.xlu0 %1260
      %1262 = vrot.lane.b32.xlu0 %v442, 84
      %v1263 = vpop.permute.xlu0 %1262
      %1264 = vrot.lane.b32.xlu0 %v443, 84
      %v1265 = vpop.permute.xlu0 %1264
      %1266 = vrot.lane.b32.xlu0 %v444, 84
      %v1267 = vpop.permute.xlu0 %1266
      %1268 = vrot.lane.b32.xlu0 %v445, 84
      %v1269 = vpop.permute.xlu0 %1268
      %1270 = vrot.lane.b32.xlu0 %v446, 84
      %v1271 = vpop.permute.xlu0 %1270
      %1272 = vrot.lane.b32.xlu0 %v447, 84
      %v1273 = vpop.permute.xlu0 %1272
      %1274 = vrot.lane.b32.xlu0 %v448, 84
      %v1275 = vpop.permute.xlu0 %1274
      %1276 = vrot.lane.b32.xlu0 %v449, 84
      %v1277 = vpop.permute.xlu0 %1276
      %1278 = vrot.lane.b32.xlu0 %v450, 84
      %v1279 = vpop.permute.xlu0 %1278
      %1280 = vrot.lane.b32.xlu0 %v451, 84
      %v1281 = vpop.permute.xlu0 %1280
      %1282 = vrot.lane.b32.xlu0 %v452, 84
      %v1283 = vpop.permute.xlu0 %1282
      %1284 = vrot.lane.b32.xlu0 %v453, 84
      %v1285 = vpop.permute.xlu0 %1284
      %1286 = vrot.lane.b32.xlu0 %v454, 84
      %v1287 = vpop.permute.xlu0 %1286
      %1288 = vrot.lane.b32.xlu0 %v455, 84
      %v1289 = vpop.permute.xlu0 %1288
      %1290 = vrot.lane.b32.xlu0 %v456, 84
      %v1291 = vpop.permute.xlu0 %1290
      %1292 = vrot.lane.b32.xlu0 %v457, 84
      %v1293 = vpop.permute.xlu0 %1292
      %1294 = vrot.lane.b32.xlu0 %v458, 84
      %v1295 = vpop.permute.xlu0 %1294
      %1296 = vrot.lane.b32.xlu0 %v459, 84
      %v1297 = vpop.permute.xlu0 %1296
      %1298 = vrot.lane.b32.xlu0 %v460, 84
      %v1299 = vpop.permute.xlu0 %1298
      %1300 = vrot.lane.b32.xlu0 %v461, 84
      %v1301 = vpop.permute.xlu0 %1300
      %1302 = vrot.lane.b32.xlu0 %v462, 84
      %v1303 = vpop.permute.xlu0 %1302
      %1304 = vrot.lane.b32.xlu0 %v463, 84
      %v1305 = vpop.permute.xlu0 %1304
      %1306 = vrot.lane.b32.xlu0 %v464, 84
      %v1307 = vpop.permute.xlu0 %1306
      %1308 = vrot.lane.b32.xlu0 %v465, 84
      %v1309 = vpop.permute.xlu0 %1308
      %1310 = vrot.lane.b32.xlu0 %v466, 84
      %v1311 = vpop.permute.xlu0 %1310
      %1312 = vrot.lane.b32.xlu0 %v467, 84
      %v1313 = vpop.permute.xlu0 %1312
      %1314 = vrot.lane.b32.xlu0 %v468, 84
      %v1315 = vpop.permute.xlu0 %1314
      %1316 = vrot.lane.b32.xlu0 %v469, 84
      %v1317 = vpop.permute.xlu0 %1316
      %1318 = vrot.lane.b32.xlu0 %v470, 84
      %v1319 = vpop.permute.xlu0 %1318
      %1320 = vrot.lane.b32.xlu0 %v471, 84
      %v1321 = vpop.permute.xlu0 %1320
      %1322 = vrot.lane.b32.xlu0 %v472, 84
      %v1323 = vpop.permute.xlu0 %1322
      %1324 = vrot.lane.b32.xlu0 %v473, 84
      %v1325 = vpop.permute.xlu0 %1324
      %1326 = vrot.lane.b32.xlu0 %v474, 84
      %v1327 = vpop.permute.xlu0 %1326
      %1328 = vrot.lane.b32.xlu0 %v475, 84
      %v1329 = vpop.permute.xlu0 %1328
      %1330 = vrot.lane.b32.xlu0 %v476, 84
      %v1331 = vpop.permute.xlu0 %1330
      %1332 = vrot.lane.b32.xlu0 %v477, 84
      %v1333 = vpop.permute.xlu0 %1332
      %1334 = vrot.lane.b32.xlu0 %v478, 84
      %v1335 = vpop.permute.xlu0 %1334
      %1336 = vrot.lane.b32.xlu0 %v479, 84
      %v1337 = vpop.permute.xlu0 %1336
      %1338 = vrot.lane.b32.xlu0 %v480, 84
      %v1339 = vpop.permute.xlu0 %1338
      %1340 = vrot.lane.b32.xlu0 %v481, 84
      %v1341 = vpop.permute.xlu0 %1340
      %1342 = vrot.lane.b32.xlu0 %v482, 84
      %v1343 = vpop.permute.xlu0 %1342
      %1344 = vrot.lane.b32.xlu0 %v483, 84
      %v1345 = vpop.permute.xlu0 %1344
      %1346 = vrot.lane.b32.xlu0 %v484, 84
      %v1347 = vpop.permute.xlu0 %1346
      %1348 = vrot.lane.b32.xlu0 %v485, 84
      %v1349 = vpop.permute.xlu0 %1348
      %1350 = vrot.lane.b32.xlu0 %v486, 84
      %v1351 = vpop.permute.xlu0 %1350
      %1352 = vrot.lane.b32.xlu0 %v487, 84
      %v1353 = vpop.permute.xlu0 %1352
      %1354 = vrot.lane.b32.xlu0 %v488, 84
      %v1355 = vpop.permute.xlu0 %1354
      %1356 = vrot.lane.b32.xlu0 %v489, 84
      %v1357 = vpop.permute.xlu0 %1356
      %1358 = vrot.lane.b32.xlu0 %v490, 84
      %v1359 = vpop.permute.xlu0 %1358
      %1360 = vrot.lane.b32.xlu0 %v491, 84
      %v1361 = vpop.permute.xlu0 %1360
      %1362 = vrot.lane.b32.xlu0 %v492, 84
      %v1363 = vpop.permute.xlu0 %1362
      %1364 = vrot.lane.b32.xlu0 %v493, 84
      %v1365 = vpop.permute.xlu0 %1364
      %1366 = vrot.lane.b32.xlu0 %v494, 84
      %v1367 = vpop.permute.xlu0 %1366
      %1368 = vrot.lane.b32.xlu0 %v495, 84
      %v1369 = vpop.permute.xlu0 %1368
      %1370 = vrot.lane.b32.xlu0 %v496, 84
      %v1371 = vpop.permute.xlu0 %1370
      %1372 = vrot.lane.b32.xlu0 %v497, 84
      %v1373 = vpop.permute.xlu0 %1372
      %1474 = vrot.lane.b32.xlu0 %v406, 112
      %v1475 = vpop.permute.xlu0 %1474
      %1476 = vrot.lane.b32.xlu0 %v407, 112
      %v1477 = vpop.permute.xlu0 %1476
      %1478 = vrot.lane.b32.xlu0 %v408, 112
      %v1479 = vpop.permute.xlu0 %1478
      %1480 = vrot.lane.b32.xlu0 %v409, 112
      %v1481 = vpop.permute.xlu0 %1480
      %1482 = vrot.lane.b32.xlu0 %v410, 112
      %v1483 = vpop.permute.xlu0 %1482
      %1484 = vrot.lane.b32.xlu0 %v411, 112
      %v1485 = vpop.permute.xlu0 %1484
      %1486 = vrot.lane.b32.xlu0 %v412, 112
      %v1487 = vpop.permute.xlu0 %1486
      %1488 = vrot.lane.b32.xlu0 %v413, 112
      %v1489 = vpop.permute.xlu0 %1488
      %1490 = vrot.lane.b32.xlu0 %v414, 112
      %v1491 = vpop.permute.xlu0 %1490
      %1492 = vrot.lane.b32.xlu0 %v415, 112
      %v1493 = vpop.permute.xlu0 %1492
      %1494 = vrot.lane.b32.xlu0 %v416, 112
      %v1495 = vpop.permute.xlu0 %1494
      %1496 = vrot.lane.b32.xlu0 %v417, 112
      %v1497 = vpop.permute.xlu0 %1496
      %1498 = vrot.lane.b32.xlu0 %v418, 112
      %v1499 = vpop.permute.xlu0 %1498
      %1500 = vrot.lane.b32.xlu0 %v419, 112
      %v1501 = vpop.permute.xlu0 %1500
      %1502 = vrot.lane.b32.xlu0 %v420, 112
      %v1503 = vpop.permute.xlu0 %1502
      %1504 = vrot.lane.b32.xlu0 %v421, 112
      %v1505 = vpop.permute.xlu0 %1504
      %1506 = vrot.lane.b32.xlu0 %v422, 112
      %v1507 = vpop.permute.xlu0 %1506
      %1508 = vrot.lane.b32.xlu0 %v423, 112
      %v1509 = vpop.permute.xlu0 %1508
      %1510 = vrot.lane.b32.xlu0 %v424, 112
      %v1511 = vpop.permute.xlu0 %1510
      %1512 = vrot.lane.b32.xlu0 %v425, 112
      %v1513 = vpop.permute.xlu0 %1512
      %1514 = vrot.lane.b32.xlu0 %v426, 112
      %v1515 = vpop.permute.xlu0 %1514
      %1516 = vrot.lane.b32.xlu0 %v427, 112
      %v1517 = vpop.permute.xlu0 %1516
      %1518 = vrot.lane.b32.xlu0 %v428, 112
      %v1519 = vpop.permute.xlu0 %1518
      %1520 = vrot.lane.b32.xlu0 %v429, 112
      %v1521 = vpop.permute.xlu0 %1520
      %1522 = vrot.lane.b32.xlu0 %v430, 112
      %v1523 = vpop.permute.xlu0 %1522
      %1524 = vrot.lane.b32.xlu0 %v431, 112
      %v1525 = vpop.permute.xlu0 %1524
      %1526 = vrot.lane.b32.xlu0 %v432, 112
      %v1527 = vpop.permute.xlu0 %1526
      %1528 = vrot.lane.b32.xlu0 %v433, 112
      %v1529 = vpop.permute.xlu0 %1528
      %1530 = vrot.lane.b32.xlu0 %v434, 112
      %v1531 = vpop.permute.xlu0 %1530
      %1532 = vrot.lane.b32.xlu0 %v435, 112
      %v1533 = vpop.permute.xlu0 %1532
      %1534 = vrot.lane.b32.xlu0 %v436, 112
      %v1535 = vpop.permute.xlu0 %1534
      %1536 = vrot.lane.b32.xlu0 %v437, 112
      %v1537 = vpop.permute.xlu0 %1536
      %1538 = vrot.lane.b32.xlu0 %v438, 112
      %v1539 = vpop.permute.xlu0 %1538
      %1540 = vrot.lane.b32.xlu0 %v439, 112
      %v1541 = vpop.permute.xlu0 %1540
      %1542 = vrot.lane.b32.xlu0 %v440, 112
      %v1543 = vpop.permute.xlu0 %1542
      %1544 = vrot.lane.b32.xlu0 %v441, 112
      %v1545 = vpop.permute.xlu0 %1544
      %1546 = vrot.lane.b32.xlu0 %v442, 112
      %v1547 = vpop.permute.xlu0 %1546
      %1548 = vrot.lane.b32.xlu0 %v443, 112
      %v1549 = vpop.permute.xlu0 %1548
      %1550 = vrot.lane.b32.xlu0 %v444, 112
      %v1551 = vpop.permute.xlu0 %1550
      %1552 = vrot.lane.b32.xlu0 %v445, 112
      %v1553 = vpop.permute.xlu0 %1552
      %1554 = vrot.lane.b32.xlu0 %v446, 112
      %v1555 = vpop.permute.xlu0 %1554
      %1556 = vrot.lane.b32.xlu0 %v447, 112
      %v1557 = vpop.permute.xlu0 %1556
      %1558 = vrot.lane.b32.xlu0 %v448, 112
      %v1559 = vpop.permute.xlu0 %1558
      %1560 = vrot.lane.b32.xlu0 %v449, 112
      %v1561 = vpop.permute.xlu0 %1560
      %1562 = vrot.lane.b32.xlu0 %v450, 112
      %v1563 = vpop.permute.xlu0 %1562
      %1564 = vrot.lane.b32.xlu0 %v451, 112
      %v1565 = vpop.permute.xlu0 %1564
      %1566 = vrot.lane.b32.xlu0 %v452, 112
      %v1567 = vpop.permute.xlu0 %1566
      %1568 = vrot.lane.b32.xlu0 %v453, 112
      %v1569 = vpop.permute.xlu0 %1568
      %1570 = vrot.lane.b32.xlu0 %v454, 112
      %v1571 = vpop.permute.xlu0 %1570
      %1572 = vrot.lane.b32.xlu0 %v455, 112
      %v1573 = vpop.permute.xlu0 %1572
      %1574 = vrot.lane.b32.xlu0 %v456, 112
      %v1575 = vpop.permute.xlu0 %1574
      %1576 = vrot.lane.b32.xlu0 %v457, 112
      %v1577 = vpop.permute.xlu0 %1576
      %1578 = vrot.lane.b32.xlu0 %v458, 112
      %v1579 = vpop.permute.xlu0 %1578
      %1580 = vrot.lane.b32.xlu0 %v459, 112
      %v1581 = vpop.permute.xlu0 %1580
      %1582 = vrot.lane.b32.xlu0 %v460, 112
      %v1583 = vpop.permute.xlu0 %1582
      %1584 = vrot.lane.b32.xlu0 %v461, 112
      %v1585 = vpop.permute.xlu0 %1584
      %1586 = vrot.lane.b32.xlu0 %v462, 112
      %v1587 = vpop.permute.xlu0 %1586
      %1588 = vrot.lane.b32.xlu0 %v463, 112
      %v1589 = vpop.permute.xlu0 %1588
      %1590 = vrot.lane.b32.xlu0 %v464, 112
      %v1591 = vpop.permute.xlu0 %1590
      %1592 = vrot.lane.b32.xlu0 %v465, 112
      %v1593 = vpop.permute.xlu0 %1592
      %1594 = vrot.lane.b32.xlu0 %v466, 112
      %v1595 = vpop.permute.xlu0 %1594
      %1596 = vrot.lane.b32.xlu0 %v467, 112
      %v1597 = vpop.permute.xlu0 %1596
      %1598 = vrot.lane.b32.xlu0 %v468, 112
      %v1599 = vpop.permute.xlu0 %1598
      %1600 = vrot.lane.b32.xlu0 %v469, 112
      %v1601 = vpop.permute.xlu0 %1600
      %1602 = vrot.lane.b32.xlu0 %v470, 112
      %v1603 = vpop.permute.xlu0 %1602
      %1604 = vrot.lane.b32.xlu0 %v471, 112
      %v1605 = vpop.permute.xlu0 %1604
      %1606 = vrot.lane.b32.xlu0 %v472, 112
      %v1607 = vpop.permute.xlu0 %1606
      %1608 = vrot.lane.b32.xlu0 %v473, 112
      %v1609 = vpop.permute.xlu0 %1608
      %1610 = vrot.lane.b32.xlu0 %v474, 112
      %v1611 = vpop.permute.xlu0 %1610
      %1612 = vrot.lane.b32.xlu0 %v475, 112
      %v1613 = vpop.permute.xlu0 %1612
      %1614 = vrot.lane.b32.xlu0 %v476, 112
      %v1615 = vpop.permute.xlu0 %1614
      %1616 = vrot.lane.b32.xlu0 %v477, 112
      %v1617 = vpop.permute.xlu0 %1616
      %1618 = vrot.lane.b32.xlu0 %v478, 112
      %v1619 = vpop.permute.xlu0 %1618
      %1620 = vrot.lane.b32.xlu0 %v479, 112
      %v1621 = vpop.permute.xlu0 %1620
      %1622 = vrot.lane.b32.xlu0 %v480, 112
      %v1623 = vpop.permute.xlu0 %1622
      %1624 = vrot.lane.b32.xlu0 %v481, 112
      %v1625 = vpop.permute.xlu0 %1624
      %1626 = vrot.lane.b32.xlu0 %v482, 112
      %v1627 = vpop.permute.xlu0 %1626
      %1628 = vrot.lane.b32.xlu0 %v483, 112
      %v1629 = vpop.permute.xlu0 %1628
      %1630 = vrot.lane.b32.xlu0 %v484, 112
      %v1631 = vpop.permute.xlu0 %1630
      %1632 = vrot.lane.b32.xlu0 %v485, 112
      %v1633 = vpop.permute.xlu0 %1632
      %1634 = vrot.lane.b32.xlu0 %v486, 112
      %v1635 = vpop.permute.xlu0 %1634
      %1636 = vrot.lane.b32.xlu0 %v487, 112
      %v1637 = vpop.permute.xlu0 %1636
      %1638 = vrot.lane.b32.xlu0 %v488, 112
      %v1639 = vpop.permute.xlu0 %1638
      %1640 = vrot.lane.b32.xlu0 %v489, 112
      %v1641 = vpop.permute.xlu0 %1640
      %1642 = vrot.lane.b32.xlu0 %v490, 112
      %v1643 = vpop.permute.xlu0 %1642
      %1644 = vrot.lane.b32.xlu0 %v491, 112
      %v1645 = vpop.permute.xlu0 %1644
      %1646 = vrot.lane.b32.xlu0 %v492, 112
      %v1647 = vpop.permute.xlu0 %1646
      %1648 = vrot.lane.b32.xlu0 %v493, 112
      %v1649 = vpop.permute.xlu0 %1648
      %1650 = vrot.lane.b32.xlu0 %v494, 112
      %v1651 = vpop.permute.xlu0 %1650
      %1652 = vrot.lane.b32.xlu0 %v495, 112
      %v1653 = vpop.permute.xlu0 %1652
      %1654 = vrot.lane.b32.xlu0 %v496, 112
      %v1655 = vpop.permute.xlu0 %1654
      %1656 = vrot.lane.b32.xlu0 %v497, 112
      %v1657 = vpop.permute.xlu0 %1656
      %1658 = vrot.lane.b32.xlu0 %v498, 112
      %v1659 = vpop.permute.xlu0 %1658
      %1660 = vrot.lane.b32.xlu0 %v499, 112
      %v1661 = vpop.permute.xlu0 %1660
      %1662 = vrot.lane.b32.xlu0 %v500, 112
      %v1663 = vpop.permute.xlu0 %1662
      %1664 = vrot.lane.b32.xlu0 %v501, 112
      %v1665 = vpop.permute.xlu0 %1664
      %vm1762 = vcmask 228352
      %v1763 = vsel %vm1762, %v390, %v599
      %v1764 = vsel %vm1762, %v391, %v601
      %v1765 = vsel %vm1762, %v392, %v603
      %v1766 = vsel %vm1762, %v393, %v605
      %v1767 = vsel %vm1762, %v394, %v607
      %v1768 = vsel %vm1762, %v395, %v609
      %v1769 = vsel %vm1762, %v396, %v611
      %v1770 = vsel %vm1762, %v397, %v613
      %v1771 = vsel %vm1762, %v398, %v615
      %v1772 = vsel %vm1762, %v399, %v617
      %v1773 = vsel %vm1762, %v400, %v619
      %v1774 = vsel %vm1762, %v401, %v621
      %v1775 = vsel %vm1762, %v402, %v623
      %v1776 = vsel %vm1762, %v403, %v625
      %v1777 = vsel %vm1762, %v404, %v627
      %v1778 = vsel %vm1762, %v405, %v629
      %v1779 = vsel %vm1762, %v406, %v631
      %v1780 = vsel %vm1762, %v407, %v633
      %v1781 = vsel %vm1762, %v408, %v635
      %v1782 = vsel %vm1762, %v409, %v637
      %v1783 = vsel %vm1762, %v410, %v639
      %v1784 = vsel %vm1762, %v411, %v641
      %v1785 = vsel %vm1762, %v412, %v643
      %v1786 = vsel %vm1762, %v413, %v645
      %v1787 = vsel %vm1762, %v414, %v647
      %v1788 = vsel %vm1762, %v415, %v649
      %v1789 = vsel %vm1762, %v416, %v651
      %v1790 = vsel %vm1762, %v417, %v653
      %v1791 = vsel %vm1762, %v418, %v655
      %v1792 = vsel %vm1762, %v419, %v657
      %v1793 = vsel %vm1762, %v420, %v659
      %v1794 = vsel %vm1762, %v421, %v661
      %v1795 = vsel %vm1762, %v422, %v663
      %v1796 = vsel %vm1762, %v423, %v665
      %v1797 = vsel %vm1762, %v424, %v667
      %v1798 = vsel %vm1762, %v425, %v669
      %v1799 = vsel %vm1762, %v426, %v671
      %v1800 = vsel %vm1762, %v427, %v673
      %v1801 = vsel %vm1762, %v428, %v675
      %v1802 = vsel %vm1762, %v429, %v677
      %v1803 = vsel %vm1762, %v430, %v679
      %v1804 = vsel %vm1762, %v431, %v681
      %v1805 = vsel %vm1762, %v432, %v683
      %v1806 = vsel %vm1762, %v433, %v685
      %v1807 = vsel %vm1762, %v434, %v687
      %v1808 = vsel %vm1762, %v435, %v689
      %v1809 = vsel %vm1762, %v436, %v691
      %v1810 = vsel %vm1762, %v437, %v693
      %v1811 = vsel %vm1762, %v438, %v695
      %v1812 = vsel %vm1762, %v439, %v697
      %v1813 = vsel %vm1762, %v440, %v699
      %v1814 = vsel %vm1762, %v441, %v701
      %v1815 = vsel %vm1762, %v442, %v703
      %v1816 = vsel %vm1762, %v443, %v705
      %v1817 = vsel %vm1762, %v444, %v707
      %v1818 = vsel %vm1762, %v445, %v709
      %v1819 = vsel %vm1762, %v446, %v711
      %v1820 = vsel %vm1762, %v447, %v713
      %v1821 = vsel %vm1762, %v448, %v715
      %v1822 = vsel %vm1762, %v449, %v717
      %v1823 = vsel %vm1762, %v450, %v719
      %v1824 = vsel %vm1762, %v451, %v721
      %v1825 = vsel %vm1762, %v452, %v723
      %v1826 = vsel %vm1762, %v453, %v725
      %v1827 = vsel %vm1762, %v454, %v727
      %v1828 = vsel %vm1762, %v455, %v729
      %v1829 = vsel %vm1762, %v456, %v731
      %v1830 = vsel %vm1762, %v457, %v733
      %v1831 = vsel %vm1762, %v458, %v735
      %v1832 = vsel %vm1762, %v459, %v737
      %v1833 = vsel %vm1762, %v460, %v739
      %v1834 = vsel %vm1762, %v461, %v741
      %v1835 = vsel %vm1762, %v462, %v743
      %v1836 = vsel %vm1762, %v463, %v745
      %v1837 = vsel %vm1762, %v464, %v747
      %v1838 = vsel %vm1762, %v465, %v749
      %v1839 = vsel %vm1762, %v466, %v751
      %v1840 = vsel %vm1762, %v467, %v753
      %v1841 = vsel %vm1762, %v468, %v755
      %v1842 = vsel %vm1762, %v469, %v757
      %v1843 = vsel %vm1762, %v470, %v759
      %v1844 = vsel %vm1762, %v471, %v761
      %v1845 = vsel %vm1762, %v472, %v763
      %v1846 = vsel %vm1762, %v473, %v765
      %v1847 = vsel %vm1762, %v474, %v767
      %v1848 = vsel %vm1762, %v475, %v769
      %v1849 = vsel %vm1762, %v476, %v771
      %v1850 = vsel %vm1762, %v477, %v773
      %v1851 = vsel %vm1762, %v478, %v775
      %v1852 = vsel %vm1762, %v479, %v777
      %v1853 = vsel %vm1762, %v480, %v779
      %v1854 = vsel %vm1762, %v481, %v781
      %v1855 = vsel %vm1762, %v482, %v783
      %v1856 = vsel %vm1762, %v483, %v785
      %v1857 = vsel %vm1762, %v484, %v787
      %v1858 = vsel %vm1762, %v485, %v789
      %vm1859 = vcmask 457728
      %v1860 = vsel %vm1859, %v1763, %v891
      %v1861 = vsel %vm1859, %v1764, %v893
      %v1862 = vsel %vm1859, %v1765, %v895
      %v1863 = vsel %vm1859, %v1766, %v897
      %v1864 = vsel %vm1859, %v1767, %v899
      %v1865 = vsel %vm1859, %v1768, %v901
      %v1866 = vsel %vm1859, %v1769, %v903
      %v1867 = vsel %vm1859, %v1770, %v905
      %v1868 = vsel %vm1859, %v1771, %v907
      %v1869 = vsel %vm1859, %v1772, %v909
      %v1870 = vsel %vm1859, %v1773, %v911
      %v1871 = vsel %vm1859, %v1774, %v913
      %v1872 = vsel %vm1859, %v1775, %v915
      %v1873 = vsel %vm1859, %v1776, %v917
      %v1874 = vsel %vm1859, %v1777, %v919
      %v1875 = vsel %vm1859, %v1778, %v921
      %v1876 = vsel %vm1859, %v1779, %v923
      %v1877 = vsel %vm1859, %v1780, %v925
      %v1878 = vsel %vm1859, %v1781, %v927
      %v1879 = vsel %vm1859, %v1782, %v929
      %v1880 = vsel %vm1859, %v1783, %v931
      %v1881 = vsel %vm1859, %v1784, %v933
      %v1882 = vsel %vm1859, %v1785, %v935
      %v1883 = vsel %vm1859, %v1786, %v937
      %v1884 = vsel %vm1859, %v1787, %v939
      %v1885 = vsel %vm1859, %v1788, %v941
      %v1886 = vsel %vm1859, %v1789, %v943
      %v1887 = vsel %vm1859, %v1790, %v945
      %v1888 = vsel %vm1859, %v1791, %v947
      %v1889 = vsel %vm1859, %v1792, %v949
      %v1890 = vsel %vm1859, %v1793, %v951
      %v1891 = vsel %vm1859, %v1794, %v953
      %v1892 = vsel %vm1859, %v1795, %v955
      %v1893 = vsel %vm1859, %v1796, %v957
      %v1894 = vsel %vm1859, %v1797, %v959
      %v1895 = vsel %vm1859, %v1798, %v961
      %v1896 = vsel %vm1859, %v1799, %v963
      %v1897 = vsel %vm1859, %v1800, %v965
      %v1898 = vsel %vm1859, %v1801, %v967
      %v1899 = vsel %vm1859, %v1802, %v969
      %v1900 = vsel %vm1859, %v1803, %v971
      %v1901 = vsel %vm1859, %v1804, %v973
      %v1902 = vsel %vm1859, %v1805, %v975
      %v1903 = vsel %vm1859, %v1806, %v977
      %v1904 = vsel %vm1859, %v1807, %v979
      %v1905 = vsel %vm1859, %v1808, %v981
      %v1906 = vsel %vm1859, %v1809, %v983
      %v1907 = vsel %vm1859, %v1810, %v985
      %v1908 = vsel %vm1859, %v1811, %v987
      %v1909 = vsel %vm1859, %v1812, %v989
      %v1910 = vsel %vm1859, %v1813, %v991
      %v1911 = vsel %vm1859, %v1814, %v993
      %v1912 = vsel %vm1859, %v1815, %v995
      %v1913 = vsel %vm1859, %v1816, %v997
      %v1914 = vsel %vm1859, %v1817, %v999
      %v1915 = vsel %vm1859, %v1818, %v1001
      %v1916 = vsel %vm1859, %v1819, %v1003
      %v1917 = vsel %vm1859, %v1820, %v1005
      %v1918 = vsel %vm1859, %v1821, %v1007
      %v1919 = vsel %vm1859, %v1822, %v1009
      %v1920 = vsel %vm1859, %v1823, %v1011
      %v1921 = vsel %vm1859, %v1824, %v1013
      %v1922 = vsel %vm1859, %v1825, %v1015
      %v1923 = vsel %vm1859, %v1826, %v1017
      %v1924 = vsel %vm1859, %v1827, %v1019
      %v1925 = vsel %vm1859, %v1828, %v1021
      %v1926 = vsel %vm1859, %v1829, %v1023
      %v1927 = vsel %vm1859, %v1830, %v1025
      %v1928 = vsel %vm1859, %v1831, %v1027
      %v1929 = vsel %vm1859, %v1832, %v1029
      %v1930 = vsel %vm1859, %v1833, %v1031
      %v1931 = vsel %vm1859, %v1834, %v1033
      %v1932 = vsel %vm1859, %v1835, %v1035
      %v1933 = vsel %vm1859, %v1836, %v1037
      %v1934 = vsel %vm1859, %v1837, %v1039
      %v1935 = vsel %vm1859, %v1838, %v1041
      %v1936 = vsel %vm1859, %v1839, %v1043
      %v1937 = vsel %vm1859, %v1840, %v1045
      %v1938 = vsel %vm1859, %v1841, %v1047
      %v1939 = vsel %vm1859, %v1842, %v1049
      %v1940 = vsel %vm1859, %v1843, %v1051
      %v1941 = vsel %vm1859, %v1844, %v1053
      %v1942 = vsel %vm1859, %v1845, %v1055
      %v1943 = vsel %vm1859, %v1846, %v1057
      %v1944 = vsel %vm1859, %v1847, %v1059
      %v1945 = vsel %vm1859, %v1848, %v1061
      %v1946 = vsel %vm1859, %v1849, %v1063
      %v1947 = vsel %vm1859, %v1850, %v1065
      %v1948 = vsel %vm1859, %v1851, %v1067
      %v1949 = vsel %vm1859, %v1852, %v1069
      %v1950 = vsel %vm1859, %v1853, %v1071
      %v1951 = vsel %vm1859, %v1854, %v1073
      %v1952 = vsel %vm1859, %v1855, %v1075
      %v1953 = vsel %vm1859, %v1856, %v1077
      %v1954 = vsel %vm1859, %v1857, %v1079
      %v1955 = vsel %vm1859, %v1858, %v1081
      %vm1956 = vcmask 687104
      %v1957 = vsel %vm1956, %v1860, %v1183
      %v1958 = vsel %vm1956, %v1861, %v1185
      %v1959 = vsel %vm1956, %v1862, %v1187
      %v1960 = vsel %vm1956, %v1863, %v1189
      %v1961 = vsel %vm1956, %v1864, %v1191
      %v1962 = vsel %vm1956, %v1865, %v1193
      %v1963 = vsel %vm1956, %v1866, %v1195
      %v1964 = vsel %vm1956, %v1867, %v1197
      %v1965 = vsel %vm1956, %v1868, %v1199
      %v1966 = vsel %vm1956, %v1869, %v1201
      %v1967 = vsel %vm1956, %v1870, %v1203
      %v1968 = vsel %vm1956, %v1871, %v1205
      %v1969 = vsel %vm1956, %v1872, %v1207
      %v1970 = vsel %vm1956, %v1873, %v1209
      %v1971 = vsel %vm1956, %v1874, %v1211
      %v1972 = vsel %vm1956, %v1875, %v1213
      %v1973 = vsel %vm1956, %v1876, %v1215
      %v1974 = vsel %vm1956, %v1877, %v1217
      %v1975 = vsel %vm1956, %v1878, %v1219
      %v1976 = vsel %vm1956, %v1879, %v1221
      %v1977 = vsel %vm1956, %v1880, %v1223
      %v1978 = vsel %vm1956, %v1881, %v1225
      %v1979 = vsel %vm1956, %v1882, %v1227
      %v1980 = vsel %vm1956, %v1883, %v1229
      %v1981 = vsel %vm1956, %v1884, %v1231
      %v1982 = vsel %vm1956, %v1885, %v1233
      %v1983 = vsel %vm1956, %v1886, %v1235
      %v1984 = vsel %vm1956, %v1887, %v1237
      %v1985 = vsel %vm1956, %v1888, %v1239
      %v1986 = vsel %vm1956, %v1889, %v1241
      %v1987 = vsel %vm1956, %v1890, %v1243
      %v1988 = vsel %vm1956, %v1891, %v1245
      %v1989 = vsel %vm1956, %v1892, %v1247
      %v1990 = vsel %vm1956, %v1893, %v1249
      %v1991 = vsel %vm1956, %v1894, %v1251
      %v1992 = vsel %vm1956, %v1895, %v1253
      %v1993 = vsel %vm1956, %v1896, %v1255
      %v1994 = vsel %vm1956, %v1897, %v1257
      %v1995 = vsel %vm1956, %v1898, %v1259
      %v1996 = vsel %vm1956, %v1899, %v1261
      %v1997 = vsel %vm1956, %v1900, %v1263
      %v1998 = vsel %vm1956, %v1901, %v1265
      %v1999 = vsel %vm1956, %v1902, %v1267
      %v2000 = vsel %vm1956, %v1903, %v1269
      %v2001 = vsel %vm1956, %v1904, %v1271
      %v2002 = vsel %vm1956, %v1905, %v1273
      %v2003 = vsel %vm1956, %v1906, %v1275
      %v2004 = vsel %vm1956, %v1907, %v1277
      %v2005 = vsel %vm1956, %v1908, %v1279
      %v2006 = vsel %vm1956, %v1909, %v1281
      %v2007 = vsel %vm1956, %v1910, %v1283
      %v2008 = vsel %vm1956, %v1911, %v1285
      %v2009 = vsel %vm1956, %v1912, %v1287
      %v2010 = vsel %vm1956, %v1913, %v1289
      %v2011 = vsel %vm1956, %v1914, %v1291
      %v2012 = vsel %vm1956, %v1915, %v1293
      %v2013 = vsel %vm1956, %v1916, %v1295
      %v2014 = vsel %vm1956, %v1917, %v1297
      %v2015 = vsel %vm1956, %v1918, %v1299
      %v2016 = vsel %vm1956, %v1919, %v1301
      %v2017 = vsel %vm1956, %v1920, %v1303
      %v2018 = vsel %vm1956, %v1921, %v1305
      %v2019 = vsel %vm1956, %v1922, %v1307
      %v2020 = vsel %vm1956, %v1923, %v1309
      %v2021 = vsel %vm1956, %v1924, %v1311
      %v2022 = vsel %vm1956, %v1925, %v1313
      %v2023 = vsel %vm1956, %v1926, %v1315
      %v2024 = vsel %vm1956, %v1927, %v1317
      %v2025 = vsel %vm1956, %v1928, %v1319
      %v2026 = vsel %vm1956, %v1929, %v1321
      %v2027 = vsel %vm1956, %v1930, %v1323
      %v2028 = vsel %vm1956, %v1931, %v1325
      %v2029 = vsel %vm1956, %v1932, %v1327
      %v2030 = vsel %vm1956, %v1933, %v1329
      %v2031 = vsel %vm1956, %v1934, %v1331
      %v2032 = vsel %vm1956, %v1935, %v1333
      %v2033 = vsel %vm1956, %v1936, %v1335
      %v2034 = vsel %vm1956, %v1937, %v1337
      %v2035 = vsel %vm1956, %v1938, %v1339
      %v2036 = vsel %vm1956, %v1939, %v1341
      %v2037 = vsel %vm1956, %v1940, %v1343
      %v2038 = vsel %vm1956, %v1941, %v1345
      %v2039 = vsel %vm1956, %v1942, %v1347
      %v2040 = vsel %vm1956, %v1943, %v1349
      %v2041 = vsel %vm1956, %v1944, %v1351
      %v2042 = vsel %vm1956, %v1945, %v1353
      %v2043 = vsel %vm1956, %v1946, %v1355
      %v2044 = vsel %vm1956, %v1947, %v1357
      %v2045 = vsel %vm1956, %v1948, %v1359
      %v2046 = vsel %vm1956, %v1949, %v1361
      %v2047 = vsel %vm1956, %v1950, %v1363
      %v2048 = vsel %vm1956, %v1951, %v1365
      %v2049 = vsel %vm1956, %v1952, %v1367
      %v2050 = vsel %vm1956, %v1953, %v1369
      %v2051 = vsel %vm1956, %v1954, %v1371
      %v2052 = vsel %vm1956, %v1955, %v1373
      %vm2053 = vcmask 916480
      %v2054 = vsel %vm2053, %v1957, %v1475
      %v2055 = vsel %vm2053, %v1958, %v1477
      %v2056 = vsel %vm2053, %v1959, %v1479
      %v2057 = vsel %vm2053, %v1960, %v1481
      %v2058 = vsel %vm2053, %v1961, %v1483
      %v2059 = vsel %vm2053, %v1962, %v1485
      %v2060 = vsel %vm2053, %v1963, %v1487
      %v2061 = vsel %vm2053, %v1964, %v1489
      %v2062 = vsel %vm2053, %v1965, %v1491
      %v2063 = vsel %vm2053, %v1966, %v1493
      %v2064 = vsel %vm2053, %v1967, %v1495
      %v2065 = vsel %vm2053, %v1968, %v1497
      %v2066 = vsel %vm2053, %v1969, %v1499
      %v2067 = vsel %vm2053, %v1970, %v1501
      %v2068 = vsel %vm2053, %v1971, %v1503
      %v2069 = vsel %vm2053, %v1972, %v1505
      %v2070 = vsel %vm2053, %v1973, %v1507
      %v2071 = vsel %vm2053, %v1974, %v1509
      %v2072 = vsel %vm2053, %v1975, %v1511
      %v2073 = vsel %vm2053, %v1976, %v1513
      %v2074 = vsel %vm2053, %v1977, %v1515
      %v2075 = vsel %vm2053, %v1978, %v1517
      %v2076 = vsel %vm2053, %v1979, %v1519
      %v2077 = vsel %vm2053, %v1980, %v1521
      %v2078 = vsel %vm2053, %v1981, %v1523
      %v2079 = vsel %vm2053, %v1982, %v1525
      %v2080 = vsel %vm2053, %v1983, %v1527
      %v2081 = vsel %vm2053, %v1984, %v1529
      %v2082 = vsel %vm2053, %v1985, %v1531
      %v2083 = vsel %vm2053, %v1986, %v1533
      %v2084 = vsel %vm2053, %v1987, %v1535
      %v2085 = vsel %vm2053, %v1988, %v1537
      %v2086 = vsel %vm2053, %v1989, %v1539
      %v2087 = vsel %vm2053, %v1990, %v1541
      %v2088 = vsel %vm2053, %v1991, %v1543
      %v2089 = vsel %vm2053, %v1992, %v1545
      %v2090 = vsel %vm2053, %v1993, %v1547
      %v2091 = vsel %vm2053, %v1994, %v1549
      %v2092 = vsel %vm2053, %v1995, %v1551
      %v2093 = vsel %vm2053, %v1996, %v1553
      %v2094 = vsel %vm2053, %v1997, %v1555
      %v2095 = vsel %vm2053, %v1998, %v1557
      %v2096 = vsel %vm2053, %v1999, %v1559
      %v2097 = vsel %vm2053, %v2000, %v1561
      %v2098 = vsel %vm2053, %v2001, %v1563
      %v2099 = vsel %vm2053, %v2002, %v1565
      %v2100 = vsel %vm2053, %v2003, %v1567
      %v2101 = vsel %vm2053, %v2004, %v1569
      %v2102 = vsel %vm2053, %v2005, %v1571
      %v2103 = vsel %vm2053, %v2006, %v1573
      %v2104 = vsel %vm2053, %v2007, %v1575
      %v2105 = vsel %vm2053, %v2008, %v1577
      %v2106 = vsel %vm2053, %v2009, %v1579
      %v2107 = vsel %vm2053, %v2010, %v1581
      %v2108 = vsel %vm2053, %v2011, %v1583
      %v2109 = vsel %vm2053, %v2012, %v1585
      %v2110 = vsel %vm2053, %v2013, %v1587
      %v2111 = vsel %vm2053, %v2014, %v1589
      %v2112 = vsel %vm2053, %v2015, %v1591
      %v2113 = vsel %vm2053, %v2016, %v1593
      %v2114 = vsel %vm2053, %v2017, %v1595
      %v2115 = vsel %vm2053, %v2018, %v1597
      %v2116 = vsel %vm2053, %v2019, %v1599
      %v2117 = vsel %vm2053, %v2020, %v1601
      %v2118 = vsel %vm2053, %v2021, %v1603
      %v2119 = vsel %vm2053, %v2022, %v1605
      %v2120 = vsel %vm2053, %v2023, %v1607
      %v2121 = vsel %vm2053, %v2024, %v1609
      %v2122 = vsel %vm2053, %v2025, %v1611
      %v2123 = vsel %vm2053, %v2026, %v1613
      %v2124 = vsel %vm2053, %v2027, %v1615
      %v2125 = vsel %vm2053, %v2028, %v1617
      %v2126 = vsel %vm2053, %v2029, %v1619
      %v2127 = vsel %vm2053, %v2030, %v1621
      %v2128 = vsel %vm2053, %v2031, %v1623
      %v2129 = vsel %vm2053, %v2032, %v1625
      %v2130 = vsel %vm2053, %v2033, %v1627
      %v2131 = vsel %vm2053, %v2034, %v1629
      %v2132 = vsel %vm2053, %v2035, %v1631
      %v2133 = vsel %vm2053, %v2036, %v1633
      %v2134 = vsel %vm2053, %v2037, %v1635
      %v2135 = vsel %vm2053, %v2038, %v1637
      %v2136 = vsel %vm2053, %v2039, %v1639
      %v2137 = vsel %vm2053, %v2040, %v1641
      %v2138 = vsel %vm2053, %v2041, %v1643
      %v2139 = vsel %vm2053, %v2042, %v1645
      %v2140 = vsel %vm2053, %v2043, %v1647
      %v2141 = vsel %vm2053, %v2044, %v1649
      %v2142 = vsel %vm2053, %v2045, %v1651
      %v2143 = vsel %vm2053, %v2046, %v1653
      %v2144 = vsel %vm2053, %v2047, %v1655
      %v2145 = vsel %vm2053, %v2048, %v1657
      %v2146 = vsel %vm2053, %v2049, %v1659
      %v2147 = vsel %vm2053, %v2050, %v1661
      %v2148 = vsel %vm2053, %v2051, %v1663
      %v2149 = vsel %vm2053, %v2052, %v1665
      %v2150 = vld [vmem:[%s1] sm:$0xff]
      %v2151 = vld [vmem:[%s1 + $0x8] sm:$0xff]
      %v2152 = vld [vmem:[%s1 + $0x10] sm:$0xff]
      %v2153 = vld [vmem:[%s1 + $0x18] sm:$0xff]
      %v2154 = vld [vmem:[%s1 + $0x20] sm:$0xff]
      %v2155 = vld [vmem:[%s1 + $0x28] sm:$0xff]
      %v2156 = vld [vmem:[%s1 + $0x30] sm:$0xff]
      %v2157 = vld [vmem:[%s1 + $0x38] sm:$0xff]
      %v2158 = vld [vmem:[%s1 + $0x40] sm:$0xff]
      %v2159 = vld [vmem:[%s1 + $0x48] sm:$0xff]
      %v2160 = vld [vmem:[%s1 + $0x50] sm:$0xff]
      %v2161 = vld [vmem:[%s1 + $0x58] sm:$0xff]
      %v2162 = vld [vmem:[%s1 + $0x60] sm:$0xff]
      %v2163 = vld [vmem:[%s1 + $0x68] sm:$0xff]
      %v2164 = vld [vmem:[%s1 + $0x70] sm:$0xff]
      %v2165 = vld [vmem:[%s1 + $0x78] sm:$0xff]
      %v2166 = vld [vmem:[%s1 + $0x80] sm:$0xff]
      %v2167 = vld [vmem:[%s1 + $0x88] sm:$0xff]
      %v2168 = vld [vmem:[%s1 + $0x90] sm:$0xff]
      %v2169 = vld [vmem:[%s1 + $0x98] sm:$0xff]
      %v2170 = vld [vmem:[%s1 + $0xa0] sm:$0xff]
      %v2171 = vld [vmem:[%s1 + $0xa8] sm:$0xff]
      %v2172 = vld [vmem:[%s1 + $0xb0] sm:$0xff]
      %v2173 = vld [vmem:[%s1 + $0xb8] sm:$0xff]
      %v2174 = vld [vmem:[%s1 + $0xc0] sm:$0xff]
      %v2175 = vld [vmem:[%s1 + $0xc8] sm:$0xff]
      %v2176 = vld [vmem:[%s1 + $0xd0] sm:$0xff]
      %v2177 = vld [vmem:[%s1 + $0xd8] sm:$0xff]
      %v2178 = vld [vmem:[%s1 + $0xe0] sm:$0xff]
      %v2179 = vld [vmem:[%s1 + $0xe8] sm:$0xff]
      %v2180 = vld [vmem:[%s1 + $0xf0] sm:$0xff]
      %v2181 = vld [vmem:[%s1 + $0xf8] sm:$0xff]
      %v2182 = vld [vmem:[%s1 + $0x100] sm:$0xff]
      %v2183 = vld [vmem:[%s1 + $0x108] sm:$0xff]
      %v2184 = vld [vmem:[%s1 + $0x110] sm:$0xf]
      %v2185 = vld [vmem:[%s1 + $0x118] sm:$0xf]
      %v2186 = vld [vmem:[%s2] sm:$0x3]
      %v2188 = vlaneseq
      %v2189 = vshrl.u32 %v2188, 7
      %v2190 = vsub.s32 0, %v2189
      %v2191 = vrot.slane %v2186, %v2190
      %v2192 = vlaneseq
      %v2193 = vshrl.u32 %v2192, 7
      %v2194 = vsub.s32 1, %v2193
      %v2195 = vrot.slane %v2186, %v2194
      %vm2198 = vcmask 97280
      %v2199 = vsel %vm2198, %v1475, 0
      %v2201 = vsel %vm2198, %v1477, 0
      %v2203 = vsel %vm2198, %v1479, 0
      %v2205 = vsel %vm2198, %v1481, 0
      %v2207 = vsel %vm2198, %v1483, 0
      %v2209 = vsel %vm2198, %v1485, 0
      %v2211 = vsel %vm2198, %v1487, 0
      %v2213 = vsel %vm2198, %v1489, 0
      %v2215 = vsel %vm2198, %v1491, 0
      %v2217 = vsel %vm2198, %v1493, 0
      %v2219 = vsel %vm2198, %v1495, 0
      %v2221 = vsel %vm2198, %v1497, 0
      %v2223 = vsel %vm2198, %v1499, 0
      %v2225 = vsel %vm2198, %v1501, 0
      %v2227 = vsel %vm2198, %v1503, 0
      %v2229 = vsel %vm2198, %v1505, 0
      %v2231 = vsel %vm2198, %v1507, 0
      %v2233 = vsel %vm2198, %v1509, 0
      %v2235 = vsel %vm2198, %v1511, 0
      %v2237 = vsel %vm2198, %v1513, 0
      %v2239 = vsel %vm2198, %v1515, 0
      %v2241 = vsel %vm2198, %v1517, 0
      %v2243 = vsel %vm2198, %v1519, 0
      %v2245 = vsel %vm2198, %v1521, 0
      %v2247 = vsel %vm2198, %v1523, 0
      %v2249 = vsel %vm2198, %v1525, 0
      %v2251 = vsel %vm2198, %v1527, 0
      %v2253 = vsel %vm2198, %v1529, 0
      %v2255 = vsel %vm2198, %v1531, 0
      %v2257 = vsel %vm2198, %v1533, 0
      %v2259 = vsel %vm2198, %v1535, 0
      %v2261 = vsel %vm2198, %v1537, 0
      %v2263 = vsel %vm2198, %v1539, 0
      %v2265 = vsel %vm2198, %v1541, 0
      %v2267 = vsel %vm2198, %v1543, 0
      %v2269 = vsel %vm2198, %v1545, 0
      %v2271 = vsel %vm2198, %v1547, 0
      %v2273 = vsel %vm2198, %v1549, 0
      %v2275 = vsel %vm2198, %v1551, 0
      %v2277 = vsel %vm2198, %v1553, 0
      %v2279 = vsel %vm2198, %v1555, 0
      %v2281 = vsel %vm2198, %v1557, 0
      %v2283 = vsel %vm2198, %v1559, 0
      %v2285 = vsel %vm2198, %v1561, 0
      %v2287 = vsel %vm2198, %v1563, 0
      %v2289 = vsel %vm2198, %v1565, 0
      %v2291 = vsel %vm2198, %v1567, 0
      %v2293 = vsel %vm2198, %v1569, 0
      %v2295 = vsel %vm2198, %v1571, 0
      %v2297 = vsel %vm2198, %v1573, 0
      %v2299 = vsel %vm2198, %v1575, 0
      %v2301 = vsel %vm2198, %v1577, 0
      %v2303 = vsel %vm2198, %v1579, 0
      %v2305 = vsel %vm2198, %v1581, 0
      %v2307 = vsel %vm2198, %v1583, 0
      %v2309 = vsel %vm2198, %v1585, 0
      %v2311 = vsel %vm2198, %v1587, 0
      %v2313 = vsel %vm2198, %v1589, 0
      %v2315 = vsel %vm2198, %v1591, 0
      %v2317 = vsel %vm2198, %v1593, 0
      %v2319 = vsel %vm2198, %v1595, 0
      %v2321 = vsel %vm2198, %v1597, 0
      %v2323 = vsel %vm2198, %v1599, 0
      %v2325 = vsel %vm2198, %v1601, 0
      %v2327 = vsel %vm2198, %v1603, 0
      %v2329 = vsel %vm2198, %v1605, 0
      %v2331 = vsel %vm2198, %v1607, 0
      %v2333 = vsel %vm2198, %v1609, 0
      %v2335 = vsel %vm2198, %v1611, 0
      %v2337 = vsel %vm2198, %v1613, 0
      %v2339 = vsel %vm2198, %v1615, 0
      %v2341 = vsel %vm2198, %v1617, 0
      %v2343 = vsel %vm2198, %v1619, 0
      %v2345 = vsel %vm2198, %v1621, 0
      %v2347 = vsel %vm2198, %v1623, 0
      %v2349 = vsel %vm2198, %v1625, 0
      %v2351 = vsel %vm2198, %v1627, 0
      %v2353 = vsel %vm2198, %v1629, 0
      %v2355 = vsel %vm2198, %v1631, 0
      %v2357 = vsel %vm2198, %v1633, 0
      %v2359 = vsel %vm2198, %v1635, 0
      %v2361 = vsel %vm2198, %v1637, 0
      %v2363 = vsel %vm2198, %v1639, 0
      %v2365 = vsel %vm2198, %v1641, 0
      %v2367 = vsel %vm2198, %v1643, 0
      %v2369 = vsel %vm2198, %v1645, 0
      %v2371 = vsel %vm2198, %v1647, 0
      %v2373 = vsel %vm2198, %v1649, 0
      %v2375 = vsel %vm2198, %v1651, 0
      %v2377 = vsel %vm2198, %v1653, 0
      %v2379 = vsel %vm2198, %v1655, 0
      %v2381 = vsel %vm2198, %v1657, 0
      %v2383 = vsel %vm2198, %v1659, 0
      %v2385 = vsel %vm2198, %v1661, 0
      %v2387 = vsel %vm2198, %v1663, 0
      %v2389 = vsel %vm2198, %v1665, 0
      %vm2391 = vcmask 1043456
      %v2393 = vsel %vm2391, %v2184, 0
      %v2396 = vsel %vm2391, %v2185, 0
      %2398 = vmatprep.subr.mxu0 %v2151
      %2399 = vmatpush1.msra.mxu0 %v2150
      %2400 = vmatprep.subr.mxu0 %v2153
      %2401 = vmatpush1.msra.mxu0 %v2152
      %2402 = vmatprep.subr.mxu0 %v2155
      %2403 = vmatpush1.msra.mxu0 %v2154
      %2404 = vmatprep.subr.mxu0 %v2157
      %2405 = vmatpush1.msra.mxu0 %v2156
      %2406 = vmatprep.subr.mxu0 %v2159
      %2407 = vmatpush1.msra.mxu0 %v2158
      %2408 = vmatprep.subr.mxu0 %v2161
      %2409 = vmatpush1.msra.mxu0 %v2160
      %2410 = vmatprep.subr.mxu0 %v2163
      %2411 = vmatpush1.msra.mxu0 %v2162
      %2412 = vmatprep.subr.mxu0 %v2165
      %2413 = vmatpush1.msra.mxu0 %v2164
      %2414 = vmatprep.subr.mxu0 %v2167
      %2415 = vmatpush1.msra.mxu0 %v2166
      %2416 = vmatprep.subr.mxu0 %v2169
      %2417 = vmatpush1.msra.mxu0 %v2168
      %2418 = vmatprep.subr.mxu0 %v2171
      %2419 = vmatpush1.msra.mxu0 %v2170
      %2420 = vmatprep.subr.mxu0 %v2173
      %2421 = vmatpush1.msra.mxu0 %v2172
      %2422 = vmatprep.subr.mxu0 %v2175
      %2423 = vmatpush1.msra.mxu0 %v2174
      %2424 = vmatprep.subr.mxu0 %v2177
      %2425 = vmatpush1.msra.mxu0 %v2176
      %2426 = vmatprep.subr.mxu0 %v2179
      %2427 = vmatpush1.msra.mxu0 %v2178
      %2428 = vmatprep.subr.mxu0 %v2181
      %2429 = vmatpush1.msra.mxu0 %v2180
      %2430 = vmatprep.subr.mxu0 %v2183
      %2431 = vmatpush1.msra.mxu0 %v2182
      %2432 = vmatprep.subr.mxu0 %v2396
      %2433 = vmatpush1.msra.mxu0 %v2393
      %2434 = vmatprep.subr.mxu0 0.0
      %2435 = vmatpush1.msra.mxu0 0.0
      %2436 = vmatprep.subr.mxu0 0.0
      %2437 = vmatpush1.msra.mxu0 0.0
      %2438 = vmatprep.subr.mxu0 0.0
      %2439 = vmatpush1.msra.mxu0 0.0
      %2440 = vmatprep.subr.mxu0 0.0
      %2441 = vmatpush1.msra.mxu0 0.0
      %2442 = vmatprep.subr.mxu0 0.0
      %2443 = vmatpush1.msra.mxu0 0.0
      %2444 = vmatprep.subr.mxu0 0.0
      %2445 = vmatpush1.msra.mxu0 0.0
      %2446 = vmatprep.subr.mxu0 0.0
      %2447 = vmatpush1.msra.mxu0 0.0
      %2448 = vmatprep.subr.mxu0 0.0
      %2449 = vmatpush1.msra.mxu0 0.0
      %2450 = vmatprep.subr.mxu0 0.0
      %2451 = vmatpush1.msra.mxu0 0.0
      %2452 = vmatprep.subr.mxu0 0.0
      %2453 = vmatpush1.msra.mxu0 0.0
      %2454 = vmatprep.subr.mxu0 0.0
      %2455 = vmatpush1.msra.mxu0 0.0
      %2456 = vmatprep.subr.mxu0 0.0
      %2457 = vmatpush1.msra.mxu0 0.0
      %2458 = vmatprep.subr.mxu0 0.0
      %2459 = vmatpush1.msra.mxu0 0.0
      %2460 = vmatprep.subr.mxu0 0.0
      %2461 = vmatpush1.msra.mxu0 0.0
      %2462 = vmatprep.mubr.f32.mxu0 %v2199
      %2463 = vmatmul.mubr.f32.gmra.mrb[0].mxu0 %v2054
      %v2464 = vpop.f32.mrb[0].mxu0
      %v2465 = vadd.f32 %v2191, %v2464
      %v2466 = vpop.f32.mrb[0].mxu0
      %v2467 = vadd.f32 %v2195, %v2466
      %2468 = vmatprep.mubr.f32.mxu0 %v2201
      %2469 = vmatmul.mubr.f32.gmra.mrb[0].mxu0 %v2055
      %v2470 = vpop.f32.mrb[0].mxu0
      %v2471 = vadd.f32 %v2191, %v2470
      %v2472 = vpop.f32.mrb[0].mxu0
      %v2473 = vadd.f32 %v2195, %v2472
      %2474 = vmatprep.mubr.f32.mxu0 %v2203
      %2475 = vmatmul.mubr.f32.gmra.mrb[0].mxu0 %v2056
      %v2476 = vpop.f32.mrb[0].mxu0
      %v2477 = vadd.f32 %v2191, %v2476
      %v2478 = vpop.f32.mrb[0].mxu0
      %v2479 = vadd.f32 %v2195, %v2478
      %2480 = vmatprep.mubr.f32.mxu0 %v2205
      %2481 = vmatmul.mubr.f32.gmra.mrb[0].mxu0 %v2057
      %v2482 = vpop.f32.mrb[0].mxu0
      %v2483 = vadd.f32 %v2191, %v2482
      %v2484 = vpop.f32.mrb[0].mxu0
      %v2485 = vadd.f32 %v2195, %v2484
      %2486 = vmatprep.mubr.f32.mxu0 %v2207
      %2487 = vmatmul.mubr.f32.gmra.mrb[0].mxu0 %v2058
      %v2488 = vpop.f32.mrb[0].mxu0
      %v2489 = vadd.f32 %v2191, %v2488
      %v2490 = vpop.f32.mrb[0].mxu0
      %v2491 = vadd.f32 %v2195, %v2490
      %2492 = vmatprep.mubr.f32.mxu0 %v2209
      %2493 = vmatmul.mubr.f32.gmra.mrb[0].mxu0 %v2059
      %v2494 = vpop.f32.mrb[0].mxu0
      %v2495 = vadd.f32 %v2191, %v2494
      %v2496 = vpop.f32.mrb[0].mxu0
      %v2497 = vadd.f32 %v2195, %v2496
      %2498 = vmatprep.mubr.f32.mxu0 %v2211
      %2499 = vmatmul.mubr.f32.gmra.mrb[0].mxu0 %v2060
      %v2500 = vpop.f32.mrb[0].mxu0
      %v2501 = vadd.f32 %v2191, %v2500
      %v2502 = vpop.f32.mrb[0].mxu0
      %v2503 = vadd.f32 %v2195, %v2502
      %2504 = vmatprep.mubr.f32.mxu0 %v2213
      %2505 = vmatmul.mubr.f32.gmra.mrb[0].mxu0 %v2061
      %v2506 = vpop.f32.mrb[0].mxu0
      %v2507 = vadd.f32 %v2191, %v2506
      %v2508 = vpop.f32.mrb[0].mxu0
      %v2509 = vadd.f32 %v2195, %v2508
      %2510 = vmatprep.mubr.f32.mxu0 %v2215
      %2511 = vmatmul.mubr.f32.gmra.mrb[0].mxu0 %v2062
      %v2512 = vpop.f32.mrb[0].mxu0
      %v2513 = vadd.f32 %v2191, %v2512
      %v2514 = vpop.f32.mrb[0].mxu0
      %v2515 = vadd.f32 %v2195, %v2514
      %2516 = vmatprep.mubr.f32.mxu0 %v2217
      %2517 = vmatmul.mubr.f32.gmra.mrb[0].mxu0 %v2063
      %v2518 = vpop.f32.mrb[0].mxu0
      %v2519 = vadd.f32 %v2191, %v2518
      %v2520 = vpop.f32.mrb[0].mxu0
      %v2521 = vadd.f32 %v2195, %v2520
      %2522 = vmatprep.mubr.f32.mxu0 %v2219
      %2523 = vmatmul.mubr.f32.gmra.mrb[0].mxu0 %v2064
      %v2524 = vpop.f32.mrb[0].mxu0
      %v2525 = vadd.f32 %v2191, %v2524
      %v2526 = vpop.f32.mrb[0].mxu0
      %v2527 = vadd.f32 %v2195, %v2526
      %2528 = vmatprep.mubr.f32.mxu0 %v2221
      %2529 = vmatmul.mubr.f32.gmra.mrb[0].mxu0 %v2065
      %v2530 = vpop.f32.mrb[0].mxu0
      %v2531 = vadd.f32 %v2191, %v2530
      %v2532 = vpop.f32.mrb[0].mxu0
      %v2533 = vadd.f32 %v2195, %v2532
      %2534 = vmatprep.mubr.f32.mxu0 %v2223
      %2535 = vmatmul.mubr.f32.gmra.mrb[0].mxu0 %v2066
      %v2536 = vpop.f32.mrb[0].mxu0
      %v2537 = vadd.f32 %v2191, %v2536
      %v2538 = vpop.f32.mrb[0].mxu0
      %v2539 = vadd.f32 %v2195, %v2538
      %2540 = vmatprep.mubr.f32.mxu0 %v2225
      %2541 = vmatmul.mubr.f32.gmra.mrb[0].mxu0 %v2067
      %v2542 = vpop.f32.mrb[0].mxu0
      %v2543 = vadd.f32 %v2191, %v2542
      %v2544 = vpop.f32.mrb[0].mxu0
      %v2545 = vadd.f32 %v2195, %v2544
      %2546 = vmatprep.mubr.f32.mxu0 %v2227
      %2547 = vmatmul.mubr.f32.gmra.mrb[0].mxu0 %v2068
      %v2548 = vpop.f32.mrb[0].mxu0
      %v2549 = vadd.f32 %v2191, %v2548
      %v2550 = vpop.f32.mrb[0].mxu0
      %v2551 = vadd.f32 %v2195, %v2550
      %2552 = vmatprep.mubr.f32.mxu0 %v2229
      %2553 = vmatmul.mubr.f32.gmra.mrb[0].mxu0 %v2069
      %v2554 = vpop.f32.mrb[0].mxu0
      %v2555 = vadd.f32 %v2191, %v2554
      %v2556 = vpop.f32.mrb[0].mxu0
      %v2557 = vadd.f32 %v2195, %v2556
      %2558 = vmatprep.mubr.f32.mxu0 %v2231
      %2559 = vmatmul.mubr.f32.gmra.mrb[0].mxu0 %v2070
      %v2560 = vpop.f32.mrb[0].mxu0
      %v2561 = vadd.f32 %v2191, %v2560
      %v2562 = vpop.f32.mrb[0].mxu0
      %v2563 = vadd.f32 %v2195, %v2562
      %2564 = vmatprep.mubr.f32.mxu0 %v2233
      %2565 = vmatmul.mubr.f32.gmra.mrb[0].mxu0 %v2071
      %v2566 = vpop.f32.mrb[0].mxu0
      %v2567 = vadd.f32 %v2191, %v2566
      %v2568 = vpop.f32.mrb[0].mxu0
      %v2569 = vadd.f32 %v2195, %v2568
      %2570 = vmatprep.mubr.f32.mxu0 %v2235
      %2571 = vmatmul.mubr.f32.gmra.mrb[0].mxu0 %v2072
      %v2572 = vpop.f32.mrb[0].mxu0
      %v2573 = vadd.f32 %v2191, %v2572
      %v2574 = vpop.f32.mrb[0].mxu0
      %v2575 = vadd.f32 %v2195, %v2574
      %2576 = vmatprep.mubr.f32.mxu0 %v2237
      %2577 = vmatmul.mubr.f32.gmra.mrb[0].mxu0 %v2073
      %v2578 = vpop.f32.mrb[0].mxu0
      %v2579 = vadd.f32 %v2191, %v2578
      %v2580 = vpop.f32.mrb[0].mxu0
      %v2581 = vadd.f32 %v2195, %v2580
      %2582 = vmatprep.mubr.f32.mxu0 %v2239
      %2583 = vmatmul.mubr.f32.gmra.mrb[0].mxu0 %v2074
      %v2584 = vpop.f32.mrb[0].mxu0
      %v2585 = vadd.f32 %v2191, %v2584
      %v2586 = vpop.f32.mrb[0].mxu0
      %v2587 = vadd.f32 %v2195, %v2586
      %2588 = vmatprep.mubr.f32.mxu0 %v2241
      %2589 = vmatmul.mubr.f32.gmra.mrb[0].mxu0 %v2075
      %v2590 = vpop.f32.mrb[0].mxu0
      %v2591 = vadd.f32 %v2191, %v2590
      %v2592 = vpop.f32.mrb[0].mxu0
      %v2593 = vadd.f32 %v2195, %v2592
      %2594 = vmatprep.mubr.f32.mxu0 %v2243
      %2595 = vmatmul.mubr.f32.gmra.mrb[0].mxu0 %v2076
      %v2596 = vpop.f32.mrb[0].mxu0
      %v2597 = vadd.f32 %v2191, %v2596
      %v2598 = vpop.f32.mrb[0].mxu0
      %v2599 = vadd.f32 %v2195, %v2598
      %2600 = vmatprep.mubr.f32.mxu0 %v2245
      %2601 = vmatmul.mubr.f32.gmra.mrb[0].mxu0 %v2077
      %v2602 = vpop.f32.mrb[0].mxu0
      %v2603 = vadd.f32 %v2191, %v2602
      %v2604 = vpop.f32.mrb[0].mxu0
      %v2605 = vadd.f32 %v2195, %v2604
      %2606 = vmatprep.mubr.f32.mxu0 %v2247
      %2607 = vmatmul.mubr.f32.gmra.mrb[0].mxu0 %v2078
      %v2608 = vpop.f32.mrb[0].mxu0
      %v2609 = vadd.f32 %v2191, %v2608
      %v2610 = vpop.f32.mrb[0].mxu0
      %v2611 = vadd.f32 %v2195, %v2610
      %2612 = vmatprep.mubr.f32.mxu0 %v2249
      %2613 = vmatmul.mubr.f32.gmra.mrb[0].mxu0 %v2079
      %v2614 = vpop.f32.mrb[0].mxu0
      %v2615 = vadd.f32 %v2191, %v2614
      %v2616 = vpop.f32.mrb[0].mxu0
      %v2617 = vadd.f32 %v2195, %v2616
      %2618 = vmatprep.mubr.f32.mxu0 %v2251
      %2619 = vmatmul.mubr.f32.gmra.mrb[0].mxu0 %v2080
      %v2620 = vpop.f32.mrb[0].mxu0
      %v2621 = vadd.f32 %v2191, %v2620
      %v2622 = vpop.f32.mrb[0].mxu0
      %v2623 = vadd.f32 %v2195, %v2622
      %2624 = vmatprep.mubr.f32.mxu0 %v2253
      %2625 = vmatmul.mubr.f32.gmra.mrb[0].mxu0 %v2081
      %v2626 = vpop.f32.mrb[0].mxu0
      %v2627 = vadd.f32 %v2191, %v2626
      %v2628 = vpop.f32.mrb[0].mxu0
      %v2629 = vadd.f32 %v2195, %v2628
      %2630 = vmatprep.mubr.f32.mxu0 %v2255
      %2631 = vmatmul.mubr.f32.gmra.mrb[0].mxu0 %v2082
      %v2632 = vpop.f32.mrb[0].mxu0
      %v2633 = vadd.f32 %v2191, %v2632
      %v2634 = vpop.f32.mrb[0].mxu0
      %v2635 = vadd.f32 %v2195, %v2634
      %2636 = vmatprep.mubr.f32.mxu0 %v2257
      %2637 = vmatmul.mubr.f32.gmra.mrb[0].mxu0 %v2083
      %v2638 = vpop.f32.mrb[0].mxu0
      %v2639 = vadd.f32 %v2191, %v2638
      %v2640 = vpop.f32.mrb[0].mxu0
      %v2641 = vadd.f32 %v2195, %v2640
      %2642 = vmatprep.mubr.f32.mxu0 %v2259
      %2643 = vmatmul.mubr.f32.gmra.mrb[0].mxu0 %v2084
      %v2644 = vpop.f32.mrb[0].mxu0
      %v2645 = vadd.f32 %v2191, %v2644
      %v2646 = vpop.f32.mrb[0].mxu0
      %v2647 = vadd.f32 %v2195, %v2646
      %2648 = vmatprep.mubr.f32.mxu0 %v2261
      %2649 = vmatmul.mubr.f32.gmra.mrb[0].mxu0 %v2085
      %v2650 = vpop.f32.mrb[0].mxu0
      %v2651 = vadd.f32 %v2191, %v2650
      %v2652 = vpop.f32.mrb[0].mxu0
      %v2653 = vadd.f32 %v2195, %v2652
      %2654 = vmatprep.mubr.f32.mxu0 %v2263
      %2655 = vmatmul.mubr.f32.gmra.mrb[0].mxu0 %v2086
      %v2656 = vpop.f32.mrb[0].mxu0
      %v2657 = vadd.f32 %v2191, %v2656
      %v2658 = vpop.f32.mrb[0].mxu0
      %v2659 = vadd.f32 %v2195, %v2658
      %2660 = vmatprep.mubr.f32.mxu0 %v2265
      %2661 = vmatmul.mubr.f32.gmra.mrb[0].mxu0 %v2087
      %v2662 = vpop.f32.mrb[0].mxu0
      %v2663 = vadd.f32 %v2191, %v2662
      %v2664 = vpop.f32.mrb[0].mxu0
      %v2665 = vadd.f32 %v2195, %v2664
      %2666 = vmatprep.mubr.f32.mxu0 %v2267
      %2667 = vmatmul.mubr.f32.gmra.mrb[0].mxu0 %v2088
      %v2668 = vpop.f32.mrb[0].mxu0
      %v2669 = vadd.f32 %v2191, %v2668
      %v2670 = vpop.f32.mrb[0].mxu0
      %v2671 = vadd.f32 %v2195, %v2670
      %2672 = vmatprep.mubr.f32.mxu0 %v2269
      %2673 = vmatmul.mubr.f32.gmra.mrb[0].mxu0 %v2089
      %v2674 = vpop.f32.mrb[0].mxu0
      %v2675 = vadd.f32 %v2191, %v2674
      %v2676 = vpop.f32.mrb[0].mxu0
      %v2677 = vadd.f32 %v2195, %v2676
      %2678 = vmatprep.mubr.f32.mxu0 %v2271
      %2679 = vmatmul.mubr.f32.gmra.mrb[0].mxu0 %v2090
      %v2680 = vpop.f32.mrb[0].mxu0
      %v2681 = vadd.f32 %v2191, %v2680
      %v2682 = vpop.f32.mrb[0].mxu0
      %v2683 = vadd.f32 %v2195, %v2682
      %2684 = vmatprep.mubr.f32.mxu0 %v2273
      %2685 = vmatmul.mubr.f32.gmra.mrb[0].mxu0 %v2091
      %v2686 = vpop.f32.mrb[0].mxu0
      %v2687 = vadd.f32 %v2191, %v2686
      %v2688 = vpop.f32.mrb[0].mxu0
      %v2689 = vadd.f32 %v2195, %v2688
      %2690 = vmatprep.mubr.f32.mxu0 %v2275
      %2691 = vmatmul.mubr.f32.gmra.mrb[0].mxu0 %v2092
      %v2692 = vpop.f32.mrb[0].mxu0
      %v2693 = vadd.f32 %v2191, %v2692
      %v2694 = vpop.f32.mrb[0].mxu0
      %v2695 = vadd.f32 %v2195, %v2694
      %2696 = vmatprep.mubr.f32.mxu0 %v2277
      %2697 = vmatmul.mubr.f32.gmra.mrb[0].mxu0 %v2093
      %v2698 = vpop.f32.mrb[0].mxu0
      %v2699 = vadd.f32 %v2191, %v2698
      %v2700 = vpop.f32.mrb[0].mxu0
      %v2701 = vadd.f32 %v2195, %v2700
      %2702 = vmatprep.mubr.f32.mxu0 %v2279
      %2703 = vmatmul.mubr.f32.gmra.mrb[0].mxu0 %v2094
      %v2704 = vpop.f32.mrb[0].mxu0
      %v2705 = vadd.f32 %v2191, %v2704
      %v2706 = vpop.f32.mrb[0].mxu0
      %v2707 = vadd.f32 %v2195, %v2706
      %2708 = vmatprep.mubr.f32.mxu0 %v2281
      %2709 = vmatmul.mubr.f32.gmra.mrb[0].mxu0 %v2095
      %v2710 = vpop.f32.mrb[0].mxu0
      %v2711 = vadd.f32 %v2191, %v2710
      %v2712 = vpop.f32.mrb[0].mxu0
      %v2713 = vadd.f32 %v2195, %v2712
      %2714 = vmatprep.mubr.f32.mxu0 %v2283
      %2715 = vmatmul.mubr.f32.gmra.mrb[0].mxu0 %v2096
      %v2716 = vpop.f32.mrb[0].mxu0
      %v2717 = vadd.f32 %v2191, %v2716
      %v2718 = vpop.f32.mrb[0].mxu0
      %v2719 = vadd.f32 %v2195, %v2718
      %2720 = vmatprep.mubr.f32.mxu0 %v2285
      %2721 = vmatmul.mubr.f32.gmra.mrb[0].mxu0 %v2097
      %v2722 = vpop.f32.mrb[0].mxu0
      %v2723 = vadd.f32 %v2191, %v2722
      %v2724 = vpop.f32.mrb[0].mxu0
      %v2725 = vadd.f32 %v2195, %v2724
      %2726 = vmatprep.mubr.f32.mxu0 %v2287
      %2727 = vmatmul.mubr.f32.gmra.mrb[0].mxu0 %v2098
      %v2728 = vpop.f32.mrb[0].mxu0
      %v2729 = vadd.f32 %v2191, %v2728
      %v2730 = vpop.f32.mrb[0].mxu0
      %v2731 = vadd.f32 %v2195, %v2730
      %2732 = vmatprep.mubr.f32.mxu0 %v2289
      %2733 = vmatmul.mubr.f32.gmra.mrb[0].mxu0 %v2099
      %v2734 = vpop.f32.mrb[0].mxu0
      %v2735 = vadd.f32 %v2191, %v2734
      %v2736 = vpop.f32.mrb[0].mxu0
      %v2737 = vadd.f32 %v2195, %v2736
      %2738 = vmatprep.mubr.f32.mxu0 %v2291
      %2739 = vmatmul.mubr.f32.gmra.mrb[0].mxu0 %v2100
      %v2740 = vpop.f32.mrb[0].mxu0
      %v2741 = vadd.f32 %v2191, %v2740
      %v2742 = vpop.f32.mrb[0].mxu0
      %v2743 = vadd.f32 %v2195, %v2742
      %2744 = vmatprep.mubr.f32.mxu0 %v2293
      %2745 = vmatmul.mubr.f32.gmra.mrb[0].mxu0 %v2101
      %v2746 = vpop.f32.mrb[0].mxu0
      %v2747 = vadd.f32 %v2191, %v2746
      %v2748 = vpop.f32.mrb[0].mxu0
      %v2749 = vadd.f32 %v2195, %v2748
      %2750 = vmatprep.mubr.f32.mxu0 %v2295
      %2751 = vmatmul.mubr.f32.gmra.mrb[0].mxu0 %v2102
      %v2752 = vpop.f32.mrb[0].mxu0
      %v2753 = vadd.f32 %v2191, %v2752
      %v2754 = vpop.f32.mrb[0].mxu0
      %v2755 = vadd.f32 %v2195, %v2754
      %2756 = vmatprep.mubr.f32.mxu0 %v2297
      %2757 = vmatmul.mubr.f32.gmra.mrb[0].mxu0 %v2103
      %v2758 = vpop.f32.mrb[0].mxu0
      %v2759 = vadd.f32 %v2191, %v2758
      %v2760 = vpop.f32.mrb[0].mxu0
      %v2761 = vadd.f32 %v2195, %v2760
      %2762 = vmatprep.mubr.f32.mxu0 %v2299
      %2763 = vmatmul.mubr.f32.gmra.mrb[0].mxu0 %v2104
      %v2764 = vpop.f32.mrb[0].mxu0
      %v2765 = vadd.f32 %v2191, %v2764
      %v2766 = vpop.f32.mrb[0].mxu0
      %v2767 = vadd.f32 %v2195, %v2766
      %2768 = vmatprep.mubr.f32.mxu0 %v2301
      %2769 = vmatmul.mubr.f32.gmra.mrb[0].mxu0 %v2105
      %v2770 = vpop.f32.mrb[0].mxu0
      %v2771 = vadd.f32 %v2191, %v2770
      %v2772 = vpop.f32.mrb[0].mxu0
      %v2773 = vadd.f32 %v2195, %v2772
      %2774 = vmatprep.mubr.f32.mxu0 %v2303
      %2775 = vmatmul.mubr.f32.gmra.mrb[0].mxu0 %v2106
      %v2776 = vpop.f32.mrb[0].mxu0
      %v2777 = vadd.f32 %v2191, %v2776
      %v2778 = vpop.f32.mrb[0].mxu0
      %v2779 = vadd.f32 %v2195, %v2778
      %2780 = vmatprep.mubr.f32.mxu0 %v2305
      %2781 = vmatmul.mubr.f32.gmra.mrb[0].mxu0 %v2107
      %v2782 = vpop.f32.mrb[0].mxu0
      %v2783 = vadd.f32 %v2191, %v2782
      %v2784 = vpop.f32.mrb[0].mxu0
      %v2785 = vadd.f32 %v2195, %v2784
      %2786 = vmatprep.mubr.f32.mxu0 %v2307
      %2787 = vmatmul.mubr.f32.gmra.mrb[0].mxu0 %v2108
      %v2788 = vpop.f32.mrb[0].mxu0
      %v2789 = vadd.f32 %v2191, %v2788
      %v2790 = vpop.f32.mrb[0].mxu0
      %v2791 = vadd.f32 %v2195, %v2790
      %2792 = vmatprep.mubr.f32.mxu0 %v2309
      %2793 = vmatmul.mubr.f32.gmra.mrb[0].mxu0 %v2109
      %v2794 = vpop.f32.mrb[0].mxu0
      %v2795 = vadd.f32 %v2191, %v2794
      %v2796 = vpop.f32.mrb[0].mxu0
      %v2797 = vadd.f32 %v2195, %v2796
      %2798 = vmatprep.mubr.f32.mxu0 %v2311
      %2799 = vmatmul.mubr.f32.gmra.mrb[0].mxu0 %v2110
      %v2800 = vpop.f32.mrb[0].mxu0
      %v2801 = vadd.f32 %v2191, %v2800
      %v2802 = vpop.f32.mrb[0].mxu0
      %v2803 = vadd.f32 %v2195, %v2802
      %2804 = vmatprep.mubr.f32.mxu0 %v2313
      %2805 = vmatmul.mubr.f32.gmra.mrb[0].mxu0 %v2111
      %v2806 = vpop.f32.mrb[0].mxu0
      %v2807 = vadd.f32 %v2191, %v2806
      %v2808 = vpop.f32.mrb[0].mxu0
      %v2809 = vadd.f32 %v2195, %v2808
      %2810 = vmatprep.mubr.f32.mxu0 %v2315
      %2811 = vmatmul.mubr.f32.gmra.mrb[0].mxu0 %v2112
      %v2812 = vpop.f32.mrb[0].mxu0
      %v2813 = vadd.f32 %v2191, %v2812
      %v2814 = vpop.f32.mrb[0].mxu0
      %v2815 = vadd.f32 %v2195, %v2814
      %2816 = vmatprep.mubr.f32.mxu0 %v2317
      %2817 = vmatmul.mubr.f32.gmra.mrb[0].mxu0 %v2113
      %v2818 = vpop.f32.mrb[0].mxu0
      %v2819 = vadd.f32 %v2191, %v2818
      %v2820 = vpop.f32.mrb[0].mxu0
      %v2821 = vadd.f32 %v2195, %v2820
      %2822 = vmatprep.mubr.f32.mxu0 %v2319
      %2823 = vmatmul.mubr.f32.gmra.mrb[0].mxu0 %v2114
      %v2824 = vpop.f32.mrb[0].mxu0
      %v2825 = vadd.f32 %v2191, %v2824
      %v2826 = vpop.f32.mrb[0].mxu0
      %v2827 = vadd.f32 %v2195, %v2826
      %2828 = vmatprep.mubr.f32.mxu0 %v2321
      %2829 = vmatmul.mubr.f32.gmra.mrb[0].mxu0 %v2115
      %v2830 = vpop.f32.mrb[0].mxu0
      %v2831 = vadd.f32 %v2191, %v2830
      %v2832 = vpop.f32.mrb[0].mxu0
      %v2833 = vadd.f32 %v2195, %v2832
      %2834 = vmatprep.mubr.f32.mxu0 %v2323
      %2835 = vmatmul.mubr.f32.gmra.mrb[0].mxu0 %v2116
      %v2836 = vpop.f32.mrb[0].mxu0
      %v2837 = vadd.f32 %v2191, %v2836
      %v2838 = vpop.f32.mrb[0].mxu0
      %v2839 = vadd.f32 %v2195, %v2838
      %2840 = vmatprep.mubr.f32.mxu0 %v2325
      %2841 = vmatmul.mubr.f32.gmra.mrb[0].mxu0 %v2117
      %v2842 = vpop.f32.mrb[0].mxu0
      %v2843 = vadd.f32 %v2191, %v2842
      %v2844 = vpop.f32.mrb[0].mxu0
      %v2845 = vadd.f32 %v2195, %v2844
      %2846 = vmatprep.mubr.f32.mxu0 %v2327
      %2847 = vmatmul.mubr.f32.gmra.mrb[0].mxu0 %v2118
      %v2848 = vpop.f32.mrb[0].mxu0
      %v2849 = vadd.f32 %v2191, %v2848
      %v2850 = vpop.f32.mrb[0].mxu0
      %v2851 = vadd.f32 %v2195, %v2850
      %2852 = vmatprep.mubr.f32.mxu0 %v2329
      %2853 = vmatmul.mubr.f32.gmra.mrb[0].mxu0 %v2119
      %v2854 = vpop.f32.mrb[0].mxu0
      %v2855 = vadd.f32 %v2191, %v2854
      %v2856 = vpop.f32.mrb[0].mxu0
      %v2857 = vadd.f32 %v2195, %v2856
      %2858 = vmatprep.mubr.f32.mxu0 %v2331
      %2859 = vmatmul.mubr.f32.gmra.mrb[0].mxu0 %v2120
      %v2860 = vpop.f32.mrb[0].mxu0
      %v2861 = vadd.f32 %v2191, %v2860
      %v2862 = vpop.f32.mrb[0].mxu0
      %v2863 = vadd.f32 %v2195, %v2862
      %2864 = vmatprep.mubr.f32.mxu0 %v2333
      %2865 = vmatmul.mubr.f32.gmra.mrb[0].mxu0 %v2121
      %v2866 = vpop.f32.mrb[0].mxu0
      %v2867 = vadd.f32 %v2191, %v2866
      %v2868 = vpop.f32.mrb[0].mxu0
      %v2869 = vadd.f32 %v2195, %v2868
      %2870 = vmatprep.mubr.f32.mxu0 %v2335
      %2871 = vmatmul.mubr.f32.gmra.mrb[0].mxu0 %v2122
      %v2872 = vpop.f32.mrb[0].mxu0
      %v2873 = vadd.f32 %v2191, %v2872
      %v2874 = vpop.f32.mrb[0].mxu0
      %v2875 = vadd.f32 %v2195, %v2874
      %2876 = vmatprep.mubr.f32.mxu0 %v2337
      %2877 = vmatmul.mubr.f32.gmra.mrb[0].mxu0 %v2123
      %v2878 = vpop.f32.mrb[0].mxu0
      %v2879 = vadd.f32 %v2191, %v2878
      %v2880 = vpop.f32.mrb[0].mxu0
      %v2881 = vadd.f32 %v2195, %v2880
      %2882 = vmatprep.mubr.f32.mxu0 %v2339
      %2883 = vmatmul.mubr.f32.gmra.mrb[0].mxu0 %v2124
      %v2884 = vpop.f32.mrb[0].mxu0
      %v2885 = vadd.f32 %v2191, %v2884
      %v2886 = vpop.f32.mrb[0].mxu0
      %v2887 = vadd.f32 %v2195, %v2886
      %2888 = vmatprep.mubr.f32.mxu0 %v2341
      %2889 = vmatmul.mubr.f32.gmra.mrb[0].mxu0 %v2125
      %v2890 = vpop.f32.mrb[0].mxu0
      %v2891 = vadd.f32 %v2191, %v2890
      %v2892 = vpop.f32.mrb[0].mxu0
      %v2893 = vadd.f32 %v2195, %v2892
      %2894 = vmatprep.mubr.f32.mxu0 %v2343
      %2895 = vmatmul.mubr.f32.gmra.mrb[0].mxu0 %v2126
      %v2896 = vpop.f32.mrb[0].mxu0
      %v2897 = vadd.f32 %v2191, %v2896
      %v2898 = vpop.f32.mrb[0].mxu0
      %v2899 = vadd.f32 %v2195, %v2898
      %2900 = vmatprep.mubr.f32.mxu0 %v2345
      %2901 = vmatmul.mubr.f32.gmra.mrb[0].mxu0 %v2127
      %v2902 = vpop.f32.mrb[0].mxu0
      %v2903 = vadd.f32 %v2191, %v2902
      %v2904 = vpop.f32.mrb[0].mxu0
      %v2905 = vadd.f32 %v2195, %v2904
      %2906 = vmatprep.mubr.f32.mxu0 %v2347
      %2907 = vmatmul.mubr.f32.gmra.mrb[0].mxu0 %v2128
      %v2908 = vpop.f32.mrb[0].mxu0
      %v2909 = vadd.f32 %v2191, %v2908
      %v2910 = vpop.f32.mrb[0].mxu0
      %v2911 = vadd.f32 %v2195, %v2910
      %2912 = vmatprep.mubr.f32.mxu0 %v2349
      %2913 = vmatmul.mubr.f32.gmra.mrb[0].mxu0 %v2129
      %v2914 = vpop.f32.mrb[0].mxu0
      %v2915 = vadd.f32 %v2191, %v2914
      %v2916 = vpop.f32.mrb[0].mxu0
      %v2917 = vadd.f32 %v2195, %v2916
      %2918 = vmatprep.mubr.f32.mxu0 %v2351
      %2919 = vmatmul.mubr.f32.gmra.mrb[0].mxu0 %v2130
      %v2920 = vpop.f32.mrb[0].mxu0
      %v2921 = vadd.f32 %v2191, %v2920
      %v2922 = vpop.f32.mrb[0].mxu0
      %v2923 = vadd.f32 %v2195, %v2922
      %2924 = vmatprep.mubr.f32.mxu0 %v2353
      %2925 = vmatmul.mubr.f32.gmra.mrb[0].mxu0 %v2131
      %v2926 = vpop.f32.mrb[0].mxu0
      %v2927 = vadd.f32 %v2191, %v2926
      %v2928 = vpop.f32.mrb[0].mxu0
      %v2929 = vadd.f32 %v2195, %v2928
      %2930 = vmatprep.mubr.f32.mxu0 %v2355
      %2931 = vmatmul.mubr.f32.gmra.mrb[0].mxu0 %v2132
      %v2932 = vpop.f32.mrb[0].mxu0
      %v2933 = vadd.f32 %v2191, %v2932
      %v2934 = vpop.f32.mrb[0].mxu0
      %v2935 = vadd.f32 %v2195, %v2934
      %2936 = vmatprep.mubr.f32.mxu0 %v2357
      %2937 = vmatmul.mubr.f32.gmra.mrb[0].mxu0 %v2133
      %v2938 = vpop.f32.mrb[0].mxu0
      %v2939 = vadd.f32 %v2191, %v2938
      %v2940 = vpop.f32.mrb[0].mxu0
      %v2941 = vadd.f32 %v2195, %v2940
      %2942 = vmatprep.mubr.f32.mxu0 %v2359
      %2943 = vmatmul.mubr.f32.gmra.mrb[0].mxu0 %v2134
      %v2944 = vpop.f32.mrb[0].mxu0
      %v2945 = vadd.f32 %v2191, %v2944
      %v2946 = vpop.f32.mrb[0].mxu0
      %v2947 = vadd.f32 %v2195, %v2946
      %2948 = vmatprep.mubr.f32.mxu0 %v2361
      %2949 = vmatmul.mubr.f32.gmra.mrb[0].mxu0 %v2135
      %v2950 = vpop.f32.mrb[0].mxu0
      %v2951 = vadd.f32 %v2191, %v2950
      %v2952 = vpop.f32.mrb[0].mxu0
      %v2953 = vadd.f32 %v2195, %v2952
      %2954 = vmatprep.mubr.f32.mxu0 %v2363
      %2955 = vmatmul.mubr.f32.gmra.mrb[0].mxu0 %v2136
      %v2956 = vpop.f32.mrb[0].mxu0
      %v2957 = vadd.f32 %v2191, %v2956
      %v2958 = vpop.f32.mrb[0].mxu0
      %v2959 = vadd.f32 %v2195, %v2958
      %2960 = vmatprep.mubr.f32.mxu0 %v2365
      %2961 = vmatmul.mubr.f32.gmra.mrb[0].mxu0 %v2137
      %v2962 = vpop.f32.mrb[0].mxu0
      %v2963 = vadd.f32 %v2191, %v2962
      %v2964 = vpop.f32.mrb[0].mxu0
      %v2965 = vadd.f32 %v2195, %v2964
      %2966 = vmatprep.mubr.f32.mxu0 %v2367
      %2967 = vmatmul.mubr.f32.gmra.mrb[0].mxu0 %v2138
      %v2968 = vpop.f32.mrb[0].mxu0
      %v2969 = vadd.f32 %v2191, %v2968
      %v2970 = vpop.f32.mrb[0].mxu0
      %v2971 = vadd.f32 %v2195, %v2970
      %2972 = vmatprep.mubr.f32.mxu0 %v2369
      %2973 = vmatmul.mubr.f32.gmra.mrb[0].mxu0 %v2139
      %v2974 = vpop.f32.mrb[0].mxu0
      %v2975 = vadd.f32 %v2191, %v2974
      %v2976 = vpop.f32.mrb[0].mxu0
      %v2977 = vadd.f32 %v2195, %v2976
      %2978 = vmatprep.mubr.f32.mxu0 %v2371
      %2979 = vmatmul.mubr.f32.gmra.mrb[0].mxu0 %v2140
      %v2980 = vpop.f32.mrb[0].mxu0
      %v2981 = vadd.f32 %v2191, %v2980
      %v2982 = vpop.f32.mrb[0].mxu0
      %v2983 = vadd.f32 %v2195, %v2982
      %2984 = vmatprep.mubr.f32.mxu0 %v2373
      %2985 = vmatmul.mubr.f32.gmra.mrb[0].mxu0 %v2141
      %v2986 = vpop.f32.mrb[0].mxu0
      %v2987 = vadd.f32 %v2191, %v2986
      %v2988 = vpop.f32.mrb[0].mxu0
      %v2989 = vadd.f32 %v2195, %v2988
      %2990 = vmatprep.mubr.f32.mxu0 %v2375
      %2991 = vmatmul.mubr.f32.gmra.mrb[0].mxu0 %v2142
      %v2992 = vpop.f32.mrb[0].mxu0
      %v2993 = vadd.f32 %v2191, %v2992
      %v2994 = vpop.f32.mrb[0].mxu0
      %v2995 = vadd.f32 %v2195, %v2994
      %2996 = vmatprep.mubr.f32.mxu0 %v2377
      %2997 = vmatmul.mubr.f32.gmra.mrb[0].mxu0 %v2143
      %v2998 = vpop.f32.mrb[0].mxu0
      %v2999 = vadd.f32 %v2191, %v2998
      %v3000 = vpop.f32.mrb[0].mxu0
      %v3001 = vadd.f32 %v2195, %v3000
      %3002 = vmatprep.mubr.f32.mxu0 %v2379
      %3003 = vmatmul.mubr.f32.gmra.mrb[0].mxu0 %v2144
      %v3004 = vpop.f32.mrb[0].mxu0
      %v3005 = vadd.f32 %v2191, %v3004
      %v3006 = vpop.f32.mrb[0].mxu0
      %v3007 = vadd.f32 %v2195, %v3006
      %3008 = vmatprep.mubr.f32.mxu0 %v2381
      %3009 = vmatmul.mubr.f32.gmra.mrb[0].mxu0 %v2145
      %v3010 = vpop.f32.mrb[0].mxu0
      %v3011 = vadd.f32 %v2191, %v3010
      %v3012 = vpop.f32.mrb[0].mxu0
      %v3013 = vadd.f32 %v2195, %v3012
      %3014 = vmatprep.mubr.f32.mxu0 %v2383
      %3015 = vmatmul.mubr.f32.gmra.mrb[0].mxu0 %v2146
      %v3016 = vpop.f32.mrb[0].mxu0
      %v3017 = vadd.f32 %v2191, %v3016
      %v3018 = vpop.f32.mrb[0].mxu0
      %v3019 = vadd.f32 %v2195, %v3018
      %3020 = vmatprep.mubr.f32.mxu0 %v2385
      %3021 = vmatmul.mubr.f32.gmra.mrb[0].mxu0 %v2147
      %v3022 = vpop.f32.mrb[0].mxu0
      %v3023 = vadd.f32 %v2191, %v3022
      %v3024 = vpop.f32.mrb[0].mxu0
      %v3025 = vadd.f32 %v2195, %v3024
      %3026 = vmatprep.mubr.f32.mxu0 %v2387
      %3027 = vmatmul.mubr.f32.gmra.mrb[0].mxu0 %v2148
      %v3028 = vpop.f32.mrb[0].mxu0
      %v3029 = vadd.f32 %v2191, %v3028
      %v3030 = vpop.f32.mrb[0].mxu0
      %v3031 = vadd.f32 %v2195, %v3030
      %3032 = vmatprep.mubr.f32.mxu0 %v2389
      %3033 = vmatmul.mubr.f32.gmra.mrb[0].mxu0 %v2149
      %v3034 = vpop.f32.mrb[0].mxu0
      %v3035 = vadd.f32 %v2191, %v3034
      %v3036 = vpop.f32.mrb[0].mxu0
      %v3037 = vadd.f32 %v2195, %v3036
      %3038 = vdwg.mxu0
      %v3039 = vmax.f32 %v2465, 0.0
      %v3040 = vmax.f32 %v2467, 0.0
      %v3041 = vmax.f32 %v2471, 0.0
      %v3042 = vmax.f32 %v2473, 0.0
      %v3043 = vmax.f32 %v2477, 0.0
      %v3044 = vmax.f32 %v2479, 0.0
      %v3045 = vmax.f32 %v2483, 0.0
      %v3046 = vmax.f32 %v2485, 0.0
      %v3047 = vmax.f32 %v2489, 0.0
      %v3048 = vmax.f32 %v2491, 0.0
      %v3049 = vmax.f32 %v2495, 0.0
      %v3050 = vmax.f32 %v2497, 0.0
      %v3051 = vmax.f32 %v2501, 0.0
      %v3052 = vmax.f32 %v2503, 0.0
      %v3053 = vmax.f32 %v2507, 0.0
      %v3054 = vmax.f32 %v2509, 0.0
      %v3055 = vmax.f32 %v2513, 0.0
      %v3056 = vmax.f32 %v2515, 0.0
      %v3057 = vmax.f32 %v2519, 0.0
      %v3058 = vmax.f32 %v2521, 0.0
      %v3059 = vmax.f32 %v2525, 0.0
      %v3060 = vmax.f32 %v2527, 0.0
      %v3061 = vmax.f32 %v2531, 0.0
      %v3062 = vmax.f32 %v2533, 0.0
      %v3063 = vmax.f32 %v2537, 0.0
      %v3064 = vmax.f32 %v2539, 0.0
      %v3065 = vmax.f32 %v2543, 0.0
      %v3066 = vmax.f32 %v2545, 0.0
      %v3067 = vmax.f32 %v2549, 0.0
      %v3068 = vmax.f32 %v2551, 0.0
      %v3069 = vmax.f32 %v2555, 0.0
      %v3070 = vmax.f32 %v2557, 0.0
      %v3071 = vmax.f32 %v2561, 0.0
      %v3072 = vmax.f32 %v2563, 0.0
      %v3073 = vmax.f32 %v2567, 0.0
      %v3074 = vmax.f32 %v2569, 0.0
      %v3075 = vmax.f32 %v2573, 0.0
      %v3076 = vmax.f32 %v2575, 0.0
      %v3077 = vmax.f32 %v2579, 0.0
      %v3078 = vmax.f32 %v2581, 0.0
      %v3079 = vmax.f32 %v2585, 0.0
      %v3080 = vmax.f32 %v2587, 0.0
      %v3081 = vmax.f32 %v2591, 0.0
      %v3082 = vmax.f32 %v2593, 0.0
      %v3083 = vmax.f32 %v2597, 0.0
      %v3084 = vmax.f32 %v2599, 0.0
      %v3085 = vmax.f32 %v2603, 0.0
      %v3086 = vmax.f32 %v2605, 0.0
      %v3087 = vmax.f32 %v2609, 0.0
      %v3088 = vmax.f32 %v2611, 0.0
      %v3089 = vmax.f32 %v2615, 0.0
      %v3090 = vmax.f32 %v2617, 0.0
      %v3091 = vmax.f32 %v2621, 0.0
      %v3092 = vmax.f32 %v2623, 0.0
      %v3093 = vmax.f32 %v2627, 0.0
      %v3094 = vmax.f32 %v2629, 0.0
      %v3095 = vmax.f32 %v2633, 0.0
      %v3096 = vmax.f32 %v2635, 0.0
      %v3097 = vmax.f32 %v2639, 0.0
      %v3098 = vmax.f32 %v2641, 0.0
      %v3099 = vmax.f32 %v2645, 0.0
      %v3100 = vmax.f32 %v2647, 0.0
      %v3101 = vmax.f32 %v2651, 0.0
      %v3102 = vmax.f32 %v2653, 0.0
      %v3103 = vmax.f32 %v2657, 0.0
      %v3104 = vmax.f32 %v2659, 0.0
      %v3105 = vmax.f32 %v2663, 0.0
      %v3106 = vmax.f32 %v2665, 0.0
      %v3107 = vmax.f32 %v2669, 0.0
      %v3108 = vmax.f32 %v2671, 0.0
      %v3109 = vmax.f32 %v2675, 0.0
      %v3110 = vmax.f32 %v2677, 0.0
      %v3111 = vmax.f32 %v2681, 0.0
      %v3112 = vmax.f32 %v2683, 0.0
      %v3113 = vmax.f32 %v2687, 0.0
      %v3114 = vmax.f32 %v2689, 0.0
      %v3115 = vmax.f32 %v2693, 0.0
      %v3116 = vmax.f32 %v2695, 0.0
      %v3117 = vmax.f32 %v2699, 0.0
      %v3118 = vmax.f32 %v2701, 0.0
      %v3119 = vmax.f32 %v2705, 0.0
      %v3120 = vmax.f32 %v2707, 0.0
      %v3121 = vmax.f32 %v2711, 0.0
      %v3122 = vmax.f32 %v2713, 0.0
      %v3123 = vmax.f32 %v2717, 0.0
      %v3124 = vmax.f32 %v2719, 0.0
      %v3125 = vmax.f32 %v2723, 0.0
      %v3126 = vmax.f32 %v2725, 0.0
      %v3127 = vmax.f32 %v2729, 0.0
      %v3128 = vmax.f32 %v2731, 0.0
      %v3129 = vmax.f32 %v2735, 0.0
      %v3130 = vmax.f32 %v2737, 0.0
      %v3131 = vmax.f32 %v2741, 0.0
      %v3132 = vmax.f32 %v2743, 0.0
      %v3133 = vmax.f32 %v2747, 0.0
      %v3134 = vmax.f32 %v2749, 0.0
      %v3135 = vmax.f32 %v2753, 0.0
      %v3136 = vmax.f32 %v2755, 0.0
      %v3137 = vmax.f32 %v2759, 0.0
      %v3138 = vmax.f32 %v2761, 0.0
      %v3139 = vmax.f32 %v2765, 0.0
      %v3140 = vmax.f32 %v2767, 0.0
      %v3141 = vmax.f32 %v2771, 0.0
      %v3142 = vmax.f32 %v2773, 0.0
      %v3143 = vmax.f32 %v2777, 0.0
      %v3144 = vmax.f32 %v2779, 0.0
      %v3145 = vmax.f32 %v2783, 0.0
      %v3146 = vmax.f32 %v2785, 0.0
      %v3147 = vmax.f32 %v2789, 0.0
      %v3148 = vmax.f32 %v2791, 0.0
      %v3149 = vmax.f32 %v2795, 0.0
      %v3150 = vmax.f32 %v2797, 0.0
      %v3151 = vmax.f32 %v2801, 0.0
      %v3152 = vmax.f32 %v2803, 0.0
      %v3153 = vmax.f32 %v2807, 0.0
      %v3154 = vmax.f32 %v2809, 0.0
      %v3155 = vmax.f32 %v2813, 0.0
      %v3156 = vmax.f32 %v2815, 0.0
      %v3157 = vmax.f32 %v2819, 0.0
      %v3158 = vmax.f32 %v2821, 0.0
      %v3159 = vmax.f32 %v2825, 0.0
      %v3160 = vmax.f32 %v2827, 0.0
      %v3161 = vmax.f32 %v2831, 0.0
      %v3162 = vmax.f32 %v2833, 0.0
      %v3163 = vmax.f32 %v2837, 0.0
      %v3164 = vmax.f32 %v2839, 0.0
      %v3165 = vmax.f32 %v2843, 0.0
      %v3166 = vmax.f32 %v2845, 0.0
      %v3167 = vmax.f32 %v2849, 0.0
      %v3168 = vmax.f32 %v2851, 0.0
      %v3169 = vmax.f32 %v2855, 0.0
      %v3170 = vmax.f32 %v2857, 0.0
      %v3171 = vmax.f32 %v2861, 0.0
      %v3172 = vmax.f32 %v2863, 0.0
      %v3173 = vmax.f32 %v2867, 0.0
      %v3174 = vmax.f32 %v2869, 0.0
      %v3175 = vmax.f32 %v2873, 0.0
      %v3176 = vmax.f32 %v2875, 0.0
      %v3177 = vmax.f32 %v2879, 0.0
      %v3178 = vmax.f32 %v2881, 0.0
      %v3179 = vmax.f32 %v2885, 0.0
      %v3180 = vmax.f32 %v2887, 0.0
      %v3181 = vmax.f32 %v2891, 0.0
      %v3182 = vmax.f32 %v2893, 0.0
      %v3183 = vmax.f32 %v2897, 0.0
      %v3184 = vmax.f32 %v2899, 0.0
      %v3185 = vmax.f32 %v2903, 0.0
      %v3186 = vmax.f32 %v2905, 0.0
      %v3187 = vmax.f32 %v2909, 0.0
      %v3188 = vmax.f32 %v2911, 0.0
      %v3189 = vmax.f32 %v2915, 0.0
      %v3190 = vmax.f32 %v2917, 0.0
      %v3191 = vmax.f32 %v2921, 0.0
      %v3192 = vmax.f32 %v2923, 0.0
      %v3193 = vmax.f32 %v2927, 0.0
      %v3194 = vmax.f32 %v2929, 0.0
      %v3195 = vmax.f32 %v2933, 0.0
      %v3196 = vmax.f32 %v2935, 0.0
      %v3197 = vmax.f32 %v2939, 0.0
      %v3198 = vmax.f32 %v2941, 0.0
      %v3199 = vmax.f32 %v2945, 0.0
      %v3200 = vmax.f32 %v2947, 0.0
      %v3201 = vmax.f32 %v2951, 0.0
      %v3202 = vmax.f32 %v2953, 0.0
      %v3203 = vmax.f32 %v2957, 0.0
      %v3204 = vmax.f32 %v2959, 0.0
      %v3205 = vmax.f32 %v2963, 0.0
      %v3206 = vmax.f32 %v2965, 0.0
      %v3207 = vmax.f32 %v2969, 0.0
      %v3208 = vmax.f32 %v2971, 0.0
      %v3209 = vmax.f32 %v2975, 0.0
      %v3210 = vmax.f32 %v2977, 0.0
      %v3211 = vmax.f32 %v2981, 0.0
      %v3212 = vmax.f32 %v2983, 0.0
      %v3213 = vmax.f32 %v2987, 0.0
      %v3214 = vmax.f32 %v2989, 0.0
      %v3215 = vmax.f32 %v2993, 0.0
      %v3216 = vmax.f32 %v2995, 0.0
      %v3217 = vmax.f32 %v2999, 0.0
      %v3218 = vmax.f32 %v3001, 0.0
      %v3219 = vmax.f32 %v3005, 0.0
      %v3220 = vmax.f32 %v3007, 0.0
      %v3221 = vmax.f32 %v3011, 0.0
      %v3222 = vmax.f32 %v3013, 0.0
      %v3223 = vmax.f32 %v3017, 0.0
      %v3224 = vmax.f32 %v3019, 0.0
      %v3225 = vmax.f32 %v3023, 0.0
      %v3226 = vmax.f32 %v3025, 0.0
      %v3227 = vmax.f32 %v3029, 0.0
      %v3228 = vmax.f32 %v3031, 0.0
      %v3229 = vmax.f32 %v3035, 0.0
      %v3230 = vmax.f32 %v3037, 0.0
      %v3231 = vmax.f32 %v3039, %v3047
      %v3232 = vmax.f32 %v3040, %v3048
      %v3233 = vmax.f32 %v3041, %v3049
      %v3234 = vmax.f32 %v3042, %v3050
      %v3235 = vmax.f32 %v3043, %v3051
      %v3236 = vmax.f32 %v3044, %v3052
      %v3237 = vmax.f32 %v3045, %v3053
      %v3238 = vmax.f32 %v3046, %v3054
      %v3239 = vmax.f32 %v3055, %v3063
      %v3240 = vmax.f32 %v3056, %v3064
      %v3241 = vmax.f32 %v3057, %v3065
      %v3242 = vmax.f32 %v3058, %v3066
      %v3243 = vmax.f32 %v3059, %v3067
      %v3244 = vmax.f32 %v3060, %v3068
      %v3245 = vmax.f32 %v3061, %v3069
      %v3246 = vmax.f32 %v3062, %v3070
      %v3247 = vmax.f32 %v3071, %v3079
      %v3248 = vmax.f32 %v3072, %v3080
      %v3249 = vmax.f32 %v3073, %v3081
      %v3250 = vmax.f32 %v3074, %v3082
      %v3251 = vmax.f32 %v3075, %v3083
      %v3252 = vmax.f32 %v3076, %v3084
      %v3253 = vmax.f32 %v3077, %v3085
      %v3254 = vmax.f32 %v3078, %v3086
      %v3255 = vmax.f32 %v3087, %v3095
      %v3256 = vmax.f32 %v3088, %v3096
      %v3257 = vmax.f32 %v3089, %v3097
      %v3258 = vmax.f32 %v3090, %v3098
      %v3259 = vmax.f32 %v3091, %v3099
      %v3260 = vmax.f32 %v3092, %v3100
      %v3261 = vmax.f32 %v3093, %v3101
      %v3262 = vmax.f32 %v3094, %v3102
      %v3263 = vmax.f32 %v3103, %v3111
      %v3264 = vmax.f32 %v3104, %v3112
      %v3265 = vmax.f32 %v3105, %v3113
      %v3266 = vmax.f32 %v3106, %v3114
      %v3267 = vmax.f32 %v3107, %v3115
      %v3268 = vmax.f32 %v3108, %v3116
      %v3269 = vmax.f32 %v3109, %v3117
      %v3270 = vmax.f32 %v3110, %v3118
      %v3271 = vmax.f32 %v3119, %v3127
      %v3272 = vmax.f32 %v3120, %v3128
      %v3273 = vmax.f32 %v3121, %v3129
      %v3274 = vmax.f32 %v3122, %v3130
      %v3275 = vmax.f32 %v3123, %v3131
      %v3276 = vmax.f32 %v3124, %v3132
      %v3277 = vmax.f32 %v3125, %v3133
      %v3278 = vmax.f32 %v3126, %v3134
      %v3279 = vmax.f32 %v3135, %v3143
      %v3280 = vmax.f32 %v3136, %v3144
      %v3281 = vmax.f32 %v3137, %v3145
      %v3282 = vmax.f32 %v3138, %v3146
      %v3283 = vmax.f32 %v3139, %v3147
      %v3284 = vmax.f32 %v3140, %v3148
      %v3285 = vmax.f32 %v3141, %v3149
      %v3286 = vmax.f32 %v3142, %v3150
      %v3287 = vmax.f32 %v3151, %v3159
      %v3288 = vmax.f32 %v3152, %v3160
      %v3289 = vmax.f32 %v3153, %v3161
      %v3290 = vmax.f32 %v3154, %v3162
      %v3291 = vmax.f32 %v3155, %v3163
      %v3292 = vmax.f32 %v3156, %v3164
      %v3293 = vmax.f32 %v3157, %v3165
      %v3294 = vmax.f32 %v3158, %v3166
      %v3295 = vmax.f32 %v3167, %v3175
      %v3296 = vmax.f32 %v3168, %v3176
      %v3297 = vmax.f32 %v3169, %v3177
      %v3298 = vmax.f32 %v3170, %v3178
      %v3299 = vmax.f32 %v3171, %v3179
      %v3300 = vmax.f32 %v3172, %v3180
      %v3301 = vmax.f32 %v3173, %v3181
      %v3302 = vmax.f32 %v3174, %v3182
      %v3303 = vmax.f32 %v3183, %v3191
      %v3304 = vmax.f32 %v3184, %v3192
      %v3305 = vmax.f32 %v3185, %v3193
      %v3306 = vmax.f32 %v3186, %v3194
      %v3307 = vmax.f32 %v3187, %v3195
      %v3308 = vmax.f32 %v3188, %v3196
      %v3309 = vmax.f32 %v3189, %v3197
      %v3310 = vmax.f32 %v3190, %v3198
      %v3311 = vmax.f32 %v3199, %v3207
      %v3312 = vmax.f32 %v3200, %v3208
      %v3313 = vmax.f32 %v3201, %v3209
      %v3314 = vmax.f32 %v3202, %v3210
      %v3315 = vmax.f32 %v3203, %v3211
      %v3316 = vmax.f32 %v3204, %v3212
      %v3317 = vmax.f32 %v3205, %v3213
      %v3318 = vmax.f32 %v3206, %v3214
      %v3319 = vmax.f32 %v3215, %v3223
      %v3320 = vmax.f32 %v3216, %v3224
      %v3321 = vmax.f32 %v3217, %v3225
      %v3322 = vmax.f32 %v3218, %v3226
      %v3323 = vmax.f32 %v3219, %v3227
      %v3324 = vmax.f32 %v3220, %v3228
      %v3325 = vmax.f32 %v3221, %v3229
      %v3326 = vmax.f32 %v3222, %v3230
      %3423 = vrot.lane.b32.xlu0 %v3231, 122
      %v3424 = vpop.permute.xlu0 %3423
      %3425 = vrot.lane.b32.xlu0 %v3232, 122
      %v3426 = vpop.permute.xlu0 %3425
      %3427 = vrot.lane.b32.xlu0 %v3233, 122
      %v3428 = vpop.permute.xlu0 %3427
      %3429 = vrot.lane.b32.xlu0 %v3234, 122
      %v3430 = vpop.permute.xlu0 %3429
      %3431 = vrot.lane.b32.xlu0 %v3235, 122
      %v3432 = vpop.permute.xlu0 %3431
      %3433 = vrot.lane.b32.xlu0 %v3236, 122
      %v3434 = vpop.permute.xlu0 %3433
      %3435 = vrot.lane.b32.xlu0 %v3237, 122
      %v3436 = vpop.permute.xlu0 %3435
      %3437 = vrot.lane.b32.xlu0 %v3238, 122
      %v3438 = vpop.permute.xlu0 %3437
      %3439 = vrot.lane.b32.xlu0 %v3239, 122
      %v3440 = vpop.permute.xlu0 %3439
      %3441 = vrot.lane.b32.xlu0 %v3240, 122
      %v3442 = vpop.permute.xlu0 %3441
      %3443 = vrot.lane.b32.xlu0 %v3241, 122
      %v3444 = vpop.permute.xlu0 %3443
      %3445 = vrot.lane.b32.xlu0 %v3242, 122
      %v3446 = vpop.permute.xlu0 %3445
      %3447 = vrot.lane.b32.xlu0 %v3243, 122
      %v3448 = vpop.permute.xlu0 %3447
      %3449 = vrot.lane.b32.xlu0 %v3244, 122
      %v3450 = vpop.permute.xlu0 %3449
      %3451 = vrot.lane.b32.xlu0 %v3245, 122
      %v3452 = vpop.permute.xlu0 %3451
      %3453 = vrot.lane.b32.xlu0 %v3246, 122
      %v3454 = vpop.permute.xlu0 %3453
      %3455 = vrot.lane.b32.xlu0 %v3247, 122
      %v3456 = vpop.permute.xlu0 %3455
      %3457 = vrot.lane.b32.xlu0 %v3248, 122
      %v3458 = vpop.permute.xlu0 %3457
      %3459 = vrot.lane.b32.xlu0 %v3249, 122
      %v3460 = vpop.permute.xlu0 %3459
      %3461 = vrot.lane.b32.xlu0 %v3250, 122
      %v3462 = vpop.permute.xlu0 %3461
      %3463 = vrot.lane.b32.xlu0 %v3251, 122
      %v3464 = vpop.permute.xlu0 %3463
      %3465 = vrot.lane.b32.xlu0 %v3252, 122
      %v3466 = vpop.permute.xlu0 %3465
      %3467 = vrot.lane.b32.xlu0 %v3253, 122
      %v3468 = vpop.permute.xlu0 %3467
      %3469 = vrot.lane.b32.xlu0 %v3254, 122
      %v3470 = vpop.permute.xlu0 %3469
      %3471 = vrot.lane.b32.xlu0 %v3255, 122
      %v3472 = vpop.permute.xlu0 %3471
      %3473 = vrot.lane.b32.xlu0 %v3256, 122
      %v3474 = vpop.permute.xlu0 %3473
      %3475 = vrot.lane.b32.xlu0 %v3257, 122
      %v3476 = vpop.permute.xlu0 %3475
      %3477 = vrot.lane.b32.xlu0 %v3258, 122
      %v3478 = vpop.permute.xlu0 %3477
      %3479 = vrot.lane.b32.xlu0 %v3259, 122
      %v3480 = vpop.permute.xlu0 %3479
      %3481 = vrot.lane.b32.xlu0 %v3260, 122
      %v3482 = vpop.permute.xlu0 %3481
      %3483 = vrot.lane.b32.xlu0 %v3261, 122
      %v3484 = vpop.permute.xlu0 %3483
      %3485 = vrot.lane.b32.xlu0 %v3262, 122
      %v3486 = vpop.permute.xlu0 %3485
      %3487 = vrot.lane.b32.xlu0 %v3263, 122
      %v3488 = vpop.permute.xlu0 %3487
      %3489 = vrot.lane.b32.xlu0 %v3264, 122
      %v3490 = vpop.permute.xlu0 %3489
      %3491 = vrot.lane.b32.xlu0 %v3265, 122
      %v3492 = vpop.permute.xlu0 %3491
      %3493 = vrot.lane.b32.xlu0 %v3266, 122
      %v3494 = vpop.permute.xlu0 %3493
      %3495 = vrot.lane.b32.xlu0 %v3267, 122
      %v3496 = vpop.permute.xlu0 %3495
      %3497 = vrot.lane.b32.xlu0 %v3268, 122
      %v3498 = vpop.permute.xlu0 %3497
      %3499 = vrot.lane.b32.xlu0 %v3269, 122
      %v3500 = vpop.permute.xlu0 %3499
      %3501 = vrot.lane.b32.xlu0 %v3270, 122
      %v3502 = vpop.permute.xlu0 %3501
      %3503 = vrot.lane.b32.xlu0 %v3271, 122
      %v3504 = vpop.permute.xlu0 %3503
      %3505 = vrot.lane.b32.xlu0 %v3272, 122
      %v3506 = vpop.permute.xlu0 %3505
      %3507 = vrot.lane.b32.xlu0 %v3273, 122
      %v3508 = vpop.permute.xlu0 %3507
      %3509 = vrot.lane.b32.xlu0 %v3274, 122
      %v3510 = vpop.permute.xlu0 %3509
      %3511 = vrot.lane.b32.xlu0 %v3275, 122
      %v3512 = vpop.permute.xlu0 %3511
      %3513 = vrot.lane.b32.xlu0 %v3276, 122
      %v3514 = vpop.permute.xlu0 %3513
      %3515 = vrot.lane.b32.xlu0 %v3277, 122
      %v3516 = vpop.permute.xlu0 %3515
      %3517 = vrot.lane.b32.xlu0 %v3278, 122
      %v3518 = vpop.permute.xlu0 %3517
      %3519 = vrot.lane.b32.xlu0 %v3279, 122
      %v3520 = vpop.permute.xlu0 %3519
      %3521 = vrot.lane.b32.xlu0 %v3280, 122
      %v3522 = vpop.permute.xlu0 %3521
      %3523 = vrot.lane.b32.xlu0 %v3281, 122
      %v3524 = vpop.permute.xlu0 %3523
      %3525 = vrot.lane.b32.xlu0 %v3282, 122
      %v3526 = vpop.permute.xlu0 %3525
      %3527 = vrot.lane.b32.xlu0 %v3283, 122
      %v3528 = vpop.permute.xlu0 %3527
      %3529 = vrot.lane.b32.xlu0 %v3284, 122
      %v3530 = vpop.permute.xlu0 %3529
      %3531 = vrot.lane.b32.xlu0 %v3285, 122
      %v3532 = vpop.permute.xlu0 %3531
      %3533 = vrot.lane.b32.xlu0 %v3286, 122
      %v3534 = vpop.permute.xlu0 %3533
      %3535 = vrot.lane.b32.xlu0 %v3287, 122
      %v3536 = vpop.permute.xlu0 %3535
      %3537 = vrot.lane.b32.xlu0 %v3288, 122
      %v3538 = vpop.permute.xlu0 %3537
      %3539 = vrot.lane.b32.xlu0 %v3289, 122
      %v3540 = vpop.permute.xlu0 %3539
      %3541 = vrot.lane.b32.xlu0 %v3290, 122
      %v3542 = vpop.permute.xlu0 %3541
      %3543 = vrot.lane.b32.xlu0 %v3291, 122
      %v3544 = vpop.permute.xlu0 %3543
      %3545 = vrot.lane.b32.xlu0 %v3292, 122
      %v3546 = vpop.permute.xlu0 %3545
      %3547 = vrot.lane.b32.xlu0 %v3293, 122
      %v3548 = vpop.permute.xlu0 %3547
      %3549 = vrot.lane.b32.xlu0 %v3294, 122
      %v3550 = vpop.permute.xlu0 %3549
      %3551 = vrot.lane.b32.xlu0 %v3295, 122
      %v3552 = vpop.permute.xlu0 %3551
      %3553 = vrot.lane.b32.xlu0 %v3296, 122
      %v3554 = vpop.permute.xlu0 %3553
      %3555 = vrot.lane.b32.xlu0 %v3297, 122
      %v3556 = vpop.permute.xlu0 %3555
      %3557 = vrot.lane.b32.xlu0 %v3298, 122
      %v3558 = vpop.permute.xlu0 %3557
      %3559 = vrot.lane.b32.xlu0 %v3299, 122
      %v3560 = vpop.permute.xlu0 %3559
      %3561 = vrot.lane.b32.xlu0 %v3300, 122
      %v3562 = vpop.permute.xlu0 %3561
      %3563 = vrot.lane.b32.xlu0 %v3301, 122
      %v3564 = vpop.permute.xlu0 %3563
      %3565 = vrot.lane.b32.xlu0 %v3302, 122
      %v3566 = vpop.permute.xlu0 %3565
      %3567 = vrot.lane.b32.xlu0 %v3303, 122
      %v3568 = vpop.permute.xlu0 %3567
      %3569 = vrot.lane.b32.xlu0 %v3304, 122
      %v3570 = vpop.permute.xlu0 %3569
      %3571 = vrot.lane.b32.xlu0 %v3305, 122
      %v3572 = vpop.permute.xlu0 %3571
      %3573 = vrot.lane.b32.xlu0 %v3306, 122
      %v3574 = vpop.permute.xlu0 %3573
      %3575 = vrot.lane.b32.xlu0 %v3307, 122
      %v3576 = vpop.permute.xlu0 %3575
      %3577 = vrot.lane.b32.xlu0 %v3308, 122
      %v3578 = vpop.permute.xlu0 %3577
      %3579 = vrot.lane.b32.xlu0 %v3309, 122
      %v3580 = vpop.permute.xlu0 %3579
      %3581 = vrot.lane.b32.xlu0 %v3310, 122
      %v3582 = vpop.permute.xlu0 %3581
      %3583 = vrot.lane.b32.xlu0 %v3311, 122
      %v3584 = vpop.permute.xlu0 %3583
      %3585 = vrot.lane.b32.xlu0 %v3312, 122
      %v3586 = vpop.permute.xlu0 %3585
      %3587 = vrot.lane.b32.xlu0 %v3313, 122
      %v3588 = vpop.permute.xlu0 %3587
      %3589 = vrot.lane.b32.xlu0 %v3314, 122
      %v3590 = vpop.permute.xlu0 %3589
      %3591 = vrot.lane.b32.xlu0 %v3315, 122
      %v3592 = vpop.permute.xlu0 %3591
      %3593 = vrot.lane.b32.xlu0 %v3316, 122
      %v3594 = vpop.permute.xlu0 %3593
      %3595 = vrot.lane.b32.xlu0 %v3317, 122
      %v3596 = vpop.permute.xlu0 %3595
      %3597 = vrot.lane.b32.xlu0 %v3318, 122
      %v3598 = vpop.permute.xlu0 %3597
      %3599 = vrot.lane.b32.xlu0 %v3319, 122
      %v3600 = vpop.permute.xlu0 %3599
      %3601 = vrot.lane.b32.xlu0 %v3320, 122
      %v3602 = vpop.permute.xlu0 %3601
      %3603 = vrot.lane.b32.xlu0 %v3321, 122
      %v3604 = vpop.permute.xlu0 %3603
      %3605 = vrot.lane.b32.xlu0 %v3322, 122
      %v3606 = vpop.permute.xlu0 %3605
      %3607 = vrot.lane.b32.xlu0 %v3323, 122
      %v3608 = vpop.permute.xlu0 %3607
      %3609 = vrot.lane.b32.xlu0 %v3324, 122
      %v3610 = vpop.permute.xlu0 %3609
      %3611 = vrot.lane.b32.xlu0 %v3325, 122
      %v3612 = vpop.permute.xlu0 %3611
      %3613 = vrot.lane.b32.xlu0 %v3326, 122
      %v3614 = vpop.permute.xlu0 %3613
      %vm3615 = vcmask 998400
      %v3616 = vsel %vm3615, %v3424, %v3426
      %v3617 = vsel %vm3615, %v3428, %v3430
      %v3618 = vsel %vm3615, %v3432, %v3434
      %v3619 = vsel %vm3615, %v3436, %v3438
      %v3620 = vsel %vm3615, %v3440, %v3442
      %v3621 = vsel %vm3615, %v3444, %v3446
      %v3622 = vsel %vm3615, %v3448, %v3450
      %v3623 = vsel %vm3615, %v3452, %v3454
      %v3624 = vsel %vm3615, %v3456, %v3458
      %v3625 = vsel %vm3615, %v3460, %v3462
      %v3626 = vsel %vm3615, %v3464, %v3466
      %v3627 = vsel %vm3615, %v3468, %v3470
      %v3628 = vsel %vm3615, %v3472, %v3474
      %v3629 = vsel %vm3615, %v3476, %v3478
      %v3630 = vsel %vm3615, %v3480, %v3482
      %v3631 = vsel %vm3615, %v3484, %v3486
      %v3632 = vsel %vm3615, %v3488, %v3490
      %v3633 = vsel %vm3615, %v3492, %v3494
      %v3634 = vsel %vm3615, %v3496, %v3498
      %v3635 = vsel %vm3615, %v3500, %v3502
      %v3636 = vsel %vm3615, %v3504, %v3506
      %v3637 = vsel %vm3615, %v3508, %v3510
      %v3638 = vsel %vm3615, %v3512, %v3514
      %v3639 = vsel %vm3615, %v3516, %v3518
      %v3640 = vsel %vm3615, %v3520, %v3522
      %v3641 = vsel %vm3615, %v3524, %v3526
      %v3642 = vsel %vm3615, %v3528, %v3530
      %v3643 = vsel %vm3615, %v3532, %v3534
      %v3644 = vsel %vm3615, %v3536, %v3538
      %v3645 = vsel %vm3615, %v3540, %v3542
      %v3646 = vsel %vm3615, %v3544, %v3546
      %v3647 = vsel %vm3615, %v3548, %v3550
      %v3648 = vsel %vm3615, %v3552, %v3554
      %v3649 = vsel %vm3615, %v3556, %v3558
      %v3650 = vsel %vm3615, %v3560, %v3562
      %v3651 = vsel %vm3615, %v3564, %v3566
      %v3652 = vsel %vm3615, %v3568, %v3570
      %v3653 = vsel %vm3615, %v3572, %v3574
      %v3654 = vsel %vm3615, %v3576, %v3578
      %v3655 = vsel %vm3615, %v3580, %v3582
      %v3656 = vsel %vm3615, %v3584, %v3586
      %v3657 = vsel %vm3615, %v3588, %v3590
      %v3658 = vsel %vm3615, %v3592, %v3594
      %v3659 = vsel %vm3615, %v3596, %v3598
      %v3660 = vsel %vm3615, %v3600, %v3602
      %v3661 = vsel %vm3615, %v3604, %v3606
      %v3662 = vsel %vm3615, %v3608, %v3610
      %v3663 = vsel %vm3615, %v3612, %v3614
      %v3760 = vmax.f32 %v3231, %v3616
      %v3761 = vmax.f32 %v3232, %v3426
      %v3762 = vmax.f32 %v3233, %v3617
      %v3763 = vmax.f32 %v3234, %v3430
      %v3764 = vmax.f32 %v3235, %v3618
      %v3765 = vmax.f32 %v3236, %v3434
      %v3766 = vmax.f32 %v3237, %v3619
      %v3767 = vmax.f32 %v3238, %v3438
      %v3768 = vmax.f32 %v3239, %v3620
      %v3769 = vmax.f32 %v3240, %v3442
      %v3770 = vmax.f32 %v3241, %v3621
      %v3771 = vmax.f32 %v3242, %v3446
      %v3772 = vmax.f32 %v3243, %v3622
      %v3773 = vmax.f32 %v3244, %v3450
      %v3774 = vmax.f32 %v3245, %v3623
      %v3775 = vmax.f32 %v3246, %v3454
      %v3776 = vmax.f32 %v3247, %v3624
      %v3777 = vmax.f32 %v3248, %v3458
      %v3778 = vmax.f32 %v3249, %v3625
      %v3779 = vmax.f32 %v3250, %v3462
      %v3780 = vmax.f32 %v3251, %v3626
      %v3781 = vmax.f32 %v3252, %v3466
      %v3782 = vmax.f32 %v3253, %v3627
      %v3783 = vmax.f32 %v3254, %v3470
      %v3784 = vmax.f32 %v3255, %v3628
      %v3785 = vmax.f32 %v3256, %v3474
      %v3786 = vmax.f32 %v3257, %v3629
      %v3787 = vmax.f32 %v3258, %v3478
      %v3788 = vmax.f32 %v3259, %v3630
      %v3789 = vmax.f32 %v3260, %v3482
      %v3790 = vmax.f32 %v3261, %v3631
      %v3791 = vmax.f32 %v3262, %v3486
      %v3792 = vmax.f32 %v3263, %v3632
      %v3793 = vmax.f32 %v3264, %v3490
      %v3794 = vmax.f32 %v3265, %v3633
      %v3795 = vmax.f32 %v3266, %v3494
      %v3796 = vmax.f32 %v3267, %v3634
      %v3797 = vmax.f32 %v3268, %v3498
      %v3798 = vmax.f32 %v3269, %v3635
      %v3799 = vmax.f32 %v3270, %v3502
      %v3800 = vmax.f32 %v3271, %v3636
      %v3801 = vmax.f32 %v3272, %v3506
      %v3802 = vmax.f32 %v3273, %v3637
      %v3803 = vmax.f32 %v3274, %v3510
      %v3804 = vmax.f32 %v3275, %v3638
      %v3805 = vmax.f32 %v3276, %v3514
      %v3806 = vmax.f32 %v3277, %v3639
      %v3807 = vmax.f32 %v3278, %v3518
      %v3808 = vmax.f32 %v3279, %v3640
      %v3809 = vmax.f32 %v3280, %v3522
      %v3810 = vmax.f32 %v3281, %v3641
      %v3811 = vmax.f32 %v3282, %v3526
      %v3812 = vmax.f32 %v3283, %v3642
      %v3813 = vmax.f32 %v3284, %v3530
      %v3814 = vmax.f32 %v3285, %v3643
      %v3815 = vmax.f32 %v3286, %v3534
      %v3816 = vmax.f32 %v3287, %v3644
      %v3817 = vmax.f32 %v3288, %v3538
      %v3818 = vmax.f32 %v3289, %v3645
      %v3819 = vmax.f32 %v3290, %v3542
      %v3820 = vmax.f32 %v3291, %v3646
      %v3821 = vmax.f32 %v3292, %v3546
      %v3822 = vmax.f32 %v3293, %v3647
      %v3823 = vmax.f32 %v3294, %v3550
      %v3824 = vmax.f32 %v3295, %v3648
      %v3825 = vmax.f32 %v3296, %v3554
      %v3826 = vmax.f32 %v3297, %v3649
      %v3827 = vmax.f32 %v3298, %v3558
      %v3828 = vmax.f32 %v3299, %v3650
      %v3829 = vmax.f32 %v3300, %v3562
      %v3830 = vmax.f32 %v3301, %v3651
      %v3831 = vmax.f32 %v3302, %v3566
      %v3832 = vmax.f32 %v3303, %v3652
      %v3833 = vmax.f32 %v3304, %v3570
      %v3834 = vmax.f32 %v3305, %v3653
      %v3835 = vmax.f32 %v3306, %v3574
      %v3836 = vmax.f32 %v3307, %v3654
      %v3837 = vmax.f32 %v3308, %v3578
      %v3838 = vmax.f32 %v3309, %v3655
      %v3839 = vmax.f32 %v3310, %v3582
      %v3840 = vmax.f32 %v3311, %v3656
      %v3841 = vmax.f32 %v3312, %v3586
      %v3842 = vmax.f32 %v3313, %v3657
      %v3843 = vmax.f32 %v3314, %v3590
      %v3844 = vmax.f32 %v3315, %v3658
      %v3845 = vmax.f32 %v3316, %v3594
      %v3846 = vmax.f32 %v3317, %v3659
      %v3847 = vmax.f32 %v3318, %v3598
      %v3848 = vmax.f32 %v3319, %v3660
      %v3849 = vmax.f32 %v3320, %v3602
      %v3850 = vmax.f32 %v3321, %v3661
      %v3851 = vmax.f32 %v3322, %v3606
      %v3852 = vmax.f32 %v3323, %v3662
      %v3853 = vmax.f32 %v3324, %v3610
      %v3854 = vmax.f32 %v3325, %v3663
      %v3855 = vmax.f32 %v3326, %v3614
      %3920 = vrot.lane.b32.xlu0 %v3768, 10
      %v3921 = vpop.permute.xlu0 %3920
      %3922 = vrot.lane.b32.xlu0 %v3769, 10
      %v3923 = vpop.permute.xlu0 %3922
      %3924 = vrot.lane.b32.xlu0 %v3770, 10
      %v3925 = vpop.permute.xlu0 %3924
      %3926 = vrot.lane.b32.xlu0 %v3771, 10
      %v3927 = vpop.permute.xlu0 %3926
      %3928 = vrot.lane.b32.xlu0 %v3772, 10
      %v3929 = vpop.permute.xlu0 %3928
      %3930 = vrot.lane.b32.xlu0 %v3773, 10
      %v3931 = vpop.permute.xlu0 %3930
      %3932 = vrot.lane.b32.xlu0 %v3774, 10
      %v3933 = vpop.permute.xlu0 %3932
      %3934 = vrot.lane.b32.xlu0 %v3775, 10
      %v3935 = vpop.permute.xlu0 %3934
      %3936 = vrot.lane.b32.xlu0 %v3776, 10
      %v3937 = vpop.permute.xlu0 %3936
      %3938 = vrot.lane.b32.xlu0 %v3777, 10
      %v3939 = vpop.permute.xlu0 %3938
      %3940 = vrot.lane.b32.xlu0 %v3778, 10
      %v3941 = vpop.permute.xlu0 %3940
      %3942 = vrot.lane.b32.xlu0 %v3779, 10
      %v3943 = vpop.permute.xlu0 %3942
      %3944 = vrot.lane.b32.xlu0 %v3780, 10
      %v3945 = vpop.permute.xlu0 %3944
      %3946 = vrot.lane.b32.xlu0 %v3781, 10
      %v3947 = vpop.permute.xlu0 %3946
      %3948 = vrot.lane.b32.xlu0 %v3782, 10
      %v3949 = vpop.permute.xlu0 %3948
      %3950 = vrot.lane.b32.xlu0 %v3783, 10
      %v3951 = vpop.permute.xlu0 %3950
      %3952 = vrot.lane.b32.xlu0 %v3784, 10
      %v3953 = vpop.permute.xlu0 %3952
      %3954 = vrot.lane.b32.xlu0 %v3785, 10
      %v3955 = vpop.permute.xlu0 %3954
      %3956 = vrot.lane.b32.xlu0 %v3786, 10
      %v3957 = vpop.permute.xlu0 %3956
      %3958 = vrot.lane.b32.xlu0 %v3787, 10
      %v3959 = vpop.permute.xlu0 %3958
      %3960 = vrot.lane.b32.xlu0 %v3788, 10
      %v3961 = vpop.permute.xlu0 %3960
      %3962 = vrot.lane.b32.xlu0 %v3789, 10
      %v3963 = vpop.permute.xlu0 %3962
      %3964 = vrot.lane.b32.xlu0 %v3790, 10
      %v3965 = vpop.permute.xlu0 %3964
      %3966 = vrot.lane.b32.xlu0 %v3791, 10
      %v3967 = vpop.permute.xlu0 %3966
      %3968 = vrot.lane.b32.xlu0 %v3792, 10
      %v3969 = vpop.permute.xlu0 %3968
      %3970 = vrot.lane.b32.xlu0 %v3793, 10
      %v3971 = vpop.permute.xlu0 %3970
      %3972 = vrot.lane.b32.xlu0 %v3794, 10
      %v3973 = vpop.permute.xlu0 %3972
      %3974 = vrot.lane.b32.xlu0 %v3795, 10
      %v3975 = vpop.permute.xlu0 %3974
      %3976 = vrot.lane.b32.xlu0 %v3796, 10
      %v3977 = vpop.permute.xlu0 %3976
      %3978 = vrot.lane.b32.xlu0 %v3797, 10
      %v3979 = vpop.permute.xlu0 %3978
      %3980 = vrot.lane.b32.xlu0 %v3798, 10
      %v3981 = vpop.permute.xlu0 %3980
      %3982 = vrot.lane.b32.xlu0 %v3799, 10
      %v3983 = vpop.permute.xlu0 %3982
      %3984 = vrot.lane.b32.xlu0 %v3800, 10
      %v3985 = vpop.permute.xlu0 %3984
      %3986 = vrot.lane.b32.xlu0 %v3801, 10
      %v3987 = vpop.permute.xlu0 %3986
      %3988 = vrot.lane.b32.xlu0 %v3802, 10
      %v3989 = vpop.permute.xlu0 %3988
      %3990 = vrot.lane.b32.xlu0 %v3803, 10
      %v3991 = vpop.permute.xlu0 %3990
      %3992 = vrot.lane.b32.xlu0 %v3804, 10
      %v3993 = vpop.permute.xlu0 %3992
      %3994 = vrot.lane.b32.xlu0 %v3805, 10
      %v3995 = vpop.permute.xlu0 %3994
      %3996 = vrot.lane.b32.xlu0 %v3806, 10
      %v3997 = vpop.permute.xlu0 %3996
      %3998 = vrot.lane.b32.xlu0 %v3807, 10
      %v3999 = vpop.permute.xlu0 %3998
      %4000 = vrot.lane.b32.xlu0 %v3808, 10
      %v4001 = vpop.permute.xlu0 %4000
      %4002 = vrot.lane.b32.xlu0 %v3809, 10
      %v4003 = vpop.permute.xlu0 %4002
      %4004 = vrot.lane.b32.xlu0 %v3810, 10
      %v4005 = vpop.permute.xlu0 %4004
      %4006 = vrot.lane.b32.xlu0 %v3811, 10
      %v4007 = vpop.permute.xlu0 %4006
      %4008 = vrot.lane.b32.xlu0 %v3812, 10
      %v4009 = vpop.permute.xlu0 %4008
      %4010 = vrot.lane.b32.xlu0 %v3813, 10
      %v4011 = vpop.permute.xlu0 %4010
      %4012 = vrot.lane.b32.xlu0 %v3814, 10
      %v4013 = vpop.permute.xlu0 %4012
      %4014 = vrot.lane.b32.xlu0 %v3815, 10
      %v4015 = vpop.permute.xlu0 %4014
      %4016 = vrot.lane.b32.xlu0 %v3816, 10
      %v4017 = vpop.permute.xlu0 %4016
      %4018 = vrot.lane.b32.xlu0 %v3817, 10
      %v4019 = vpop.permute.xlu0 %4018
      %4020 = vrot.lane.b32.xlu0 %v3818, 10
      %v4021 = vpop.permute.xlu0 %4020
      %4022 = vrot.lane.b32.xlu0 %v3819, 10
      %v4023 = vpop.permute.xlu0 %4022
      %4024 = vrot.lane.b32.xlu0 %v3820, 10
      %v4025 = vpop.permute.xlu0 %4024
      %4026 = vrot.lane.b32.xlu0 %v3821, 10
      %v4027 = vpop.permute.xlu0 %4026
      %4028 = vrot.lane.b32.xlu0 %v3822, 10
      %v4029 = vpop.permute.xlu0 %4028
      %4030 = vrot.lane.b32.xlu0 %v3823, 10
      %v4031 = vpop.permute.xlu0 %4030
      %4032 = vrot.lane.b32.xlu0 %v3824, 10
      %v4033 = vpop.permute.xlu0 %4032
      %4034 = vrot.lane.b32.xlu0 %v3825, 10
      %v4035 = vpop.permute.xlu0 %4034
      %4036 = vrot.lane.b32.xlu0 %v3826, 10
      %v4037 = vpop.permute.xlu0 %4036
      %4038 = vrot.lane.b32.xlu0 %v3827, 10
      %v4039 = vpop.permute.xlu0 %4038
      %4040 = vrot.lane.b32.xlu0 %v3828, 10
      %v4041 = vpop.permute.xlu0 %4040
      %4042 = vrot.lane.b32.xlu0 %v3829, 10
      %v4043 = vpop.permute.xlu0 %4042
      %4044 = vrot.lane.b32.xlu0 %v3830, 10
      %v4045 = vpop.permute.xlu0 %4044
      %4046 = vrot.lane.b32.xlu0 %v3831, 10
      %v4047 = vpop.permute.xlu0 %4046
      %vm4048 = vcmask 80896
      %v4049 = vsel %vm4048, %v3921, %v3923
      %v4050 = vsel %vm4048, %v3925, %v3927
      %v4051 = vsel %vm4048, %v3929, %v3931
      %v4052 = vsel %vm4048, %v3933, %v3935
      %v4053 = vsel %vm4048, %v3937, %v3939
      %v4054 = vsel %vm4048, %v3941, %v3943
      %v4055 = vsel %vm4048, %v3945, %v3947
      %v4056 = vsel %vm4048, %v3949, %v3951
      %v4057 = vsel %vm4048, %v3953, %v3955
      %v4058 = vsel %vm4048, %v3957, %v3959
      %v4059 = vsel %vm4048, %v3961, %v3963
      %v4060 = vsel %vm4048, %v3965, %v3967
      %v4061 = vsel %vm4048, %v3969, %v3971
      %v4062 = vsel %vm4048, %v3973, %v3975
      %v4063 = vsel %vm4048, %v3977, %v3979
      %v4064 = vsel %vm4048, %v3981, %v3983
      %v4065 = vsel %vm4048, %v3985, %v3987
      %v4066 = vsel %vm4048, %v3989, %v3991
      %v4067 = vsel %vm4048, %v3993, %v3995
      %v4068 = vsel %vm4048, %v3997, %v3999
      %v4069 = vsel %vm4048, %v4001, %v4003
      %v4070 = vsel %vm4048, %v4005, %v4007
      %v4071 = vsel %vm4048, %v4009, %v4011
      %v4072 = vsel %vm4048, %v4013, %v4015
      %v4073 = vsel %vm4048, %v4017, %v4019
      %v4074 = vsel %vm4048, %v4021, %v4023
      %v4075 = vsel %vm4048, %v4025, %v4027
      %v4076 = vsel %vm4048, %v4029, %v4031
      %v4077 = vsel %vm4048, %v4033, %v4035
      %v4078 = vsel %vm4048, %v4037, %v4039
      %v4079 = vsel %vm4048, %v4041, %v4043
      %v4080 = vsel %vm4048, %v4045, %v4047
      %4153 = vrot.lane.b32.xlu0 %v3776, 20
      %v4154 = vpop.permute.xlu0 %4153
      %4155 = vrot.lane.b32.xlu0 %v3777, 20
      %v4156 = vpop.permute.xlu0 %4155
      %4157 = vrot.lane.b32.xlu0 %v3778, 20
      %v4158 = vpop.permute.xlu0 %4157
      %4159 = vrot.lane.b32.xlu0 %v3779, 20
      %v4160 = vpop.permute.xlu0 %4159
      %4161 = vrot.lane.b32.xlu0 %v3780, 20
      %v4162 = vpop.permute.xlu0 %4161
      %4163 = vrot.lane.b32.xlu0 %v3781, 20
      %v4164 = vpop.permute.xlu0 %4163
      %4165 = vrot.lane.b32.xlu0 %v3782, 20
      %v4166 = vpop.permute.xlu0 %4165
      %4167 = vrot.lane.b32.xlu0 %v3783, 20
      %v4168 = vpop.permute.xlu0 %4167
      %4169 = vrot.lane.b32.xlu0 %v3784, 20
      %v4170 = vpop.permute.xlu0 %4169
      %4171 = vrot.lane.b32.xlu0 %v3785, 20
      %v4172 = vpop.permute.xlu0 %4171
      %4173 = vrot.lane.b32.xlu0 %v3786, 20
      %v4174 = vpop.permute.xlu0 %4173
      %4175 = vrot.lane.b32.xlu0 %v3787, 20
      %v4176 = vpop.permute.xlu0 %4175
      %4177 = vrot.lane.b32.xlu0 %v3788, 20
      %v4178 = vpop.permute.xlu0 %4177
      %4179 = vrot.lane.b32.xlu0 %v3789, 20
      %v4180 = vpop.permute.xlu0 %4179
      %4181 = vrot.lane.b32.xlu0 %v3790, 20
      %v4182 = vpop.permute.xlu0 %4181
      %4183 = vrot.lane.b32.xlu0 %v3791, 20
      %v4184 = vpop.permute.xlu0 %4183
      %4185 = vrot.lane.b32.xlu0 %v3792, 20
      %v4186 = vpop.permute.xlu0 %4185
      %4187 = vrot.lane.b32.xlu0 %v3793, 20
      %v4188 = vpop.permute.xlu0 %4187
      %4189 = vrot.lane.b32.xlu0 %v3794, 20
      %v4190 = vpop.permute.xlu0 %4189
      %4191 = vrot.lane.b32.xlu0 %v3795, 20
      %v4192 = vpop.permute.xlu0 %4191
      %4193 = vrot.lane.b32.xlu0 %v3796, 20
      %v4194 = vpop.permute.xlu0 %4193
      %4195 = vrot.lane.b32.xlu0 %v3797, 20
      %v4196 = vpop.permute.xlu0 %4195
      %4197 = vrot.lane.b32.xlu0 %v3798, 20
      %v4198 = vpop.permute.xlu0 %4197
      %4199 = vrot.lane.b32.xlu0 %v3799, 20
      %v4200 = vpop.permute.xlu0 %4199
      %4201 = vrot.lane.b32.xlu0 %v3800, 20
      %v4202 = vpop.permute.xlu0 %4201
      %4203 = vrot.lane.b32.xlu0 %v3801, 20
      %v4204 = vpop.permute.xlu0 %4203
      %4205 = vrot.lane.b32.xlu0 %v3802, 20
      %v4206 = vpop.permute.xlu0 %4205
      %4207 = vrot.lane.b32.xlu0 %v3803, 20
      %v4208 = vpop.permute.xlu0 %4207
      %4209 = vrot.lane.b32.xlu0 %v3804, 20
      %v4210 = vpop.permute.xlu0 %4209
      %4211 = vrot.lane.b32.xlu0 %v3805, 20
      %v4212 = vpop.permute.xlu0 %4211
      %4213 = vrot.lane.b32.xlu0 %v3806, 20
      %v4214 = vpop.permute.xlu0 %4213
      %4215 = vrot.lane.b32.xlu0 %v3807, 20
      %v4216 = vpop.permute.xlu0 %4215
      %4217 = vrot.lane.b32.xlu0 %v3808, 20
      %v4218 = vpop.permute.xlu0 %4217
      %4219 = vrot.lane.b32.xlu0 %v3809, 20
      %v4220 = vpop.permute.xlu0 %4219
      %4221 = vrot.lane.b32.xlu0 %v3810, 20
      %v4222 = vpop.permute.xlu0 %4221
      %4223 = vrot.lane.b32.xlu0 %v3811, 20
      %v4224 = vpop.permute.xlu0 %4223
      %4225 = vrot.lane.b32.xlu0 %v3812, 20
      %v4226 = vpop.permute.xlu0 %4225
      %4227 = vrot.lane.b32.xlu0 %v3813, 20
      %v4228 = vpop.permute.xlu0 %4227
      %4229 = vrot.lane.b32.xlu0 %v3814, 20
      %v4230 = vpop.permute.xlu0 %4229
      %4231 = vrot.lane.b32.xlu0 %v3815, 20
      %v4232 = vpop.permute.xlu0 %4231
      %4233 = vrot.lane.b32.xlu0 %v3816, 20
      %v4234 = vpop.permute.xlu0 %4233
      %4235 = vrot.lane.b32.xlu0 %v3817, 20
      %v4236 = vpop.permute.xlu0 %4235
      %4237 = vrot.lane.b32.xlu0 %v3818, 20
      %v4238 = vpop.permute.xlu0 %4237
      %4239 = vrot.lane.b32.xlu0 %v3819, 20
      %v4240 = vpop.permute.xlu0 %4239
      %4241 = vrot.lane.b32.xlu0 %v3820, 20
      %v4242 = vpop.permute.xlu0 %4241
      %4243 = vrot.lane.b32.xlu0 %v3821, 20
      %v4244 = vpop.permute.xlu0 %4243
      %4245 = vrot.lane.b32.xlu0 %v3822, 20
      %v4246 = vpop.permute.xlu0 %4245
      %4247 = vrot.lane.b32.xlu0 %v3823, 20
      %v4248 = vpop.permute.xlu0 %4247
      %4249 = vrot.lane.b32.xlu0 %v3824, 20
      %v4250 = vpop.permute.xlu0 %4249
      %4251 = vrot.lane.b32.xlu0 %v3825, 20
      %v4252 = vpop.permute.xlu0 %4251
      %4253 = vrot.lane.b32.xlu0 %v3826, 20
      %v4254 = vpop.permute.xlu0 %4253
      %4255 = vrot.lane.b32.xlu0 %v3827, 20
      %v4256 = vpop.permute.xlu0 %4255
      %4257 = vrot.lane.b32.xlu0 %v3828, 20
      %v4258 = vpop.permute.xlu0 %4257
      %4259 = vrot.lane.b32.xlu0 %v3829, 20
      %v4260 = vpop.permute.xlu0 %4259
      %4261 = vrot.lane.b32.xlu0 %v3830, 20
      %v4262 = vpop.permute.xlu0 %4261
      %4263 = vrot.lane.b32.xlu0 %v3831, 20
      %v4264 = vpop.permute.xlu0 %4263
      %4265 = vrot.lane.b32.xlu0 %v3832, 20
      %v4266 = vpop.permute.xlu0 %4265
      %4267 = vrot.lane.b32.xlu0 %v3833, 20
      %v4268 = vpop.permute.xlu0 %4267
      %4269 = vrot.lane.b32.xlu0 %v3834, 20
      %v4270 = vpop.permute.xlu0 %4269
      %4271 = vrot.lane.b32.xlu0 %v3835, 20
      %v4272 = vpop.permute.xlu0 %4271
      %4273 = vrot.lane.b32.xlu0 %v3836, 20
      %v4274 = vpop.permute.xlu0 %4273
      %4275 = vrot.lane.b32.xlu0 %v3837, 20
      %v4276 = vpop.permute.xlu0 %4275
      %4277 = vrot.lane.b32.xlu0 %v3838, 20
      %v4278 = vpop.permute.xlu0 %4277
      %4279 = vrot.lane.b32.xlu0 %v3839, 20
      %v4280 = vpop.permute.xlu0 %4279
      %vm4281 = vcmask 162816
      %v4282 = vsel %vm4281, %v4154, %v4156
      %v4283 = vsel %vm4281, %v4158, %v4160
      %v4284 = vsel %vm4281, %v4162, %v4164
      %v4285 = vsel %vm4281, %v4166, %v4168
      %v4286 = vsel %vm4281, %v4170, %v4172
      %v4287 = vsel %vm4281, %v4174, %v4176
      %v4288 = vsel %vm4281, %v4178, %v4180
      %v4289 = vsel %vm4281, %v4182, %v4184
      %v4290 = vsel %vm4281, %v4186, %v4188
      %v4291 = vsel %vm4281, %v4190, %v4192
      %v4292 = vsel %vm4281, %v4194, %v4196
      %v4293 = vsel %vm4281, %v4198, %v4200
      %v4294 = vsel %vm4281, %v4202, %v4204
      %v4295 = vsel %vm4281, %v4206, %v4208
      %v4296 = vsel %vm4281, %v4210, %v4212
      %v4297 = vsel %vm4281, %v4214, %v4216
      %v4298 = vsel %vm4281, %v4218, %v4220
      %v4299 = vsel %vm4281, %v4222, %v4224
      %v4300 = vsel %vm4281, %v4226, %v4228
      %v4301 = vsel %vm4281, %v4230, %v4232
      %v4302 = vsel %vm4281, %v4234, %v4236
      %v4303 = vsel %vm4281, %v4238, %v4240
      %v4304 = vsel %vm4281, %v4242, %v4244
      %v4305 = vsel %vm4281, %v4246, %v4248
      %v4306 = vsel %vm4281, %v4250, %v4252
      %v4307 = vsel %vm4281, %v4254, %v4256
      %v4308 = vsel %vm4281, %v4258, %v4260
      %v4309 = vsel %vm4281, %v4262, %v4264
      %v4310 = vsel %vm4281, %v4266, %v4268
      %v4311 = vsel %vm4281, %v4270, %v4272
      %v4312 = vsel %vm4281, %v4274, %v4276
      %v4313 = vsel %vm4281, %v4278, %v4280
      %4386 = vrot.lane.b32.xlu0 %v3784, 30
      %v4387 = vpop.permute.xlu0 %4386
      %4388 = vrot.lane.b32.xlu0 %v3785, 30
      %v4389 = vpop.permute.xlu0 %4388
      %4390 = vrot.lane.b32.xlu0 %v3786, 30
      %v4391 = vpop.permute.xlu0 %4390
      %4392 = vrot.lane.b32.xlu0 %v3787, 30
      %v4393 = vpop.permute.xlu0 %4392
      %4394 = vrot.lane.b32.xlu0 %v3788, 30
      %v4395 = vpop.permute.xlu0 %4394
      %4396 = vrot.lane.b32.xlu0 %v3789, 30
      %v4397 = vpop.permute.xlu0 %4396
      %4398 = vrot.lane.b32.xlu0 %v3790, 30
      %v4399 = vpop.permute.xlu0 %4398
      %4400 = vrot.lane.b32.xlu0 %v3791, 30
      %v4401 = vpop.permute.xlu0 %4400
      %4402 = vrot.lane.b32.xlu0 %v3792, 30
      %v4403 = vpop.permute.xlu0 %4402
      %4404 = vrot.lane.b32.xlu0 %v3793, 30
      %v4405 = vpop.permute.xlu0 %4404
      %4406 = vrot.lane.b32.xlu0 %v3794, 30
      %v4407 = vpop.permute.xlu0 %4406
      %4408 = vrot.lane.b32.xlu0 %v3795, 30
      %v4409 = vpop.permute.xlu0 %4408
      %4410 = vrot.lane.b32.xlu0 %v3796, 30
      %v4411 = vpop.permute.xlu0 %4410
      %4412 = vrot.lane.b32.xlu0 %v3797, 30
      %v4413 = vpop.permute.xlu0 %4412
      %4414 = vrot.lane.b32.xlu0 %v3798, 30
      %v4415 = vpop.permute.xlu0 %4414
      %4416 = vrot.lane.b32.xlu0 %v3799, 30
      %v4417 = vpop.permute.xlu0 %4416
      %4418 = vrot.lane.b32.xlu0 %v3800, 30
      %v4419 = vpop.permute.xlu0 %4418
      %4420 = vrot.lane.b32.xlu0 %v3801, 30
      %v4421 = vpop.permute.xlu0 %4420
      %4422 = vrot.lane.b32.xlu0 %v3802, 30
      %v4423 = vpop.permute.xlu0 %4422
      %4424 = vrot.lane.b32.xlu0 %v3803, 30
      %v4425 = vpop.permute.xlu0 %4424
      %4426 = vrot.lane.b32.xlu0 %v3804, 30
      %v4427 = vpop.permute.xlu0 %4426
      %4428 = vrot.lane.b32.xlu0 %v3805, 30
      %v4429 = vpop.permute.xlu0 %4428
      %4430 = vrot.lane.b32.xlu0 %v3806, 30
      %v4431 = vpop.permute.xlu0 %4430
      %4432 = vrot.lane.b32.xlu0 %v3807, 30
      %v4433 = vpop.permute.xlu0 %4432
      %4434 = vrot.lane.b32.xlu0 %v3808, 30
      %v4435 = vpop.permute.xlu0 %4434
      %4436 = vrot.lane.b32.xlu0 %v3809, 30
      %v4437 = vpop.permute.xlu0 %4436
      %4438 = vrot.lane.b32.xlu0 %v3810, 30
      %v4439 = vpop.permute.xlu0 %4438
      %4440 = vrot.lane.b32.xlu0 %v3811, 30
      %v4441 = vpop.permute.xlu0 %4440
      %4442 = vrot.lane.b32.xlu0 %v3812, 30
      %v4443 = vpop.permute.xlu0 %4442
      %4444 = vrot.lane.b32.xlu0 %v3813, 30
      %v4445 = vpop.permute.xlu0 %4444
      %4446 = vrot.lane.b32.xlu0 %v3814, 30
      %v4447 = vpop.permute.xlu0 %4446
      %4448 = vrot.lane.b32.xlu0 %v3815, 30
      %v4449 = vpop.permute.xlu0 %4448
      %4450 = vrot.lane.b32.xlu0 %v3816, 30
      %v4451 = vpop.permute.xlu0 %4450
      %4452 = vrot.lane.b32.xlu0 %v3817, 30
      %v4453 = vpop.permute.xlu0 %4452
      %4454 = vrot.lane.b32.xlu0 %v3818, 30
      %v4455 = vpop.permute.xlu0 %4454
      %4456 = vrot.lane.b32.xlu0 %v3819, 30
      %v4457 = vpop.permute.xlu0 %4456
      %4458 = vrot.lane.b32.xlu0 %v3820, 30
      %v4459 = vpop.permute.xlu0 %4458
      %4460 = vrot.lane.b32.xlu0 %v3821, 30
      %v4461 = vpop.permute.xlu0 %4460
      %4462 = vrot.lane.b32.xlu0 %v3822, 30
      %v4463 = vpop.permute.xlu0 %4462
      %4464 = vrot.lane.b32.xlu0 %v3823, 30
      %v4465 = vpop.permute.xlu0 %4464
      %4466 = vrot.lane.b32.xlu0 %v3824, 30
      %v4467 = vpop.permute.xlu0 %4466
      %4468 = vrot.lane.b32.xlu0 %v3825, 30
      %v4469 = vpop.permute.xlu0 %4468
      %4470 = vrot.lane.b32.xlu0 %v3826, 30
      %v4471 = vpop.permute.xlu0 %4470
      %4472 = vrot.lane.b32.xlu0 %v3827, 30
      %v4473 = vpop.permute.xlu0 %4472
      %4474 = vrot.lane.b32.xlu0 %v3828, 30
      %v4475 = vpop.permute.xlu0 %4474
      %4476 = vrot.lane.b32.xlu0 %v3829, 30
      %v4477 = vpop.permute.xlu0 %4476
      %4478 = vrot.lane.b32.xlu0 %v3830, 30
      %v4479 = vpop.permute.xlu0 %4478
      %4480 = vrot.lane.b32.xlu0 %v3831, 30
      %v4481 = vpop.permute.xlu0 %4480
      %4482 = vrot.lane.b32.xlu0 %v3832, 30
      %v4483 = vpop.permute.xlu0 %4482
      %4484 = vrot.lane.b32.xlu0 %v3833, 30
      %v4485 = vpop.permute.xlu0 %4484
      %4486 = vrot.lane.b32.xlu0 %v3834, 30
      %v4487 = vpop.permute.xlu0 %4486
      %4488 = vrot.lane.b32.xlu0 %v3835, 30
      %v4489 = vpop.permute.xlu0 %4488
      %4490 = vrot.lane.b32.xlu0 %v3836, 30
      %v4491 = vpop.permute.xlu0 %4490
      %4492 = vrot.lane.b32.xlu0 %v3837, 30
      %v4493 = vpop.permute.xlu0 %4492
      %4494 = vrot.lane.b32.xlu0 %v3838, 30
      %v4495 = vpop.permute.xlu0 %4494
      %4496 = vrot.lane.b32.xlu0 %v3839, 30
      %v4497 = vpop.permute.xlu0 %4496
      %4498 = vrot.lane.b32.xlu0 %v3840, 30
      %v4499 = vpop.permute.xlu0 %4498
      %4500 = vrot.lane.b32.xlu0 %v3841, 30
      %v4501 = vpop.permute.xlu0 %4500
      %4502 = vrot.lane.b32.xlu0 %v3842, 30
      %v4503 = vpop.permute.xlu0 %4502
      %4504 = vrot.lane.b32.xlu0 %v3843, 30
      %v4505 = vpop.permute.xlu0 %4504
      %4506 = vrot.lane.b32.xlu0 %v3844, 30
      %v4507 = vpop.permute.xlu0 %4506
      %4508 = vrot.lane.b32.xlu0 %v3845, 30
      %v4509 = vpop.permute.xlu0 %4508
      %4510 = vrot.lane.b32.xlu0 %v3846, 30
      %v4511 = vpop.permute.xlu0 %4510
      %4512 = vrot.lane.b32.xlu0 %v3847, 30
      %v4513 = vpop.permute.xlu0 %4512
      %vm4514 = vcmask 244736
      %v4515 = vsel %vm4514, %v4387, %v4389
      %v4516 = vsel %vm4514, %v4391, %v4393
      %v4517 = vsel %vm4514, %v4395, %v4397
      %v4518 = vsel %vm4514, %v4399, %v4401
      %v4519 = vsel %vm4514, %v4403, %v4405
      %v4520 = vsel %vm4514, %v4407, %v4409
      %v4521 = vsel %vm4514, %v4411, %v4413
      %v4522 = vsel %vm4514, %v4415, %v4417
      %v4523 = vsel %vm4514, %v4419, %v4421
      %v4524 = vsel %vm4514, %v4423, %v4425
      %v4525 = vsel %vm4514, %v4427, %v4429
      %v4526 = vsel %vm4514, %v4431, %v4433
      %v4527 = vsel %vm4514, %v4435, %v4437
      %v4528 = vsel %vm4514, %v4439, %v4441
      %v4529 = vsel %vm4514, %v4443, %v4445
      %v4530 = vsel %vm4514, %v4447, %v4449
      %v4531 = vsel %vm4514, %v4451, %v4453
      %v4532 = vsel %vm4514, %v4455, %v4457
      %v4533 = vsel %vm4514, %v4459, %v4461
      %v4534 = vsel %vm4514, %v4463, %v4465
      %v4535 = vsel %vm4514, %v4467, %v4469
      %v4536 = vsel %vm4514, %v4471, %v4473
      %v4537 = vsel %vm4514, %v4475, %v4477
      %v4538 = vsel %vm4514, %v4479, %v4481
      %v4539 = vsel %vm4514, %v4483, %v4485
      %v4540 = vsel %vm4514, %v4487, %v4489
      %v4541 = vsel %vm4514, %v4491, %v4493
      %v4542 = vsel %vm4514, %v4495, %v4497
      %v4543 = vsel %vm4514, %v4499, %v4501
      %v4544 = vsel %vm4514, %v4503, %v4505
      %v4545 = vsel %vm4514, %v4507, %v4509
      %v4546 = vsel %vm4514, %v4511, %v4513
      %4619 = vrot.lane.b32.xlu0 %v3792, 40
      %v4620 = vpop.permute.xlu0 %4619
      %4621 = vrot.lane.b32.xlu0 %v3793, 40
      %v4622 = vpop.permute.xlu0 %4621
      %4623 = vrot.lane.b32.xlu0 %v3794, 40
      %v4624 = vpop.permute.xlu0 %4623
      %4625 = vrot.lane.b32.xlu0 %v3795, 40
      %v4626 = vpop.permute.xlu0 %4625
      %4627 = vrot.lane.b32.xlu0 %v3796, 40
      %v4628 = vpop.permute.xlu0 %4627
      %4629 = vrot.lane.b32.xlu0 %v3797, 40
      %v4630 = vpop.permute.xlu0 %4629
      %4631 = vrot.lane.b32.xlu0 %v3798, 40
      %v4632 = vpop.permute.xlu0 %4631
      %4633 = vrot.lane.b32.xlu0 %v3799, 40
      %v4634 = vpop.permute.xlu0 %4633
      %4635 = vrot.lane.b32.xlu0 %v3800, 40
      %v4636 = vpop.permute.xlu0 %4635
      %4637 = vrot.lane.b32.xlu0 %v3801, 40
      %v4638 = vpop.permute.xlu0 %4637
      %4639 = vrot.lane.b32.xlu0 %v3802, 40
      %v4640 = vpop.permute.xlu0 %4639
      %4641 = vrot.lane.b32.xlu0 %v3803, 40
      %v4642 = vpop.permute.xlu0 %4641
      %4643 = vrot.lane.b32.xlu0 %v3804, 40
      %v4644 = vpop.permute.xlu0 %4643
      %4645 = vrot.lane.b32.xlu0 %v3805, 40
      %v4646 = vpop.permute.xlu0 %4645
      %4647 = vrot.lane.b32.xlu0 %v3806, 40
      %v4648 = vpop.permute.xlu0 %4647
      %4649 = vrot.lane.b32.xlu0 %v3807, 40
      %v4650 = vpop.permute.xlu0 %4649
      %4651 = vrot.lane.b32.xlu0 %v3808, 40
      %v4652 = vpop.permute.xlu0 %4651
      %4653 = vrot.lane.b32.xlu0 %v3809, 40
      %v4654 = vpop.permute.xlu0 %4653
      %4655 = vrot.lane.b32.xlu0 %v3810, 40
      %v4656 = vpop.permute.xlu0 %4655
      %4657 = vrot.lane.b32.xlu0 %v3811, 40
      %v4658 = vpop.permute.xlu0 %4657
      %4659 = vrot.lane.b32.xlu0 %v3812, 40
      %v4660 = vpop.permute.xlu0 %4659
      %4661 = vrot.lane.b32.xlu0 %v3813, 40
      %v4662 = vpop.permute.xlu0 %4661
      %4663 = vrot.lane.b32.xlu0 %v3814, 40
      %v4664 = vpop.permute.xlu0 %4663
      %4665 = vrot.lane.b32.xlu0 %v3815, 40
      %v4666 = vpop.permute.xlu0 %4665
      %4667 = vrot.lane.b32.xlu0 %v3816, 40
      %v4668 = vpop.permute.xlu0 %4667
      %4669 = vrot.lane.b32.xlu0 %v3817, 40
      %v4670 = vpop.permute.xlu0 %4669
      %4671 = vrot.lane.b32.xlu0 %v3818, 40
      %v4672 = vpop.permute.xlu0 %4671
      %4673 = vrot.lane.b32.xlu0 %v3819, 40
      %v4674 = vpop.permute.xlu0 %4673
      %4675 = vrot.lane.b32.xlu0 %v3820, 40
      %v4676 = vpop.permute.xlu0 %4675
      %4677 = vrot.lane.b32.xlu0 %v3821, 40
      %v4678 = vpop.permute.xlu0 %4677
      %4679 = vrot.lane.b32.xlu0 %v3822, 40
      %v4680 = vpop.permute.xlu0 %4679
      %4681 = vrot.lane.b32.xlu0 %v3823, 40
      %v4682 = vpop.permute.xlu0 %4681
      %4683 = vrot.lane.b32.xlu0 %v3824, 40
      %v4684 = vpop.permute.xlu0 %4683
      %4685 = vrot.lane.b32.xlu0 %v3825, 40
      %v4686 = vpop.permute.xlu0 %4685
      %4687 = vrot.lane.b32.xlu0 %v3826, 40
      %v4688 = vpop.permute.xlu0 %4687
      %4689 = vrot.lane.b32.xlu0 %v3827, 40
      %v4690 = vpop.permute.xlu0 %4689
      %4691 = vrot.lane.b32.xlu0 %v3828, 40
      %v4692 = vpop.permute.xlu0 %4691
      %4693 = vrot.lane.b32.xlu0 %v3829, 40
      %v4694 = vpop.permute.xlu0 %4693
      %4695 = vrot.lane.b32.xlu0 %v3830, 40
      %v4696 = vpop.permute.xlu0 %4695
      %4697 = vrot.lane.b32.xlu0 %v3831, 40
      %v4698 = vpop.permute.xlu0 %4697
      %4699 = vrot.lane.b32.xlu0 %v3832, 40
      %v4700 = vpop.permute.xlu0 %4699
      %4701 = vrot.lane.b32.xlu0 %v3833, 40
      %v4702 = vpop.permute.xlu0 %4701
      %4703 = vrot.lane.b32.xlu0 %v3834, 40
      %v4704 = vpop.permute.xlu0 %4703
      %4705 = vrot.lane.b32.xlu0 %v3835, 40
      %v4706 = vpop.permute.xlu0 %4705
      %4707 = vrot.lane.b32.xlu0 %v3836, 40
      %v4708 = vpop.permute.xlu0 %4707
      %4709 = vrot.lane.b32.xlu0 %v3837, 40
      %v4710 = vpop.permute.xlu0 %4709
      %4711 = vrot.lane.b32.xlu0 %v3838, 40
      %v4712 = vpop.permute.xlu0 %4711
      %4713 = vrot.lane.b32.xlu0 %v3839, 40
      %v4714 = vpop.permute.xlu0 %4713
      %4715 = vrot.lane.b32.xlu0 %v3840, 40
      %v4716 = vpop.permute.xlu0 %4715
      %4717 = vrot.lane.b32.xlu0 %v3841, 40
      %v4718 = vpop.permute.xlu0 %4717
      %4719 = vrot.lane.b32.xlu0 %v3842, 40
      %v4720 = vpop.permute.xlu0 %4719
      %4721 = vrot.lane.b32.xlu0 %v3843, 40
      %v4722 = vpop.permute.xlu0 %4721
      %4723 = vrot.lane.b32.xlu0 %v3844, 40
      %v4724 = vpop.permute.xlu0 %4723
      %4725 = vrot.lane.b32.xlu0 %v3845, 40
      %v4726 = vpop.permute.xlu0 %4725
      %4727 = vrot.lane.b32.xlu0 %v3846, 40
      %v4728 = vpop.permute.xlu0 %4727
      %4729 = vrot.lane.b32.xlu0 %v3847, 40
      %v4730 = vpop.permute.xlu0 %4729
      %4731 = vrot.lane.b32.xlu0 %v3848, 40
      %v4732 = vpop.permute.xlu0 %4731
      %4733 = vrot.lane.b32.xlu0 %v3849, 40
      %v4734 = vpop.permute.xlu0 %4733
      %4735 = vrot.lane.b32.xlu0 %v3850, 40
      %v4736 = vpop.permute.xlu0 %4735
      %4737 = vrot.lane.b32.xlu0 %v3851, 40
      %v4738 = vpop.permute.xlu0 %4737
      %4739 = vrot.lane.b32.xlu0 %v3852, 40
      %v4740 = vpop.permute.xlu0 %4739
      %4741 = vrot.lane.b32.xlu0 %v3853, 40
      %v4742 = vpop.permute.xlu0 %4741
      %4743 = vrot.lane.b32.xlu0 %v3854, 40
      %v4744 = vpop.permute.xlu0 %4743
      %4745 = vrot.lane.b32.xlu0 %v3855, 40
      %v4746 = vpop.permute.xlu0 %4745
      %vm4747 = vcmask 326656
      %v4748 = vsel %vm4747, %v4620, %v4622
      %v4749 = vsel %vm4747, %v4624, %v4626
      %v4750 = vsel %vm4747, %v4628, %v4630
      %v4751 = vsel %vm4747, %v4632, %v4634
      %v4752 = vsel %vm4747, %v4636, %v4638
      %v4753 = vsel %vm4747, %v4640, %v4642
      %v4754 = vsel %vm4747, %v4644, %v4646
      %v4755 = vsel %vm4747, %v4648, %v4650
      %v4756 = vsel %vm4747, %v4652, %v4654
      %v4757 = vsel %vm4747, %v4656, %v4658
      %v4758 = vsel %vm4747, %v4660, %v4662
      %v4759 = vsel %vm4747, %v4664, %v4666
      %v4760 = vsel %vm4747, %v4668, %v4670
      %v4761 = vsel %vm4747, %v4672, %v4674
      %v4762 = vsel %vm4747, %v4676, %v4678
      %v4763 = vsel %vm4747, %v4680, %v4682
      %v4764 = vsel %vm4747, %v4684, %v4686
      %v4765 = vsel %vm4747, %v4688, %v4690
      %v4766 = vsel %vm4747, %v4692, %v4694
      %v4767 = vsel %vm4747, %v4696, %v4698
      %v4768 = vsel %vm4747, %v4700, %v4702
      %v4769 = vsel %vm4747, %v4704, %v4706
      %v4770 = vsel %vm4747, %v4708, %v4710
      %v4771 = vsel %vm4747, %v4712, %v4714
      %v4772 = vsel %vm4747, %v4716, %v4718
      %v4773 = vsel %vm4747, %v4720, %v4722
      %v4774 = vsel %vm4747, %v4724, %v4726
      %v4775 = vsel %vm4747, %v4728, %v4730
      %v4776 = vsel %vm4747, %v4732, %v4734
      %v4777 = vsel %vm4747, %v4736, %v4738
      %v4778 = vsel %vm4747, %v4740, %v4742
      %v4779 = vsel %vm4747, %v4744, %v4746
      %v4812 = vsel %vm4048, %v3761, %v3921
      %v4813 = vsel %vm4048, %v3763, %v3925
      %v4814 = vsel %vm4048, %v3765, %v3929
      %v4815 = vsel %vm4048, %v3767, %v3933
      %v4816 = vsel %vm4048, %v3769, %v3937
      %v4817 = vsel %vm4048, %v3771, %v3941
      %v4818 = vsel %vm4048, %v3773, %v3945
      %v4819 = vsel %vm4048, %v3775, %v3949
      %v4820 = vsel %vm4048, %v3777, %v3953
      %v4821 = vsel %vm4048, %v3779, %v3957
      %v4822 = vsel %vm4048, %v3781, %v3961
      %v4823 = vsel %vm4048, %v3783, %v3965
      %v4824 = vsel %vm4048, %v3785, %v3969
      %v4825 = vsel %vm4048, %v3787, %v3973
      %v4826 = vsel %vm4048, %v3789, %v3977
      %v4827 = vsel %vm4048, %v3791, %v3981
      %v4828 = vsel %vm4048, %v3793, %v3985
      %v4829 = vsel %vm4048, %v3795, %v3989
      %v4830 = vsel %vm4048, %v3797, %v3993
      %v4831 = vsel %vm4048, %v3799, %v3997
      %v4832 = vsel %vm4048, %v3801, %v4001
      %v4833 = vsel %vm4048, %v3803, %v4005
      %v4834 = vsel %vm4048, %v3805, %v4009
      %v4835 = vsel %vm4048, %v3807, %v4013
      %v4836 = vsel %vm4048, %v3809, %v4017
      %v4837 = vsel %vm4048, %v3811, %v4021
      %v4838 = vsel %vm4048, %v3813, %v4025
      %v4839 = vsel %vm4048, %v3815, %v4029
      %v4840 = vsel %vm4048, %v3817, %v4033
      %v4841 = vsel %vm4048, %v3819, %v4037
      %v4842 = vsel %vm4048, %v3821, %v4041
      %v4843 = vsel %vm4048, %v3823, %v4045
      %v4844 = vsel %vm4281, %v4049, %v4154
      %v4845 = vsel %vm4281, %v4050, %v4158
      %v4846 = vsel %vm4281, %v4051, %v4162
      %v4847 = vsel %vm4281, %v4052, %v4166
      %v4848 = vsel %vm4281, %v4053, %v4170
      %v4849 = vsel %vm4281, %v4054, %v4174
      %v4850 = vsel %vm4281, %v4055, %v4178
      %v4851 = vsel %vm4281, %v4056, %v4182
      %v4852 = vsel %vm4281, %v4057, %v4186
      %v4853 = vsel %vm4281, %v4058, %v4190
      %v4854 = vsel %vm4281, %v4059, %v4194
      %v4855 = vsel %vm4281, %v4060, %v4198
      %v4856 = vsel %vm4281, %v4061, %v4202
      %v4857 = vsel %vm4281, %v4062, %v4206
      %v4858 = vsel %vm4281, %v4063, %v4210
      %v4859 = vsel %vm4281, %v4064, %v4214
      %v4860 = vsel %vm4281, %v4065, %v4218
      %v4861 = vsel %vm4281, %v4066, %v4222
      %v4862 = vsel %vm4281, %v4067, %v4226
      %v4863 = vsel %vm4281, %v4068, %v4230
      %v4864 = vsel %vm4281, %v4069, %v4234
      %v4865 = vsel %vm4281, %v4070, %v4238
      %v4866 = vsel %vm4281, %v4071, %v4242
      %v4867 = vsel %vm4281, %v4072, %v4246
      %v4868 = vsel %vm4281, %v4073, %v4250
      %v4869 = vsel %vm4281, %v4074, %v4254
      %v4870 = vsel %vm4281, %v4075, %v4258
      %v4871 = vsel %vm4281, %v4076, %v4262
      %v4872 = vsel %vm4281, %v4077, %v4266
      %v4873 = vsel %vm4281, %v4078, %v4270
      %v4874 = vsel %vm4281, %v4079, %v4274
      %v4875 = vsel %vm4281, %v4080, %v4278
      %v4876 = vsel %vm4514, %v4282, %v4387
      %v4877 = vsel %vm4514, %v4283, %v4391
      %v4878 = vsel %vm4514, %v4284, %v4395
      %v4879 = vsel %vm4514, %v4285, %v4399
      %v4880 = vsel %vm4514, %v4286, %v4403
      %v4881 = vsel %vm4514, %v4287, %v4407
      %v4882 = vsel %vm4514, %v4288, %v4411
      %v4883 = vsel %vm4514, %v4289, %v4415
      %v4884 = vsel %vm4514, %v4290, %v4419
      %v4885 = vsel %vm4514, %v4291, %v4423
      %v4886 = vsel %vm4514, %v4292, %v4427
      %v4887 = vsel %vm4514, %v4293, %v4431
      %v4888 = vsel %vm4514, %v4294, %v4435
      %v4889 = vsel %vm4514, %v4295, %v4439
      %v4890 = vsel %vm4514, %v4296, %v4443
      %v4891 = vsel %vm4514, %v4297, %v4447
      %v4892 = vsel %vm4514, %v4298, %v4451
      %v4893 = vsel %vm4514, %v4299, %v4455
      %v4894 = vsel %vm4514, %v4300, %v4459
      %v4895 = vsel %vm4514, %v4301, %v4463
      %v4896 = vsel %vm4514, %v4302, %v4467
      %v4897 = vsel %vm4514, %v4303, %v4471
      %v4898 = vsel %vm4514, %v4304, %v4475
      %v4899 = vsel %vm4514, %v4305, %v4479
      %v4900 = vsel %vm4514, %v4306, %v4483
      %v4901 = vsel %vm4514, %v4307, %v4487
      %v4902 = vsel %vm4514, %v4308, %v4491
      %v4903 = vsel %vm4514, %v4309, %v4495
      %v4904 = vsel %vm4514, %v4310, %v4499
      %v4905 = vsel %vm4514, %v4311, %v4503
      %v4906 = vsel %vm4514, %v4312, %v4507
      %v4907 = vsel %vm4514, %v4313, %v4511
      %v4908 = vsel %vm4747, %v4515, %v4620
      %v4909 = vsel %vm4747, %v4516, %v4624
      %v4910 = vsel %vm4747, %v4517, %v4628
      %v4911 = vsel %vm4747, %v4518, %v4632
      %v4912 = vsel %vm4747, %v4519, %v4636
      %v4913 = vsel %vm4747, %v4520, %v4640
      %v4914 = vsel %vm4747, %v4521, %v4644
      %v4915 = vsel %vm4747, %v4522, %v4648
      %v4916 = vsel %vm4747, %v4523, %v4652
      %v4917 = vsel %vm4747, %v4524, %v4656
      %v4918 = vsel %vm4747, %v4525, %v4660
      %v4919 = vsel %vm4747, %v4526, %v4664
      %v4920 = vsel %vm4747, %v4527, %v4668
      %v4921 = vsel %vm4747, %v4528, %v4672
      %v4922 = vsel %vm4747, %v4529, %v4676
      %v4923 = vsel %vm4747, %v4530, %v4680
      %v4924 = vsel %vm4747, %v4531, %v4684
      %v4925 = vsel %vm4747, %v4532, %v4688
      %v4926 = vsel %vm4747, %v4533, %v4692
      %v4927 = vsel %vm4747, %v4534, %v4696
      %v4928 = vsel %vm4747, %v4535, %v4700
      %v4929 = vsel %vm4747, %v4536, %v4704
      %v4930 = vsel %vm4747, %v4537, %v4708
      %v4931 = vsel %vm4747, %v4538, %v4712
      %v4932 = vsel %vm4747, %v4539, %v4716
      %v4933 = vsel %vm4747, %v4540, %v4720
      %v4934 = vsel %vm4747, %v4541, %v4724
      %v4935 = vsel %vm4747, %v4542, %v4728
      %v4936 = vsel %vm4747, %v4543, %v4732
      %v4937 = vsel %vm4747, %v4544, %v4736
      %v4938 = vsel %vm4747, %v4545, %v4740
      %v4939 = vsel %vm4747, %v4546, %v4744
      %v4940 = vld [vmem:[%s3] sm:$0xff]
      %v4941 = vld [vmem:[%s3 + $0x8] sm:$0xff]
      %v4942 = vld [vmem:[%s3 + $0x10] sm:$0xff]
      %v4943 = vld [vmem:[%s3 + $0x18] sm:$0xff]
      %v4944 = vld [vmem:[%s3 + $0x20] sm:$0xff]
      %v4945 = vld [vmem:[%s3 + $0x28] sm:$0xff]
      %v4946 = vld [vmem:[%s3 + $0x30] sm:$0xff]
      %v4947 = vld [vmem:[%s3 + $0x38] sm:$0xff]
      %v4948 = vld [vmem:[%s3 + $0x40] sm:$0xff]
      %v4949 = vld [vmem:[%s3 + $0x48] sm:$0xff]
      %v4950 = vld [vmem:[%s3 + $0x50] sm:$0xff]
      %v4951 = vld [vmem:[%s3 + $0x58] sm:$0xff]
      %v4952 = vld [vmem:[%s3 + $0x60] sm:$0xff]
      %v4953 = vld [vmem:[%s3 + $0x68] sm:$0xff]
      %v4954 = vld [vmem:[%s3 + $0x70] sm:$0xff]
      %v4955 = vld [vmem:[%s3 + $0x78] sm:$0xff]
      %v4956 = vld [vmem:[%s3 + $0x80] sm:$0xff]
      %v4957 = vld [vmem:[%s3 + $0x88] sm:$0xff]
      %v4958 = vld [vmem:[%s3 + $0x90] sm:$0xff]
      %v4959 = vld [vmem:[%s3 + $0x98] sm:$0xff]
      %v4960 = vld [vmem:[%s3 + $0xa0] sm:$0xff]
      %v4961 = vld [vmem:[%s3 + $0xa8] sm:$0xff]
      %v4962 = vld [vmem:[%s3 + $0xb0] sm:$0xff]
      %v4963 = vld [vmem:[%s3 + $0xb8] sm:$0xff]
      %v4964 = vld [vmem:[%s3 + $0xc0] sm:$0xff]
      %v4965 = vld [vmem:[%s3 + $0xc8] sm:$0xff]
      %v4966 = vld [vmem:[%s3 + $0xd0] sm:$0xff]
      %v4967 = vld [vmem:[%s3 + $0xd8] sm:$0xff]
      %v4968 = vld [vmem:[%s3 + $0xe0] sm:$0xff]
      %v4969 = vld [vmem:[%s3 + $0xe8] sm:$0xff]
      %v4970 = vld [vmem:[%s3 + $0xf0] sm:$0xff]
      %v4971 = vld [vmem:[%s3 + $0xf8] sm:$0xff]
      %v4972 = vld [vmem:[%s3 + $0x100] sm:$0xff]
      %v4973 = vld [vmem:[%s3 + $0x108] sm:$0xff]
      %v4974 = vld [vmem:[%s3 + $0x110] sm:$0xff]
      %v4975 = vld [vmem:[%s3 + $0x118] sm:$0xff]
      %v4976 = vld [vmem:[%s3 + $0x120] sm:$0xff]
      %v4977 = vld [vmem:[%s3 + $0x128] sm:$0xff]
      %v4978 = vld [vmem:[%s3 + $0x130] sm:$0xff]
      %v4979 = vld [vmem:[%s3 + $0x138] sm:$0xff]
      %v4980 = vld [vmem:[%s3 + $0x140] sm:$0xff]
      %v4981 = vld [vmem:[%s3 + $0x148] sm:$0xff]
      %v4982 = vld [vmem:[%s3 + $0x150] sm:$0xff]
      %v4983 = vld [vmem:[%s3 + $0x158] sm:$0xff]
      %v4984 = vld [vmem:[%s3 + $0x160] sm:$0xff]
      %v4985 = vld [vmem:[%s3 + $0x168] sm:$0xff]
      %v4986 = vld [vmem:[%s3 + $0x170] sm:$0xff]
      %v4987 = vld [vmem:[%s3 + $0x178] sm:$0xff]
      %v4988 = vld [vmem:[%s3 + $0x180] sm:$0xff]
      %v4989 = vld [vmem:[%s3 + $0x188] sm:$0xff]
      %v4990 = vld [vmem:[%s3 + $0x190] sm:$0xff]
      %v4991 = vld [vmem:[%s3 + $0x198] sm:$0xff]
      %v4992 = vld [vmem:[%s3 + $0x1a0] sm:$0xff]
      %v4993 = vld [vmem:[%s3 + $0x1a8] sm:$0xff]
      %v4994 = vld [vmem:[%s3 + $0x1b0] sm:$0xff]
      %v4995 = vld [vmem:[%s3 + $0x1b8] sm:$0xff]
      %v4996 = vld [vmem:[%s3 + $0x1c0] sm:$0xff]
      %v4997 = vld [vmem:[%s3 + $0x1c8] sm:$0xff]
      %v4998 = vld [vmem:[%s3 + $0x1d0] sm:$0xff]
      %v4999 = vld [vmem:[%s3 + $0x1d8] sm:$0xff]
      %v5000 = vld [vmem:[%s3 + $0x1e0] sm:$0xff]
      %v5001 = vld [vmem:[%s3 + $0x1e8] sm:$0xff]
      %v5002 = vld [vmem:[%s3 + $0x1f0] sm:$0xff]
      %v5003 = vld [vmem:[%s3 + $0x1f8] sm:$0xff]
      %v5004 = vld [vmem:[%s3 + $0x200] sm:$0xff]
      %v5005 = vld [vmem:[%s3 + $0x208] sm:$0xff]
      %v5006 = vld [vmem:[%s3 + $0x210] sm:$0xff]
      %v5007 = vld [vmem:[%s3 + $0x218] sm:$0xff]
      %v5008 = vld [vmem:[%s3 + $0x220] sm:$0xff]
      %v5009 = vld [vmem:[%s3 + $0x228] sm:$0xff]
      %v5010 = vld [vmem:[%s3 + $0x230] sm:$0xff]
      %v5011 = vld [vmem:[%s3 + $0x238] sm:$0xff]
      %v5012 = vld [vmem:[%s3 + $0x240] sm:$0xff]
      %v5013 = vld [vmem:[%s3 + $0x248] sm:$0xff]
      %v5014 = vld [vmem:[%s3 + $0x250] sm:$0xff]
      %v5015 = vld [vmem:[%s3 + $0x258] sm:$0xff]
      %v5016 = vld [vmem:[%s3 + $0x260] sm:$0xff]
      %v5017 = vld [vmem:[%s3 + $0x268] sm:$0xff]
      %v5018 = vld [vmem:[%s3 + $0x270] sm:$0xff]
      %v5019 = vld [vmem:[%s3 + $0x278] sm:$0xff]
      %v5020 = vld [vmem:[%s3 + $0x280] sm:$0xff]
      %v5021 = vld [vmem:[%s3 + $0x288] sm:$0xff]
      %v5022 = vld [vmem:[%s3 + $0x290] sm:$0xff]
      %v5023 = vld [vmem:[%s3 + $0x298] sm:$0xff]
      %v5024 = vld [vmem:[%s3 + $0x2a0] sm:$0xff]
      %v5025 = vld [vmem:[%s3 + $0x2a8] sm:$0xff]
      %v5026 = vld [vmem:[%s3 + $0x2b0] sm:$0x3]
      %v5027 = vld [vmem:[%s4] sm:$0x1]
      %v5029 = vlaneseq
      %v5030 = vshrl.u32 %v5029, 7
      %v5031 = vsub.s32 0, %v5030
      %v5032 = vrot.slane %v5027, %v5031
      %vm5034 = vcmask 408576
      %v5035 = vsel %vm5034, %v4748, 0
      %v5037 = vsel %vm5034, %v4749, 0
      %v5039 = vsel %vm5034, %v4750, 0
      %v5041 = vsel %vm5034, %v4751, 0
      %v5043 = vsel %vm5034, %v4752, 0
      %v5045 = vsel %vm5034, %v4753, 0
      %v5047 = vsel %vm5034, %v4754, 0
      %v5049 = vsel %vm5034, %v4755, 0
      %v5051 = vsel %vm5034, %v4756, 0
      %v5053 = vsel %vm5034, %v4757, 0
      %v5055 = vsel %vm5034, %v4758, 0
      %v5057 = vsel %vm5034, %v4759, 0
      %v5059 = vsel %vm5034, %v4760, 0
      %v5061 = vsel %vm5034, %v4761, 0
      %v5063 = vsel %vm5034, %v4762, 0
      %v5065 = vsel %vm5034, %v4763, 0
      %v5067 = vsel %vm5034, %v4764, 0
      %v5069 = vsel %vm5034, %v4765, 0
      %v5071 = vsel %vm5034, %v4766, 0
      %v5073 = vsel %vm5034, %v4767, 0
      %v5075 = vsel %vm5034, %v4768, 0
      %v5077 = vsel %vm5034, %v4769, 0
      %v5079 = vsel %vm5034, %v4770, 0
      %v5081 = vsel %vm5034, %v4771, 0
      %v5083 = vsel %vm5034, %v4772, 0
      %v5085 = vsel %vm5034, %v4773, 0
      %v5087 = vsel %vm5034, %v4774, 0
      %v5089 = vsel %vm5034, %v4775, 0
      %v5091 = vsel %vm5034, %v4776, 0
      %v5093 = vsel %vm5034, %v4777, 0
      %v5095 = vsel %vm5034, %v4778, 0
      %v5097 = vsel %vm5034, %v4779, 0
      %vm5099 = vcmask 1041408
      %v5101 = vsel %vm5099, %v5026, 0
      %5103 = vmatprep.subr.mxu0 0.0
      %5104 = vmatpush1.msra.mxu0 %v4940
      %5105 = vmatprep.subr.mxu0 0.0
      %5106 = vmatpush1.msra.mxu0 %v4941
      %5107 = vmatprep.subr.mxu0 0.0
      %5108 = vmatpush1.msra.mxu0 %v4942
      %5109 = vmatprep.subr.mxu0 0.0
      %5110 = vmatpush1.msra.mxu0 %v4943
      %5111 = vmatprep.subr.mxu0 0.0
      %5112 = vmatpush1.msra.mxu0 %v4944
      %5113 = vmatprep.subr.mxu0 0.0
      %5114 = vmatpush1.msra.mxu0 %v4945
      %5115 = vmatprep.subr.mxu0 0.0
      %5116 = vmatpush1.msra.mxu0 %v4946
      %5117 = vmatprep.subr.mxu0 0.0
      %5118 = vmatpush1.msra.mxu0 %v4947
      %5119 = vmatprep.subr.mxu0 0.0
      %5120 = vmatpush1.msra.mxu0 %v4948
      %5121 = vmatprep.subr.mxu0 0.0
      %5122 = vmatpush1.msra.mxu0 %v4949
      %5123 = vmatprep.subr.mxu0 0.0
      %5124 = vmatpush1.msra.mxu0 %v4950
      %5125 = vmatprep.subr.mxu0 0.0
      %5126 = vmatpush1.msra.mxu0 %v4951
      %5127 = vmatprep.subr.mxu0 0.0
      %5128 = vmatpush1.msra.mxu0 %v4952
      %5129 = vmatprep.subr.mxu0 0.0
      %5130 = vmatpush1.msra.mxu0 %v4953
      %5131 = vmatprep.subr.mxu0 0.0
      %5132 = vmatpush1.msra.mxu0 %v4954
      %5133 = vmatprep.subr.mxu0 0.0
      %5134 = vmatpush1.msra.mxu0 %v4955
      %5135 = vmatprep.subr.mxu0 0.0
      %5136 = vmatpush1.msra.mxu0 %v4956
      %5137 = vmatprep.subr.mxu0 0.0
      %5138 = vmatpush1.msra.mxu0 %v4957
      %5139 = vmatprep.subr.mxu0 0.0
      %5140 = vmatpush1.msra.mxu0 %v4958
      %5141 = vmatprep.subr.mxu0 0.0
      %5142 = vmatpush1.msra.mxu0 %v4959
      %5143 = vmatprep.subr.mxu0 0.0
      %5144 = vmatpush1.msra.mxu0 %v4960
      %5145 = vmatprep.subr.mxu0 0.0
      %5146 = vmatpush1.msra.mxu0 %v4961
      %5147 = vmatprep.subr.mxu0 0.0
      %5148 = vmatpush1.msra.mxu0 %v4962
      %5149 = vmatprep.subr.mxu0 0.0
      %5150 = vmatpush1.msra.mxu0 %v4963
      %5151 = vmatprep.subr.mxu0 0.0
      %5152 = vmatpush1.msra.mxu0 %v4964
      %5153 = vmatprep.subr.mxu0 0.0
      %5154 = vmatpush1.msra.mxu0 %v4965
      %5155 = vmatprep.subr.mxu0 0.0
      %5156 = vmatpush1.msra.mxu0 %v4966
      %5157 = vmatprep.subr.mxu0 0.0
      %5158 = vmatpush1.msra.mxu0 %v4967
      %5159 = vmatprep.subr.mxu0 0.0
      %5160 = vmatpush1.msra.mxu0 %v4968
      %5161 = vmatprep.subr.mxu0 0.0
      %5162 = vmatpush1.msra.mxu0 %v4969
      %5163 = vmatprep.subr.mxu0 0.0
      %5164 = vmatpush1.msra.mxu0 %v4970
      %5165 = vmatprep.subr.mxu0 0.0
      %5166 = vmatpush1.msra.mxu0 %v4971
      %5167 = vmatprep.mubr.f32.mxu0 %v4812
      %5168 = vmatmul.mubr.f32.gmra.mrb[0].mxu0 %v3760
      %v5169 = vpop.f32.mrb[0].mxu0
      %v5170 = vadd.f32 %v5032, %v5169
      %v5171 = vpop.f32.mrb[0].mxu0
      %5172 = vmatprep.mubr.f32.mxu0 %v4813
      %5173 = vmatmul.mubr.f32.gmra.mrb[0].mxu0 %v3762
      %v5174 = vpop.f32.mrb[0].mxu0
      %v5175 = vadd.f32 %v5032, %v5174
      %v5176 = vpop.f32.mrb[0].mxu0
      %5177 = vmatprep.mubr.f32.mxu0 %v4814
      %5178 = vmatmul.mubr.f32.gmra.mrb[0].mxu0 %v3764
      %v5179 = vpop.f32.mrb[0].mxu0
      %v5180 = vadd.f32 %v5032, %v5179
      %v5181 = vpop.f32.mrb[0].mxu0
      %5182 = vmatprep.mubr.f32.mxu0 %v4815
      %5183 = vmatmul.mubr.f32.gmra.mrb[0].mxu0 %v3766
      %v5184 = vpop.f32.mrb[0].mxu0
      %v5185 = vadd.f32 %v5032, %v5184
      %v5186 = vpop.f32.mrb[0].mxu0
      %5187 = vmatprep.mubr.f32.mxu0 %v4816
      %5188 = vmatmul.mubr.f32.gmra.mrb[0].mxu0 %v3768
      %v5189 = vpop.f32.mrb[0].mxu0
      %v5190 = vadd.f32 %v5032, %v5189
      %v5191 = vpop.f32.mrb[0].mxu0
      %5192 = vmatprep.mubr.f32.mxu0 %v4817
      %5193 = vmatmul.mubr.f32.gmra.mrb[0].mxu0 %v3770
      %v5194 = vpop.f32.mrb[0].mxu0
      %v5195 = vadd.f32 %v5032, %v5194
      %v5196 = vpop.f32.mrb[0].mxu0
      %5197 = vmatprep.mubr.f32.mxu0 %v4818
      %5198 = vmatmul.mubr.f32.gmra.mrb[0].mxu0 %v3772
      %v5199 = vpop.f32.mrb[0].mxu0
      %v5200 = vadd.f32 %v5032, %v5199
      %v5201 = vpop.f32.mrb[0].mxu0
      %5202 = vmatprep.mubr.f32.mxu0 %v4819
      %5203 = vmatmul.mubr.f32.gmra.mrb[0].mxu0 %v3774
      %v5204 = vpop.f32.mrb[0].mxu0
      %v5205 = vadd.f32 %v5032, %v5204
      %v5206 = vpop.f32.mrb[0].mxu0
      %5207 = vmatprep.mubr.f32.mxu0 %v4820
      %5208 = vmatmul.mubr.f32.gmra.mrb[0].mxu0 %v3776
      %v5209 = vpop.f32.mrb[0].mxu0
      %v5210 = vadd.f32 %v5032, %v5209
      %v5211 = vpop.f32.mrb[0].mxu0
      %5212 = vmatprep.mubr.f32.mxu0 %v4821
      %5213 = vmatmul.mubr.f32.gmra.mrb[0].mxu0 %v3778
      %v5214 = vpop.f32.mrb[0].mxu0
      %v5215 = vadd.f32 %v5032, %v5214
      %v5216 = vpop.f32.mrb[0].mxu0
      %5217 = vmatprep.mubr.f32.mxu0 %v4822
      %5218 = vmatmul.mubr.f32.gmra.mrb[0].mxu0 %v3780
      %v5219 = vpop.f32.mrb[0].mxu0
      %v5220 = vadd.f32 %v5032, %v5219
      %v5221 = vpop.f32.mrb[0].mxu0
      %5222 = vmatprep.mubr.f32.mxu0 %v4823
      %5223 = vmatmul.mubr.f32.gmra.mrb[0].mxu0 %v3782
      %v5224 = vpop.f32.mrb[0].mxu0
      %v5225 = vadd.f32 %v5032, %v5224
      %v5226 = vpop.f32.mrb[0].mxu0
      %5227 = vmatprep.mubr.f32.mxu0 %v4824
      %5228 = vmatmul.mubr.f32.gmra.mrb[0].mxu0 %v3784
      %v5229 = vpop.f32.mrb[0].mxu0
      %v5230 = vadd.f32 %v5032, %v5229
      %v5231 = vpop.f32.mrb[0].mxu0
      %5232 = vmatprep.mubr.f32.mxu0 %v4825
      %5233 = vmatmul.mubr.f32.gmra.mrb[0].mxu0 %v3786
      %v5234 = vpop.f32.mrb[0].mxu0
      %v5235 = vadd.f32 %v5032, %v5234
      %v5236 = vpop.f32.mrb[0].mxu0
      %5237 = vmatprep.mubr.f32.mxu0 %v4826
      %5238 = vmatmul.mubr.f32.gmra.mrb[0].mxu0 %v3788
      %v5239 = vpop.f32.mrb[0].mxu0
      %v5240 = vadd.f32 %v5032, %v5239
      %v5241 = vpop.f32.mrb[0].mxu0
      %5242 = vmatprep.mubr.f32.mxu0 %v4827
      %5243 = vmatmul.mubr.f32.gmra.mrb[0].mxu0 %v3790
      %v5244 = vpop.f32.mrb[0].mxu0
      %v5245 = vadd.f32 %v5032, %v5244
      %v5246 = vpop.f32.mrb[0].mxu0
      %5247 = vmatprep.mubr.f32.mxu0 %v4828
      %5248 = vmatmul.mubr.f32.gmra.mrb[0].mxu0 %v3792
      %v5249 = vpop.f32.mrb[0].mxu0
      %v5250 = vadd.f32 %v5032, %v5249
      %v5251 = vpop.f32.mrb[0].mxu0
      %5252 = vmatprep.mubr.f32.mxu0 %v4829
      %5253 = vmatmul.mubr.f32.gmra.mrb[0].mxu0 %v3794
      %v5254 = vpop.f32.mrb[0].mxu0
      %v5255 = vadd.f32 %v5032, %v5254
      %v5256 = vpop.f32.mrb[0].mxu0
      %5257 = vmatprep.mubr.f32.mxu0 %v4830
      %5258 = vmatmul.mubr.f32.gmra.mrb[0].mxu0 %v3796
      %v5259 = vpop.f32.mrb[0].mxu0
      %v5260 = vadd.f32 %v5032, %v5259
      %v5261 = vpop.f32.mrb[0].mxu0
      %5262 = vmatprep.mubr.f32.mxu0 %v4831
      %5263 = vmatmul.mubr.f32.gmra.mrb[0].mxu0 %v3798
      %v5264 = vpop.f32.mrb[0].mxu0
      %v5265 = vadd.f32 %v5032, %v5264
      %v5266 = vpop.f32.mrb[0].mxu0
      %5267 = vmatprep.mubr.f32.mxu0 %v4832
      %5268 = vmatmul.mubr.f32.gmra.mrb[0].mxu0 %v3800
      %v5269 = vpop.f32.mrb[0].mxu0
      %v5270 = vadd.f32 %v5032, %v5269
      %v5271 = vpop.f32.mrb[0].mxu0
      %5272 = vmatprep.mubr.f32.mxu0 %v4833
      %5273 = vmatmul.mubr.f32.gmra.mrb[0].mxu0 %v3802
      %v5274 = vpop.f32.mrb[0].mxu0
      %v5275 = vadd.f32 %v5032, %v5274
      %v5276 = vpop.f32.mrb[0].mxu0
      %5277 = vmatprep.mubr.f32.mxu0 %v4834
      %5278 = vmatmul.mubr.f32.gmra.mrb[0].mxu0 %v3804
      %v5279 = vpop.f32.mrb[0].mxu0
      %v5280 = vadd.f32 %v5032, %v5279
      %v5281 = vpop.f32.mrb[0].mxu0
      %5282 = vmatprep.mubr.f32.mxu0 %v4835
      %5283 = vmatmul.mubr.f32.gmra.mrb[0].mxu0 %v3806
      %v5284 = vpop.f32.mrb[0].mxu0
      %v5285 = vadd.f32 %v5032, %v5284
      %v5286 = vpop.f32.mrb[0].mxu0
      %5287 = vmatprep.mubr.f32.mxu0 %v4836
      %5288 = vmatmul.mubr.f32.gmra.mrb[0].mxu0 %v3808
      %v5289 = vpop.f32.mrb[0].mxu0
      %v5290 = vadd.f32 %v5032, %v5289
      %v5291 = vpop.f32.mrb[0].mxu0
      %5292 = vmatprep.mubr.f32.mxu0 %v4837
      %5293 = vmatmul.mubr.f32.gmra.mrb[0].mxu0 %v3810
      %v5294 = vpop.f32.mrb[0].mxu0
      %v5295 = vadd.f32 %v5032, %v5294
      %v5296 = vpop.f32.mrb[0].mxu0
      %5297 = vmatprep.mubr.f32.mxu0 %v4838
      %5298 = vmatmul.mubr.f32.gmra.mrb[0].mxu0 %v3812
      %v5299 = vpop.f32.mrb[0].mxu0
      %v5300 = vadd.f32 %v5032, %v5299
      %v5301 = vpop.f32.mrb[0].mxu0
      %5302 = vmatprep.mubr.f32.mxu0 %v4839
      %5303 = vmatmul.mubr.f32.gmra.mrb[0].mxu0 %v3814
      %v5304 = vpop.f32.mrb[0].mxu0
      %v5305 = vadd.f32 %v5032, %v5304
      %v5306 = vpop.f32.mrb[0].mxu0
      %5307 = vmatprep.mubr.f32.mxu0 %v4840
      %5308 = vmatmul.mubr.f32.gmra.mrb[0].mxu0 %v3816
      %v5309 = vpop.f32.mrb[0].mxu0
      %v5310 = vadd.f32 %v5032, %v5309
      %v5311 = vpop.f32.mrb[0].mxu0
      %5312 = vmatprep.mubr.f32.mxu0 %v4841
      %5313 = vmatmul.mubr.f32.gmra.mrb[0].mxu0 %v3818
      %v5314 = vpop.f32.mrb[0].mxu0
      %v5315 = vadd.f32 %v5032, %v5314
      %v5316 = vpop.f32.mrb[0].mxu0
      %5317 = vmatprep.mubr.f32.mxu0 %v4842
      %5318 = vmatmul.mubr.f32.gmra.mrb[0].mxu0 %v3820
      %v5319 = vpop.f32.mrb[0].mxu0
      %v5320 = vadd.f32 %v5032, %v5319
      %v5321 = vpop.f32.mrb[0].mxu0
      %5322 = vmatprep.mubr.f32.mxu0 %v4843
      %5323 = vmatmul.mubr.f32.gmra.mrb[0].mxu0 %v3822
      %v5324 = vpop.f32.mrb[0].mxu0
      %v5325 = vadd.f32 %v5032, %v5324
      %v5326 = vpop.f32.mrb[0].mxu0
      %5327 = vdwg.mxu0
      %5328 = vmatprep.subr.mxu0 0.0
      %5329 = vmatpush1.msra.mxu0 %v4972
      %5330 = vmatprep.subr.mxu0 0.0
      %5331 = vmatpush1.msra.mxu0 %v4973
      %5332 = vmatprep.subr.mxu0 0.0
      %5333 = vmatpush1.msra.mxu0 %v4974
      %5334 = vmatprep.subr.mxu0 0.0
      %5335 = vmatpush1.msra.mxu0 %v4975
      %5336 = vmatprep.subr.mxu0 0.0
      %5337 = vmatpush1.msra.mxu0 %v4976
      %5338 = vmatprep.subr.mxu0 0.0
      %5339 = vmatpush1.msra.mxu0 %v4977
      %5340 = vmatprep.subr.mxu0 0.0
      %5341 = vmatpush1.msra.mxu0 %v4978
      %5342 = vmatprep.subr.mxu0 0.0
      %5343 = vmatpush1.msra.mxu0 %v4979
      %5344 = vmatprep.subr.mxu0 0.0
      %5345 = vmatpush1.msra.mxu0 %v4980
      %5346 = vmatprep.subr.mxu0 0.0
      %5347 = vmatpush1.msra.mxu0 %v4981
      %5348 = vmatprep.subr.mxu0 0.0
      %5349 = vmatpush1.msra.mxu0 %v4982
      %5350 = vmatprep.subr.mxu0 0.0
      %5351 = vmatpush1.msra.mxu0 %v4983
      %5352 = vmatprep.subr.mxu0 0.0
      %5353 = vmatpush1.msra.mxu0 %v4984
      %5354 = vmatprep.subr.mxu0 0.0
      %5355 = vmatpush1.msra.mxu0 %v4985
      %5356 = vmatprep.subr.mxu0 0.0
      %5357 = vmatpush1.msra.mxu0 %v4986
      %5358 = vmatprep.subr.mxu0 0.0
      %5359 = vmatpush1.msra.mxu0 %v4987
      %5360 = vmatprep.subr.mxu0 0.0
      %5361 = vmatpush1.msra.mxu0 %v4988
      %5362 = vmatprep.subr.mxu0 0.0
      %5363 = vmatpush1.msra.mxu0 %v4989
      %5364 = vmatprep.subr.mxu0 0.0
      %5365 = vmatpush1.msra.mxu0 %v4990
      %5366 = vmatprep.subr.mxu0 0.0
      %5367 = vmatpush1.msra.mxu0 %v4991
      %5368 = vmatprep.subr.mxu0 0.0
      %5369 = vmatpush1.msra.mxu0 %v4992
      %5370 = vmatprep.subr.mxu0 0.0
      %5371 = vmatpush1.msra.mxu0 %v4993
      %5372 = vmatprep.subr.mxu0 0.0
      %5373 = vmatpush1.msra.mxu0 %v4994
      %5374 = vmatprep.subr.mxu0 0.0
      %5375 = vmatpush1.msra.mxu0 %v4995
      %5376 = vmatprep.subr.mxu0 0.0
      %5377 = vmatpush1.msra.mxu0 %v4996
      %5378 = vmatprep.subr.mxu0 0.0
      %5379 = vmatpush1.msra.mxu0 %v4997
      %5380 = vmatprep.subr.mxu0 0.0
      %5381 = vmatpush1.msra.mxu0 %v4998
      %5382 = vmatprep.subr.mxu0 0.0
      %5383 = vmatpush1.msra.mxu0 %v4999
      %5384 = vmatprep.subr.mxu0 0.0
      %5385 = vmatpush1.msra.mxu0 %v5000
      %5386 = vmatprep.subr.mxu0 0.0
      %5387 = vmatpush1.msra.mxu0 %v5001
      %5388 = vmatprep.subr.mxu0 0.0
      %5389 = vmatpush1.msra.mxu0 %v5002
      %5390 = vmatprep.subr.mxu0 0.0
      %5391 = vmatpush1.msra.mxu0 %v5003
      %5392 = vmatprep.mubr.f32.mxu0 %v4876
      %5393 = vmatmul.mubr.f32.gmra.mrb[0].mxu0 %v4844
      %v5394 = vpop.f32.mrb[0].mxu0
      %v5395 = vadd.f32 %v5170, %v5394
      %v5396 = vpop.f32.mrb[0].mxu0
      %5397 = vmatprep.mubr.f32.mxu0 %v4877
      %5398 = vmatmul.mubr.f32.gmra.mrb[0].mxu0 %v4845
      %v5399 = vpop.f32.mrb[0].mxu0
      %v5400 = vadd.f32 %v5175, %v5399
      %v5401 = vpop.f32.mrb[0].mxu0
      %5402 = vmatprep.mubr.f32.mxu0 %v4878
      %5403 = vmatmul.mubr.f32.gmra.mrb[0].mxu0 %v4846
      %v5404 = vpop.f32.mrb[0].mxu0
      %v5405 = vadd.f32 %v5180, %v5404
      %v5406 = vpop.f32.mrb[0].mxu0
      %5407 = vmatprep.mubr.f32.mxu0 %v4879
      %5408 = vmatmul.mubr.f32.gmra.mrb[0].mxu0 %v4847
      %v5409 = vpop.f32.mrb[0].mxu0
      %v5410 = vadd.f32 %v5185, %v5409
      %v5411 = vpop.f32.mrb[0].mxu0
      %5412 = vmatprep.mubr.f32.mxu0 %v4880
      %5413 = vmatmul.mubr.f32.gmra.mrb[0].mxu0 %v4848
      %v5414 = vpop.f32.mrb[0].mxu0
      %v5415 = vadd.f32 %v5190, %v5414
      %v5416 = vpop.f32.mrb[0].mxu0
      %5417 = vmatprep.mubr.f32.mxu0 %v4881
      %5418 = vmatmul.mubr.f32.gmra.mrb[0].mxu0 %v4849
      %v5419 = vpop.f32.mrb[0].mxu0
      %v5420 = vadd.f32 %v5195, %v5419
      %v5421 = vpop.f32.mrb[0].mxu0
      %5422 = vmatprep.mubr.f32.mxu0 %v4882
      %5423 = vmatmul.mubr.f32.gmra.mrb[0].mxu0 %v4850
      %v5424 = vpop.f32.mrb[0].mxu0
      %v5425 = vadd.f32 %v5200, %v5424
      %v5426 = vpop.f32.mrb[0].mxu0
      %5427 = vmatprep.mubr.f32.mxu0 %v4883
      %5428 = vmatmul.mubr.f32.gmra.mrb[0].mxu0 %v4851
      %v5429 = vpop.f32.mrb[0].mxu0
      %v5430 = vadd.f32 %v5205, %v5429
      %v5431 = vpop.f32.mrb[0].mxu0
      %5432 = vmatprep.mubr.f32.mxu0 %v4884
      %5433 = vmatmul.mubr.f32.gmra.mrb[0].mxu0 %v4852
      %v5434 = vpop.f32.mrb[0].mxu0
      %v5435 = vadd.f32 %v5210, %v5434
      %v5436 = vpop.f32.mrb[0].mxu0
      %5437 = vmatprep.mubr.f32.mxu0 %v4885
      %5438 = vmatmul.mubr.f32.gmra.mrb[0].mxu0 %v4853
      %v5439 = vpop.f32.mrb[0].mxu0
      %v5440 = vadd.f32 %v5215, %v5439
      %v5441 = vpop.f32.mrb[0].mxu0
      %5442 = vmatprep.mubr.f32.mxu0 %v4886
      %5443 = vmatmul.mubr.f32.gmra.mrb[0].mxu0 %v4854
      %v5444 = vpop.f32.mrb[0].mxu0
      %v5445 = vadd.f32 %v5220, %v5444
      %v5446 = vpop.f32.mrb[0].mxu0
      %5447 = vmatprep.mubr.f32.mxu0 %v4887
      %5448 = vmatmul.mubr.f32.gmra.mrb[0].mxu0 %v4855
      %v5449 = vpop.f32.mrb[0].mxu0
      %v5450 = vadd.f32 %v5225, %v5449
      %v5451 = vpop.f32.mrb[0].mxu0
      %5452 = vmatprep.mubr.f32.mxu0 %v4888
      %5453 = vmatmul.mubr.f32.gmra.mrb[0].mxu0 %v4856
      %v5454 = vpop.f32.mrb[0].mxu0
      %v5455 = vadd.f32 %v5230, %v5454
      %v5456 = vpop.f32.mrb[0].mxu0
      %5457 = vmatprep.mubr.f32.mxu0 %v4889
      %5458 = vmatmul.mubr.f32.gmra.mrb[0].mxu0 %v4857
      %v5459 = vpop.f32.mrb[0].mxu0
      %v5460 = vadd.f32 %v5235, %v5459
      %v5461 = vpop.f32.mrb[0].mxu0
      %5462 = vmatprep.mubr.f32.mxu0 %v4890
      %5463 = vmatmul.mubr.f32.gmra.mrb[0].mxu0 %v4858
      %v5464 = vpop.f32.mrb[0].mxu0
      %v5465 = vadd.f32 %v5240, %v5464
      %v5466 = vpop.f32.mrb[0].mxu0
      %5467 = vmatprep.mubr.f32.mxu0 %v4891
      %5468 = vmatmul.mubr.f32.gmra.mrb[0].mxu0 %v4859
      %v5469 = vpop.f32.mrb[0].mxu0
      %v5470 = vadd.f32 %v5245, %v5469
      %v5471 = vpop.f32.mrb[0].mxu0
      %5472 = vmatprep.mubr.f32.mxu0 %v4892
      %5473 = vmatmul.mubr.f32.gmra.mrb[0].mxu0 %v4860
      %v5474 = vpop.f32.mrb[0].mxu0
      %v5475 = vadd.f32 %v5250, %v5474
      %v5476 = vpop.f32.mrb[0].mxu0
      %5477 = vmatprep.mubr.f32.mxu0 %v4893
      %5478 = vmatmul.mubr.f32.gmra.mrb[0].mxu0 %v4861
      %v5479 = vpop.f32.mrb[0].mxu0
      %v5480 = vadd.f32 %v5255, %v5479
      %v5481 = vpop.f32.mrb[0].mxu0
      %5482 = vmatprep.mubr.f32.mxu0 %v4894
      %5483 = vmatmul.mubr.f32.gmra.mrb[0].mxu0 %v4862
      %v5484 = vpop.f32.mrb[0].mxu0
      %v5485 = vadd.f32 %v5260, %v5484
      %v5486 = vpop.f32.mrb[0].mxu0
      %5487 = vmatprep.mubr.f32.mxu0 %v4895
      %5488 = vmatmul.mubr.f32.gmra.mrb[0].mxu0 %v4863
      %v5489 = vpop.f32.mrb[0].mxu0
      %v5490 = vadd.f32 %v5265, %v5489
      %v5491 = vpop.f32.mrb[0].mxu0
      %5492 = vmatprep.mubr.f32.mxu0 %v4896
      %5493 = vmatmul.mubr.f32.gmra.mrb[0].mxu0 %v4864
      %v5494 = vpop.f32.mrb[0].mxu0
      %v5495 = vadd.f32 %v5270, %v5494
      %v5496 = vpop.f32.mrb[0].mxu0
      %5497 = vmatprep.mubr.f32.mxu0 %v4897
      %5498 = vmatmul.mubr.f32.gmra.mrb[0].mxu0 %v4865
      %v5499 = vpop.f32.mrb[0].mxu0
      %v5500 = vadd.f32 %v5275, %v5499
      %v5501 = vpop.f32.mrb[0].mxu0
      %5502 = vmatprep.mubr.f32.mxu0 %v4898
      %5503 = vmatmul.mubr.f32.gmra.mrb[0].mxu0 %v4866
      %v5504 = vpop.f32.mrb[0].mxu0
      %v5505 = vadd.f32 %v5280, %v5504
      %v5506 = vpop.f32.mrb[0].mxu0
      %5507 = vmatprep.mubr.f32.mxu0 %v4899
      %5508 = vmatmul.mubr.f32.gmra.mrb[0].mxu0 %v4867
      %v5509 = vpop.f32.mrb[0].mxu0
      %v5510 = vadd.f32 %v5285, %v5509
      %v5511 = vpop.f32.mrb[0].mxu0
      %5512 = vmatprep.mubr.f32.mxu0 %v4900
      %5513 = vmatmul.mubr.f32.gmra.mrb[0].mxu0 %v4868
      %v5514 = vpop.f32.mrb[0].mxu0
      %v5515 = vadd.f32 %v5290, %v5514
      %v5516 = vpop.f32.mrb[0].mxu0
      %5517 = vmatprep.mubr.f32.mxu0 %v4901
      %5518 = vmatmul.mubr.f32.gmra.mrb[0].mxu0 %v4869
      %v5519 = vpop.f32.mrb[0].mxu0
      %v5520 = vadd.f32 %v5295, %v5519
      %v5521 = vpop.f32.mrb[0].mxu0
      %5522 = vmatprep.mubr.f32.mxu0 %v4902
      %5523 = vmatmul.mubr.f32.gmra.mrb[0].mxu0 %v4870
      %v5524 = vpop.f32.mrb[0].mxu0
      %v5525 = vadd.f32 %v5300, %v5524
      %v5526 = vpop.f32.mrb[0].mxu0
      %5527 = vmatprep.mubr.f32.mxu0 %v4903
      %5528 = vmatmul.mubr.f32.gmra.mrb[0].mxu0 %v4871
      %v5529 = vpop.f32.mrb[0].mxu0
      %v5530 = vadd.f32 %v5305, %v5529
      %v5531 = vpop.f32.mrb[0].mxu0
      %5532 = vmatprep.mubr.f32.mxu0 %v4904
      %5533 = vmatmul.mubr.f32.gmra.mrb[0].mxu0 %v4872
      %v5534 = vpop.f32.mrb[0].mxu0
      %v5535 = vadd.f32 %v5310, %v5534
      %v5536 = vpop.f32.mrb[0].mxu0
      %5537 = vmatprep.mubr.f32.mxu0 %v4905
      %5538 = vmatmul.mubr.f32.gmra.mrb[0].mxu0 %v4873
      %v5539 = vpop.f32.mrb[0].mxu0
      %v5540 = vadd.f32 %v5315, %v5539
      %v5541 = vpop.f32.mrb[0].mxu0
      %5542 = vmatprep.mubr.f32.mxu0 %v4906
      %5543 = vmatmul.mubr.f32.gmra.mrb[0].mxu0 %v4874
      %v5544 = vpop.f32.mrb[0].mxu0
      %v5545 = vadd.f32 %v5320, %v5544
      %v5546 = vpop.f32.mrb[0].mxu0
      %5547 = vmatprep.mubr.f32.mxu0 %v4907
      %5548 = vmatmul.mubr.f32.gmra.mrb[0].mxu0 %v4875
      %v5549 = vpop.f32.mrb[0].mxu0
      %v5550 = vadd.f32 %v5325, %v5549
      %v5551 = vpop.f32.mrb[0].mxu0
      %5552 = vdwg.mxu0
      %5553 = vmatprep.subr.mxu0 0.0
      %5554 = vmatpush1.msra.mxu0 %v5004
      %5555 = vmatprep.subr.mxu0 0.0
      %5556 = vmatpush1.msra.mxu0 %v5005
      %5557 = vmatprep.subr.mxu0 0.0
      %5558 = vmatpush1.msra.mxu0 %v5006
      %5559 = vmatprep.subr.mxu0 0.0
      %5560 = vmatpush1.msra.mxu0 %v5007
      %5561 = vmatprep.subr.mxu0 0.0
      %5562 = vmatpush1.msra.mxu0 %v5008
      %5563 = vmatprep.subr.mxu0 0.0
      %5564 = vmatpush1.msra.mxu0 %v5009
      %5565 = vmatprep.subr.mxu0 0.0
      %5566 = vmatpush1.msra.mxu0 %v5010
      %5567 = vmatprep.subr.mxu0 0.0
      %5568 = vmatpush1.msra.mxu0 %v5011
      %5569 = vmatprep.subr.mxu0 0.0
      %5570 = vmatpush1.msra.mxu0 %v5012
      %5571 = vmatprep.subr.mxu0 0.0
      %5572 = vmatpush1.msra.mxu0 %v5013
      %5573 = vmatprep.subr.mxu0 0.0
      %5574 = vmatpush1.msra.mxu0 %v5014
      %5575 = vmatprep.subr.mxu0 0.0
      %5576 = vmatpush1.msra.mxu0 %v5015
      %5577 = vmatprep.subr.mxu0 0.0
      %5578 = vmatpush1.msra.mxu0 %v5016
      %5579 = vmatprep.subr.mxu0 0.0
      %5580 = vmatpush1.msra.mxu0 %v5017
      %5581 = vmatprep.subr.mxu0 0.0
      %5582 = vmatpush1.msra.mxu0 %v5018
      %5583 = vmatprep.subr.mxu0 0.0
      %5584 = vmatpush1.msra.mxu0 %v5019
      %5585 = vmatprep.subr.mxu0 0.0
      %5586 = vmatpush1.msra.mxu0 %v5020
      %5587 = vmatprep.subr.mxu0 0.0
      %5588 = vmatpush1.msra.mxu0 %v5021
      %5589 = vmatprep.subr.mxu0 0.0
      %5590 = vmatpush1.msra.mxu0 %v5022
      %5591 = vmatprep.subr.mxu0 0.0
      %5592 = vmatpush1.msra.mxu0 %v5023
      %5593 = vmatprep.subr.mxu0 0.0
      %5594 = vmatpush1.msra.mxu0 %v5024
      %5595 = vmatprep.subr.mxu0 0.0
      %5596 = vmatpush1.msra.mxu0 %v5025
      %5597 = vmatprep.subr.mxu0 0.0
      %5598 = vmatpush1.msra.mxu0 %v5101
      %5599 = vmatprep.subr.mxu0 0.0
      %5600 = vmatpush1.msra.mxu0 0.0
      %5601 = vmatprep.subr.mxu0 0.0
      %5602 = vmatpush1.msra.mxu0 0.0
      %5603 = vmatprep.subr.mxu0 0.0
      %5604 = vmatpush1.msra.mxu0 0.0
      %5605 = vmatprep.subr.mxu0 0.0
      %5606 = vmatpush1.msra.mxu0 0.0
      %5607 = vmatprep.subr.mxu0 0.0
      %5608 = vmatpush1.msra.mxu0 0.0
      %5609 = vmatprep.subr.mxu0 0.0
      %5610 = vmatpush1.msra.mxu0 0.0
      %5611 = vmatprep.subr.mxu0 0.0
      %5612 = vmatpush1.msra.mxu0 0.0
      %5613 = vmatprep.subr.mxu0 0.0
      %5614 = vmatpush1.msra.mxu0 0.0
      %5615 = vmatprep.subr.mxu0 0.0
      %5616 = vmatpush1.msra.mxu0 0.0
      %5617 = vmatprep.mubr.f32.mxu0 %v5035
      %5618 = vmatmul.mubr.f32.gmra.mrb[0].mxu0 %v4908
      %v5619 = vpop.f32.mrb[0].mxu0
      %v5620 = vadd.f32 %v5395, %v5619
      %v5621 = vpop.f32.mrb[0].mxu0
      %5622 = vmatprep.mubr.f32.mxu0 %v5037
      %5623 = vmatmul.mubr.f32.gmra.mrb[0].mxu0 %v4909
      %v5624 = vpop.f32.mrb[0].mxu0
      %v5625 = vadd.f32 %v5400, %v5624
      %v5626 = vpop.f32.mrb[0].mxu0
      %5627 = vmatprep.mubr.f32.mxu0 %v5039
      %5628 = vmatmul.mubr.f32.gmra.mrb[0].mxu0 %v4910
      %v5629 = vpop.f32.mrb[0].mxu0
      %v5630 = vadd.f32 %v5405, %v5629
      %v5631 = vpop.f32.mrb[0].mxu0
      %5632 = vmatprep.mubr.f32.mxu0 %v5041
      %5633 = vmatmul.mubr.f32.gmra.mrb[0].mxu0 %v4911
      %v5634 = vpop.f32.mrb[0].mxu0
      %v5635 = vadd.f32 %v5410, %v5634
      %v5636 = vpop.f32.mrb[0].mxu0
      %5637 = vmatprep.mubr.f32.mxu0 %v5043
      %5638 = vmatmul.mubr.f32.gmra.mrb[0].mxu0 %v4912
      %v5639 = vpop.f32.mrb[0].mxu0
      %v5640 = vadd.f32 %v5415, %v5639
      %v5641 = vpop.f32.mrb[0].mxu0
      %5642 = vmatprep.mubr.f32.mxu0 %v5045
      %5643 = vmatmul.mubr.f32.gmra.mrb[0].mxu0 %v4913
      %v5644 = vpop.f32.mrb[0].mxu0
      %v5645 = vadd.f32 %v5420, %v5644
      %v5646 = vpop.f32.mrb[0].mxu0
      %5647 = vmatprep.mubr.f32.mxu0 %v5047
      %5648 = vmatmul.mubr.f32.gmra.mrb[0].mxu0 %v4914
      %v5649 = vpop.f32.mrb[0].mxu0
      %v5650 = vadd.f32 %v5425, %v5649
      %v5651 = vpop.f32.mrb[0].mxu0
      %5652 = vmatprep.mubr.f32.mxu0 %v5049
      %5653 = vmatmul.mubr.f32.gmra.mrb[0].mxu0 %v4915
      %v5654 = vpop.f32.mrb[0].mxu0
      %v5655 = vadd.f32 %v5430, %v5654
      %v5656 = vpop.f32.mrb[0].mxu0
      %5657 = vmatprep.mubr.f32.mxu0 %v5051
      %5658 = vmatmul.mubr.f32.gmra.mrb[0].mxu0 %v4916
      %v5659 = vpop.f32.mrb[0].mxu0
      %v5660 = vadd.f32 %v5435, %v5659
      %v5661 = vpop.f32.mrb[0].mxu0
      %5662 = vmatprep.mubr.f32.mxu0 %v5053
      %5663 = vmatmul.mubr.f32.gmra.mrb[0].mxu0 %v4917
      %v5664 = vpop.f32.mrb[0].mxu0
      %v5665 = vadd.f32 %v5440, %v5664
      %v5666 = vpop.f32.mrb[0].mxu0
      %5667 = vmatprep.mubr.f32.mxu0 %v5055
      %5668 = vmatmul.mubr.f32.gmra.mrb[0].mxu0 %v4918
      %v5669 = vpop.f32.mrb[0].mxu0
      %v5670 = vadd.f32 %v5445, %v5669
      %v5671 = vpop.f32.mrb[0].mxu0
      %5672 = vmatprep.mubr.f32.mxu0 %v5057
      %5673 = vmatmul.mubr.f32.gmra.mrb[0].mxu0 %v4919
      %v5674 = vpop.f32.mrb[0].mxu0
      %v5675 = vadd.f32 %v5450, %v5674
      %v5676 = vpop.f32.mrb[0].mxu0
      %5677 = vmatprep.mubr.f32.mxu0 %v5059
      %5678 = vmatmul.mubr.f32.gmra.mrb[0].mxu0 %v4920
      %v5679 = vpop.f32.mrb[0].mxu0
      %v5680 = vadd.f32 %v5455, %v5679
      %v5681 = vpop.f32.mrb[0].mxu0
      %5682 = vmatprep.mubr.f32.mxu0 %v5061
      %5683 = vmatmul.mubr.f32.gmra.mrb[0].mxu0 %v4921
      %v5684 = vpop.f32.mrb[0].mxu0
      %v5685 = vadd.f32 %v5460, %v5684
      %v5686 = vpop.f32.mrb[0].mxu0
      %5687 = vmatprep.mubr.f32.mxu0 %v5063
      %5688 = vmatmul.mubr.f32.gmra.mrb[0].mxu0 %v4922
      %v5689 = vpop.f32.mrb[0].mxu0
      %v5690 = vadd.f32 %v5465, %v5689
      %v5691 = vpop.f32.mrb[0].mxu0
      %5692 = vmatprep.mubr.f32.mxu0 %v5065
      %5693 = vmatmul.mubr.f32.gmra.mrb[0].mxu0 %v4923
      %v5694 = vpop.f32.mrb[0].mxu0
      %v5695 = vadd.f32 %v5470, %v5694
      %v5696 = vpop.f32.mrb[0].mxu0
      %5697 = vmatprep.mubr.f32.mxu0 %v5067
      %5698 = vmatmul.mubr.f32.gmra.mrb[0].mxu0 %v4924
      %v5699 = vpop.f32.mrb[0].mxu0
      %v5700 = vadd.f32 %v5475, %v5699
      %v5701 = vpop.f32.mrb[0].mxu0
      %5702 = vmatprep.mubr.f32.mxu0 %v5069
      %5703 = vmatmul.mubr.f32.gmra.mrb[0].mxu0 %v4925
      %v5704 = vpop.f32.mrb[0].mxu0
      %v5705 = vadd.f32 %v5480, %v5704
      %v5706 = vpop.f32.mrb[0].mxu0
      %5707 = vmatprep.mubr.f32.mxu0 %v5071
      %5708 = vmatmul.mubr.f32.gmra.mrb[0].mxu0 %v4926
      %v5709 = vpop.f32.mrb[0].mxu0
      %v5710 = vadd.f32 %v5485, %v5709
      %v5711 = vpop.f32.mrb[0].mxu0
      %5712 = vmatprep.mubr.f32.mxu0 %v5073
      %5713 = vmatmul.mubr.f32.gmra.mrb[0].mxu0 %v4927
      %v5714 = vpop.f32.mrb[0].mxu0
      %v5715 = vadd.f32 %v5490, %v5714
      %v5716 = vpop.f32.mrb[0].mxu0
      %5717 = vmatprep.mubr.f32.mxu0 %v5075
      %5718 = vmatmul.mubr.f32.gmra.mrb[0].mxu0 %v4928
      %v5719 = vpop.f32.mrb[0].mxu0
      %v5720 = vadd.f32 %v5495, %v5719
      %v5721 = vpop.f32.mrb[0].mxu0
      %5722 = vmatprep.mubr.f32.mxu0 %v5077
      %5723 = vmatmul.mubr.f32.gmra.mrb[0].mxu0 %v4929
      %v5724 = vpop.f32.mrb[0].mxu0
      %v5725 = vadd.f32 %v5500, %v5724
      %v5726 = vpop.f32.mrb[0].mxu0
      %5727 = vmatprep.mubr.f32.mxu0 %v5079
      %5728 = vmatmul.mubr.f32.gmra.mrb[0].mxu0 %v4930
      %v5729 = vpop.f32.mrb[0].mxu0
      %v5730 = vadd.f32 %v5505, %v5729
      %v5731 = vpop.f32.mrb[0].mxu0
      %5732 = vmatprep.mubr.f32.mxu0 %v5081
      %5733 = vmatmul.mubr.f32.gmra.mrb[0].mxu0 %v4931
      %v5734 = vpop.f32.mrb[0].mxu0
      %v5735 = vadd.f32 %v5510, %v5734
      %v5736 = vpop.f32.mrb[0].mxu0
      %5737 = vmatprep.mubr.f32.mxu0 %v5083
      %5738 = vmatmul.mubr.f32.gmra.mrb[0].mxu0 %v4932
      %v5739 = vpop.f32.mrb[0].mxu0
      %v5740 = vadd.f32 %v5515, %v5739
      %v5741 = vpop.f32.mrb[0].mxu0
      %5742 = vmatprep.mubr.f32.mxu0 %v5085
      %5743 = vmatmul.mubr.f32.gmra.mrb[0].mxu0 %v4933
      %v5744 = vpop.f32.mrb[0].mxu0
      %v5745 = vadd.f32 %v5520, %v5744
      %v5746 = vpop.f32.mrb[0].mxu0
      %5747 = vmatprep.mubr.f32.mxu0 %v5087
      %5748 = vmatmul.mubr.f32.gmra.mrb[0].mxu0 %v4934
      %v5749 = vpop.f32.mrb[0].mxu0
      %v5750 = vadd.f32 %v5525, %v5749
      %v5751 = vpop.f32.mrb[0].mxu0
      %5752 = vmatprep.mubr.f32.mxu0 %v5089
      %5753 = vmatmul.mubr.f32.gmra.mrb[0].mxu0 %v4935
      %v5754 = vpop.f32.mrb[0].mxu0
      %v5755 = vadd.f32 %v5530, %v5754
      %v5756 = vpop.f32.mrb[0].mxu0
      %5757 = vmatprep.mubr.f32.mxu0 %v5091
      %5758 = vmatmul.mubr.f32.gmra.mrb[0].mxu0 %v4936
      %v5759 = vpop.f32.mrb[0].mxu0
      %v5760 = vadd.f32 %v5535, %v5759
      %v5761 = vpop.f32.mrb[0].mxu0
      %5762 = vmatprep.mubr.f32.mxu0 %v5093
      %5763 = vmatmul.mubr.f32.gmra.mrb[0].mxu0 %v4937
      %v5764 = vpop.f32.mrb[0].mxu0
      %v5765 = vadd.f32 %v5540, %v5764
      %v5766 = vpop.f32.mrb[0].mxu0
      %5767 = vmatprep.mubr.f32.mxu0 %v5095
      %5768 = vmatmul.mubr.f32.gmra.mrb[0].mxu0 %v4938
      %v5769 = vpop.f32.mrb[0].mxu0
      %v5770 = vadd.f32 %v5545, %v5769
      %v5771 = vpop.f32.mrb[0].mxu0
      %5772 = vmatprep.mubr.f32.mxu0 %v5097
      %5773 = vmatmul.mubr.f32.gmra.mrb[0].mxu0 %v4939
      %v5774 = vpop.f32.mrb[0].mxu0
      %v5775 = vadd.f32 %v5550, %v5774
      %v5776 = vpop.f32.mrb[0].mxu0
      %5777 = vdwg.mxu0
      %v5778 = vmax.f32 %v5620, 0.0
      %v5779 = vmax.f32 %v5625, 0.0
      %v5780 = vmax.f32 %v5630, 0.0
      %v5781 = vmax.f32 %v5635, 0.0
      %v5782 = vmax.f32 %v5640, 0.0
      %v5783 = vmax.f32 %v5645, 0.0
      %v5784 = vmax.f32 %v5650, 0.0
      %v5785 = vmax.f32 %v5655, 0.0
      %v5786 = vmax.f32 %v5660, 0.0
      %v5787 = vmax.f32 %v5665, 0.0
      %v5788 = vmax.f32 %v5670, 0.0
      %v5789 = vmax.f32 %v5675, 0.0
      %v5790 = vmax.f32 %v5680, 0.0
      %v5791 = vmax.f32 %v5685, 0.0
      %v5792 = vmax.f32 %v5690, 0.0
      %v5793 = vmax.f32 %v5695, 0.0
      %v5794 = vmax.f32 %v5700, 0.0
      %v5795 = vmax.f32 %v5705, 0.0
      %v5796 = vmax.f32 %v5710, 0.0
      %v5797 = vmax.f32 %v5715, 0.0
      %v5798 = vmax.f32 %v5720, 0.0
      %v5799 = vmax.f32 %v5725, 0.0
      %v5800 = vmax.f32 %v5730, 0.0
      %v5801 = vmax.f32 %v5735, 0.0
      %v5802 = vmax.f32 %v5740, 0.0
      %v5803 = vmax.f32 %v5745, 0.0
      %v5804 = vmax.f32 %v5750, 0.0
      %v5805 = vmax.f32 %v5755, 0.0
      %v5806 = vmax.f32 %v5760, 0.0
      %v5807 = vmax.f32 %v5765, 0.0
      %v5808 = vmax.f32 %v5770, 0.0
      %v5809 = vmax.f32 %v5775, 0.0
      %v5810 = vmax.f32 %v5778, %v5782
      %v5811 = vmax.f32 %v5779, %v5783
      %v5812 = vmax.f32 %v5780, %v5784
      %v5813 = vmax.f32 %v5781, %v5785
      %v5814 = vmax.f32 %v5786, %v5790
      %v5815 = vmax.f32 %v5787, %v5791
      %v5816 = vmax.f32 %v5788, %v5792
      %v5817 = vmax.f32 %v5789, %v5793
      %v5818 = vmax.f32 %v5794, %v5798
      %v5819 = vmax.f32 %v5795, %v5799
      %v5820 = vmax.f32 %v5796, %v5800
      %v5821 = vmax.f32 %v5797, %v5801
      %v5822 = vmax.f32 %v5802, %v5806
      %v5823 = vmax.f32 %v5803, %v5807
      %v5824 = vmax.f32 %v5804, %v5808
      %v5825 = vmax.f32 %v5805, %v5809
      %5842 = vrot.lane.b32.xlu0 %v5810, 112
      %v5843 = vpop.permute.xlu0 %5842
      %5844 = vrot.lane.b32.xlu0 %v5811, 112
      %v5845 = vpop.permute.xlu0 %5844
      %5846 = vrot.lane.b32.xlu0 %v5812, 112
      %v5847 = vpop.permute.xlu0 %5846
      %5848 = vrot.lane.b32.xlu0 %v5813, 112
      %v5849 = vpop.permute.xlu0 %5848
      %5850 = vrot.lane.b32.xlu0 %v5814, 112
      %v5851 = vpop.permute.xlu0 %5850
      %5852 = vrot.lane.b32.xlu0 %v5815, 112
      %v5853 = vpop.permute.xlu0 %5852
      %5854 = vrot.lane.b32.xlu0 %v5816, 112
      %v5855 = vpop.permute.xlu0 %5854
      %5856 = vrot.lane.b32.xlu0 %v5817, 112
      %v5857 = vpop.permute.xlu0 %5856
      %5858 = vrot.lane.b32.xlu0 %v5818, 112
      %v5859 = vpop.permute.xlu0 %5858
      %5860 = vrot.lane.b32.xlu0 %v5819, 112
      %v5861 = vpop.permute.xlu0 %5860
      %5862 = vrot.lane.b32.xlu0 %v5820, 112
      %v5863 = vpop.permute.xlu0 %5862
      %5864 = vrot.lane.b32.xlu0 %v5821, 112
      %v5865 = vpop.permute.xlu0 %5864
      %5866 = vrot.lane.b32.xlu0 %v5822, 112
      %v5867 = vpop.permute.xlu0 %5866
      %5868 = vrot.lane.b32.xlu0 %v5823, 112
      %v5869 = vpop.permute.xlu0 %5868
      %5870 = vrot.lane.b32.xlu0 %v5824, 112
      %v5871 = vpop.permute.xlu0 %5870
      %5872 = vrot.lane.b32.xlu0 %v5825, 112
      %v5873 = vpop.permute.xlu0 %5872
      %v5890 = vmax.f32 %v5810, %v5843
      %v5891 = vmax.f32 %v5811, %v5845
      %v5892 = vmax.f32 %v5812, %v5847
      %v5893 = vmax.f32 %v5813, %v5849
      %v5894 = vmax.f32 %v5814, %v5851
      %v5895 = vmax.f32 %v5815, %v5853
      %v5896 = vmax.f32 %v5816, %v5855
      %v5897 = vmax.f32 %v5817, %v5857
      %v5898 = vmax.f32 %v5818, %v5859
      %v5899 = vmax.f32 %v5819, %v5861
      %v5900 = vmax.f32 %v5820, %v5863
      %v5901 = vmax.f32 %v5821, %v5865
      %v5902 = vmax.f32 %v5822, %v5867
      %v5903 = vmax.f32 %v5823, %v5869
      %v5904 = vmax.f32 %v5824, %v5871
      %v5905 = vmax.f32 %v5825, %v5873
      %5910 = vrot.lane.b32.xlu0 %v5894, 112
      %v5911 = vpop.permute.xlu0 %5910
      %5912 = vrot.lane.b32.xlu0 %v5895, 112
      %v5913 = vpop.permute.xlu0 %5912
      %5914 = vrot.lane.b32.xlu0 %v5896, 112
      %v5915 = vpop.permute.xlu0 %5914
      %5916 = vrot.lane.b32.xlu0 %v5897, 112
      %v5917 = vpop.permute.xlu0 %5916
      %5926 = vrot.lane.b32.xlu0 %v5898, 96
      %v5927 = vpop.permute.xlu0 %5926
      %5928 = vrot.lane.b32.xlu0 %v5899, 96
      %v5929 = vpop.permute.xlu0 %5928
      %5930 = vrot.lane.b32.xlu0 %v5900, 96
      %v5931 = vpop.permute.xlu0 %5930
      %5932 = vrot.lane.b32.xlu0 %v5901, 96
      %v5933 = vpop.permute.xlu0 %5932
      %5942 = vrot.lane.b32.xlu0 %v5902, 80
      %v5943 = vpop.permute.xlu0 %5942
      %5944 = vrot.lane.b32.xlu0 %v5903, 80
      %v5945 = vpop.permute.xlu0 %5944
      %5946 = vrot.lane.b32.xlu0 %v5904, 80
      %v5947 = vpop.permute.xlu0 %5946
      %5948 = vrot.lane.b32.xlu0 %v5905, 80
      %v5949 = vpop.permute.xlu0 %5948
      %v5954 = vsel %vm2053, %v5890, %v5911
      %v5955 = vsel %vm2053, %v5891, %v5913
      %v5956 = vsel %vm2053, %v5892, %v5915
      %v5957 = vsel %vm2053, %v5893, %v5917
      %vm5958 = vcmask 785408
      %v5959 = vsel %vm5958, %v5911, %v5927
      %v5960 = vsel %vm5958, %v5913, %v5929
      %v5961 = vsel %vm5958, %v5915, %v5931
      %v5962 = vsel %vm5958, %v5917, %v5933
      %vm5963 = vcmask 654336
      %v5964 = vsel %vm5963, %v5927, %v5943
      %v5965 = vsel %vm5963, %v5929, %v5945
      %v5966 = vsel %vm5963, %v5931, %v5947
      %v5967 = vsel %vm5963, %v5933, %v5949
      %v5968 = vld [vmem:[%s5] sm:$0xff]
      %v5969 = vld [vmem:[%s5 + $0x8] sm:$0xff]
      %v5970 = vld [vmem:[%s5 + $0x10] sm:$0xff]
      %v5971 = vld [vmem:[%s5 + $0x18] sm:$0xff]
      %v5972 = vld [vmem:[%s5 + $0x20] sm:$0xff]
      %v5973 = vld [vmem:[%s5 + $0x28] sm:$0xff]
      %v5974 = vld [vmem:[%s5 + $0x30] sm:$0xff]
      %v5975 = vld [vmem:[%s5 + $0x38] sm:$0xff]
      %v5976 = vld [vmem:[%s5 + $0x40] sm:$0xff]
      %v5977 = vld [vmem:[%s5 + $0x48] sm:$0xff]
      %v5978 = vld [vmem:[%s5 + $0x50] sm:$0xff]
      %v5979 = vld [vmem:[%s5 + $0x58] sm:$0xff]
      %v5980 = vld [vmem:[%s5 + $0x60] sm:$0xff]
      %v5981 = vld [vmem:[%s5 + $0x68] sm:$0xff]
      %v5982 = vld [vmem:[%s5 + $0x70] sm:$0xff]
      %v5983 = vld [vmem:[%s5 + $0x78] sm:$0xff]
      %v5984 = vld [vmem:[%s5 + $0x80] sm:$0xff]
      %v5985 = vld [vmem:[%s5 + $0x88] sm:$0xff]
      %v5986 = vld [vmem:[%s5 + $0x90] sm:$0xff]
      %v5987 = vld [vmem:[%s5 + $0x98] sm:$0xff]
      %v5988 = vld [vmem:[%s5 + $0xa0] sm:$0xff]
      %v5989 = vld [vmem:[%s5 + $0xa8] sm:$0xff]
      %v5990 = vld [vmem:[%s5 + $0xb0] sm:$0xff]
      %v5991 = vld [vmem:[%s5 + $0xb8] sm:$0xff]
      %v5992 = vld [vmem:[%s5 + $0xc0] sm:$0xff]
      %v5993 = vld [vmem:[%s5 + $0xc8] sm:$0xff]
      %v5994 = vld [vmem:[%s5 + $0xd0] sm:$0xff]
      %v5995 = vld [vmem:[%s5 + $0xd8] sm:$0xff]
      %v5996 = vld [vmem:[%s5 + $0xe0] sm:$0xff]
      %v5997 = vld [vmem:[%s5 + $0xe8] sm:$0xff]
      %v5998 = vld [vmem:[%s5 + $0xf0] sm:$0xff]
      %v5999 = vld [vmem:[%s5 + $0xf8] sm:$0xff]
      %v6000 = vld [vmem:[%s5 + $0x100] sm:$0xff]
      %v6001 = vld [vmem:[%s5 + $0x108] sm:$0xff]
      %v6002 = vld [vmem:[%s5 + $0x110] sm:$0xff]
      %v6003 = vld [vmem:[%s5 + $0x118] sm:$0xff]
      %v6004 = vld [vmem:[%s5 + $0x120] sm:$0xff]
      %v6005 = vld [vmem:[%s5 + $0x128] sm:$0xff]
      %v6006 = vld [vmem:[%s5 + $0x130] sm:$0xff]
      %v6007 = vld [vmem:[%s5 + $0x138] sm:$0xff]
      %v6008 = vld [vmem:[%s5 + $0x140] sm:$0xff]
      %v6009 = vld [vmem:[%s5 + $0x148] sm:$0xff]
      %v6010 = vld [vmem:[%s5 + $0x150] sm:$0xff]
      %v6011 = vld [vmem:[%s5 + $0x158] sm:$0xff]
      %v6012 = vld [vmem:[%s5 + $0x160] sm:$0xff]
      %v6013 = vld [vmem:[%s5 + $0x168] sm:$0xff]
      %v6014 = vld [vmem:[%s5 + $0x170] sm:$0xff]
      %v6015 = vld [vmem:[%s5 + $0x178] sm:$0xff]
      %v6016 = vld [vmem:[%s5 + $0x180] sm:$0xff]
      %v6017 = vld [vmem:[%s5 + $0x188] sm:$0xff]
      %v6018 = vld [vmem:[%s5 + $0x190] sm:$0xff]
      %v6019 = vld [vmem:[%s5 + $0x198] sm:$0xff]
      %v6020 = vld [vmem:[%s5 + $0x1a0] sm:$0xff]
      %v6021 = vld [vmem:[%s5 + $0x1a8] sm:$0xff]
      %v6022 = vld [vmem:[%s5 + $0x1b0] sm:$0xff]
      %v6023 = vld [vmem:[%s5 + $0x1b8] sm:$0xff]
      %v6024 = vld [vmem:[%s6] sm:$0x1]
      %v6026 = vlaneseq
      %v6027 = vshrl.u32 %v6026, 7
      %v6028 = vsub.s32 0, %v6027
      %v6029 = vrot.slane %v6024, %v6028
      %vm6031 = vcmask 523264
      %v6032 = vsel %vm6031, %v5943, 0
      %v6034 = vsel %vm6031, %v5945, 0
      %v6036 = vsel %vm6031, %v5947, 0
      %v6038 = vsel %vm6031, %v5949, 0
      %6040 = vmatprep.subr.mxu0 0.0
      %6041 = vmatpush1.msra.mxu0 %v5968
      %6042 = vmatprep.subr.mxu0 0.0
      %6043 = vmatpush1.msra.mxu0 %v5969
      %6044 = vmatprep.subr.mxu0 0.0
      %6045 = vmatpush1.msra.mxu0 %v5970
      %6046 = vmatprep.subr.mxu0 0.0
      %6047 = vmatpush1.msra.mxu0 %v5971
      %6048 = vmatprep.subr.mxu0 0.0
      %6049 = vmatpush1.msra.mxu0 %v5972
      %6050 = vmatprep.subr.mxu0 0.0
      %6051 = vmatpush1.msra.mxu0 %v5973
      %6052 = vmatprep.subr.mxu0 0.0
      %6053 = vmatpush1.msra.mxu0 %v5974
      %6054 = vmatprep.subr.mxu0 0.0
      %6055 = vmatpush1.msra.mxu0 %v5975
      %6056 = vmatprep.subr.mxu0 0.0
      %6057 = vmatpush1.msra.mxu0 %v5976
      %6058 = vmatprep.subr.mxu0 0.0
      %6059 = vmatpush1.msra.mxu0 %v5977
      %6060 = vmatprep.subr.mxu0 0.0
      %6061 = vmatpush1.msra.mxu0 %v5978
      %6062 = vmatprep.subr.mxu0 0.0
      %6063 = vmatpush1.msra.mxu0 %v5979
      %6064 = vmatprep.subr.mxu0 0.0
      %6065 = vmatpush1.msra.mxu0 %v5980
      %6066 = vmatprep.subr.mxu0 0.0
      %6067 = vmatpush1.msra.mxu0 %v5981
      %6068 = vmatprep.subr.mxu0 0.0
      %6069 = vmatpush1.msra.mxu0 %v5982
      %6070 = vmatprep.subr.mxu0 0.0
      %6071 = vmatpush1.msra.mxu0 %v5983
      %6072 = vmatprep.subr.mxu0 0.0
      %6073 = vmatpush1.msra.mxu0 %v5984
      %6074 = vmatprep.subr.mxu0 0.0
      %6075 = vmatpush1.msra.mxu0 %v5985
      %6076 = vmatprep.subr.mxu0 0.0
      %6077 = vmatpush1.msra.mxu0 %v5986
      %6078 = vmatprep.subr.mxu0 0.0
      %6079 = vmatpush1.msra.mxu0 %v5987
      %6080 = vmatprep.subr.mxu0 0.0
      %6081 = vmatpush1.msra.mxu0 %v5988
      %6082 = vmatprep.subr.mxu0 0.0
      %6083 = vmatpush1.msra.mxu0 %v5989
      %6084 = vmatprep.subr.mxu0 0.0
      %6085 = vmatpush1.msra.mxu0 %v5990
      %6086 = vmatprep.subr.mxu0 0.0
      %6087 = vmatpush1.msra.mxu0 %v5991
      %6088 = vmatprep.subr.mxu0 0.0
      %6089 = vmatpush1.msra.mxu0 %v5992
      %6090 = vmatprep.subr.mxu0 0.0
      %6091 = vmatpush1.msra.mxu0 %v5993
      %6092 = vmatprep.subr.mxu0 0.0
      %6093 = vmatpush1.msra.mxu0 %v5994
      %6094 = vmatprep.subr.mxu0 0.0
      %6095 = vmatpush1.msra.mxu0 %v5995
      %6096 = vmatprep.subr.mxu0 0.0
      %6097 = vmatpush1.msra.mxu0 %v5996
      %6098 = vmatprep.subr.mxu0 0.0
      %6099 = vmatpush1.msra.mxu0 %v5997
      %6100 = vmatprep.subr.mxu0 0.0
      %6101 = vmatpush1.msra.mxu0 %v5998
      %6102 = vmatprep.subr.mxu0 0.0
      %6103 = vmatpush1.msra.mxu0 %v5999
      %6104 = vmatprep.mubr.f32.mxu0 %v5959
      %6105 = vmatmul.mubr.f32.gmra.mrb[0].mxu0 %v5954
      %v6106 = vpop.f32.mrb[0].mxu0
      %v6107 = vadd.f32 %v6029, %v6106
      %v6108 = vpop.f32.mrb[0].mxu0
      %6109 = vmatprep.mubr.f32.mxu0 %v5960
      %6110 = vmatmul.mubr.f32.gmra.mrb[0].mxu0 %v5955
      %v6111 = vpop.f32.mrb[0].mxu0
      %v6112 = vadd.f32 %v6029, %v6111
      %v6113 = vpop.f32.mrb[0].mxu0
      %6114 = vmatprep.mubr.f32.mxu0 %v5961
      %6115 = vmatmul.mubr.f32.gmra.mrb[0].mxu0 %v5956
      %v6116 = vpop.f32.mrb[0].mxu0
      %v6117 = vadd.f32 %v6029, %v6116
      %v6118 = vpop.f32.mrb[0].mxu0
      %6119 = vmatprep.mubr.f32.mxu0 %v5962
      %6120 = vmatmul.mubr.f32.gmra.mrb[0].mxu0 %v5957
      %v6121 = vpop.f32.mrb[0].mxu0
      %v6122 = vadd.f32 %v6029, %v6121
      %v6123 = vpop.f32.mrb[0].mxu0
      %6124 = vdwg.mxu0
      %6125 = vmatprep.subr.mxu0 0.0
      %6126 = vmatpush1.msra.mxu0 %v6000
      %6127 = vmatprep.subr.mxu0 0.0
      %6128 = vmatpush1.msra.mxu0 %v6001
      %6129 = vmatprep.subr.mxu0 0.0
      %6130 = vmatpush1.msra.mxu0 %v6002
      %6131 = vmatprep.subr.mxu0 0.0
      %6132 = vmatpush1.msra.mxu0 %v6003
      %6133 = vmatprep.subr.mxu0 0.0
      %6134 = vmatpush1.msra.mxu0 %v6004
      %6135 = vmatprep.subr.mxu0 0.0
      %6136 = vmatpush1.msra.mxu0 %v6005
      %6137 = vmatprep.subr.mxu0 0.0
      %6138 = vmatpush1.msra.mxu0 %v6006
      %6139 = vmatprep.subr.mxu0 0.0
      %6140 = vmatpush1.msra.mxu0 %v6007
      %6141 = vmatprep.subr.mxu0 0.0
      %6142 = vmatpush1.msra.mxu0 %v6008
      %6143 = vmatprep.subr.mxu0 0.0
      %6144 = vmatpush1.msra.mxu0 %v6009
      %6145 = vmatprep.subr.mxu0 0.0
      %6146 = vmatpush1.msra.mxu0 %v6010
      %6147 = vmatprep.subr.mxu0 0.0
      %6148 = vmatpush1.msra.mxu0 %v6011
      %6149 = vmatprep.subr.mxu0 0.0
      %6150 = vmatpush1.msra.mxu0 %v6012
      %6151 = vmatprep.subr.mxu0 0.0
      %6152 = vmatpush1.msra.mxu0 %v6013
      %6153 = vmatprep.subr.mxu0 0.0
      %6154 = vmatpush1.msra.mxu0 %v6014
      %6155 = vmatprep.subr.mxu0 0.0
      %6156 = vmatpush1.msra.mxu0 %v6015
      %6157 = vmatprep.subr.mxu0 0.0
      %6158 = vmatpush1.msra.mxu0 %v6016
      %6159 = vmatprep.subr.mxu0 0.0
      %6160 = vmatpush1.msra.mxu0 %v6017
      %6161 = vmatprep.subr.mxu0 0.0
      %6162 = vmatpush1.msra.mxu0 %v6018
      %6163 = vmatprep.subr.mxu0 0.0
      %6164 = vmatpush1.msra.mxu0 %v6019
      %6165 = vmatprep.subr.mxu0 0.0
      %6166 = vmatpush1.msra.mxu0 %v6020
      %6167 = vmatprep.subr.mxu0 0.0
      %6168 = vmatpush1.msra.mxu0 %v6021
      %6169 = vmatprep.subr.mxu0 0.0
      %6170 = vmatpush1.msra.mxu0 %v6022
      %6171 = vmatprep.subr.mxu0 0.0
      %6172 = vmatpush1.msra.mxu0 %v6023
      %6173 = vmatprep.subr.mxu0 0.0
      %6174 = vmatpush1.msra.mxu0 0.0
      %6175 = vmatprep.subr.mxu0 0.0
      %6176 = vmatpush1.msra.mxu0 0.0
      %6177 = vmatprep.subr.mxu0 0.0
      %6178 = vmatpush1.msra.mxu0 0.0
      %6179 = vmatprep.subr.mxu0 0.0
      %6180 = vmatpush1.msra.mxu0 0.0
      %6181 = vmatprep.subr.mxu0 0.0
      %6182 = vmatpush1.msra.mxu0 0.0
      %6183 = vmatprep.subr.mxu0 0.0
      %6184 = vmatpush1.msra.mxu0 0.0
      %6185 = vmatprep.subr.mxu0 0.0
      %6186 = vmatpush1.msra.mxu0 0.0
      %6187 = vmatprep.subr.mxu0 0.0
      %6188 = vmatpush1.msra.mxu0 0.0
      %6189 = vmatprep.mubr.f32.mxu0 %v6032
      %6190 = vmatmul.mubr.f32.gmra.mrb[0].mxu0 %v5964
      %v6191 = vpop.f32.mrb[0].mxu0
      %v6192 = vadd.f32 %v6107, %v6191
      %v6193 = vpop.f32.mrb[0].mxu0
      %6194 = vmatprep.mubr.f32.mxu0 %v6034
      %6195 = vmatmul.mubr.f32.gmra.mrb[0].mxu0 %v5965
      %v6196 = vpop.f32.mrb[0].mxu0
      %v6197 = vadd.f32 %v6112, %v6196
      %v6198 = vpop.f32.mrb[0].mxu0
      %6199 = vmatprep.mubr.f32.mxu0 %v6036
      %6200 = vmatmul.mubr.f32.gmra.mrb[0].mxu0 %v5966
      %v6201 = vpop.f32.mrb[0].mxu0
      %v6202 = vadd.f32 %v6117, %v6201
      %v6203 = vpop.f32.mrb[0].mxu0
      %6204 = vmatprep.mubr.f32.mxu0 %v6038
      %6205 = vmatmul.mubr.f32.gmra.mrb[0].mxu0 %v5967
      %v6206 = vpop.f32.mrb[0].mxu0
      %v6207 = vadd.f32 %v6122, %v6206
      %v6208 = vpop.f32.mrb[0].mxu0
      %6209 = vdwg.mxu0
      %v6210 = vmax.f32 %v6192, 0.0
      %v6211 = vmax.f32 %v6197, 0.0
      %v6212 = vmax.f32 %v6202, 0.0
      %v6213 = vmax.f32 %v6207, 0.0
      %v6214 = vld [vmem:[%s7] sm:$0xff]
      %v6215 = vld [vmem:[%s7 + $0x8] sm:$0xff]
      %v6216 = vld [vmem:[%s7 + $0x10] sm:$0xff]
      %v6217 = vld [vmem:[%s7 + $0x18] sm:$0xff]
      %v6218 = vld [vmem:[%s7 + $0x20] sm:$0xff]
      %v6219 = vld [vmem:[%s7 + $0x28] sm:$0xff]
      %v6220 = vld [vmem:[%s7 + $0x30] sm:$0xff]
      %v6221 = vld [vmem:[%s7 + $0x38] sm:$0xff]
      %v6222 = vld [vmem:[%s7 + $0x40] sm:$0xff]
      %v6223 = vld [vmem:[%s7 + $0x48] sm:$0xff]
      %v6224 = vld [vmem:[%s7 + $0x50] sm:$0xff]
      %v6225 = vld [vmem:[%s7 + $0x58] sm:$0xff]
      %v6226 = vld [vmem:[%s7 + $0x60] sm:$0xff]
      %v6227 = vld [vmem:[%s7 + $0x68] sm:$0xff]
      %v6228 = vld [vmem:[%s7 + $0x70] sm:$0xff]
      %v6229 = vld [vmem:[%s7 + $0x78] sm:$0xff]
      %v6230 = vld [vmem:[%s8] sm:$0x1]
      %v6232 = vlaneseq
      %v6233 = vshrl.u32 %v6232, 7
      %v6234 = vsub.s32 0, %v6233
      %v6235 = vrot.slane %v6230, %v6234
      %6237 = vmatprep.subr.mxu0 0.0
      %6238 = vmatpush1.msra.mxu0 %v6214
      %6239 = vmatprep.subr.mxu0 0.0
      %6240 = vmatpush1.msra.mxu0 %v6215
      %6241 = vmatprep.subr.mxu0 0.0
      %6242 = vmatpush1.msra.mxu0 %v6216
      %6243 = vmatprep.subr.mxu0 0.0
      %6244 = vmatpush1.msra.mxu0 %v6217
      %6245 = vmatprep.subr.mxu0 0.0
      %6246 = vmatpush1.msra.mxu0 %v6218
      %6247 = vmatprep.subr.mxu0 0.0
      %6248 = vmatpush1.msra.mxu0 %v6219
      %6249 = vmatprep.subr.mxu0 0.0
      %6250 = vmatpush1.msra.mxu0 %v6220
      %6251 = vmatprep.subr.mxu0 0.0
      %6252 = vmatpush1.msra.mxu0 %v6221
      %6253 = vmatprep.subr.mxu0 0.0
      %6254 = vmatpush1.msra.mxu0 %v6222
      %6255 = vmatprep.subr.mxu0 0.0
      %6256 = vmatpush1.msra.mxu0 %v6223
      %6257 = vmatprep.subr.mxu0 0.0
      %6258 = vmatpush1.msra.mxu0 %v6224
      %6259 = vmatprep.subr.mxu0 0.0
      %6260 = vmatpush1.msra.mxu0 %v6225
      %6261 = vmatprep.subr.mxu0 0.0
      %6262 = vmatpush1.msra.mxu0 %v6226
      %6263 = vmatprep.subr.mxu0 0.0
      %6264 = vmatpush1.msra.mxu0 %v6227
      %6265 = vmatprep.subr.mxu0 0.0
      %6266 = vmatpush1.msra.mxu0 %v6228
      %6267 = vmatprep.subr.mxu0 0.0
      %6268 = vmatpush1.msra.mxu0 %v6229
      %6269 = vmatprep.subr.mxu0 0.0
      %6270 = vmatpush1.msra.mxu0 0.0
      %6271 = vmatprep.subr.mxu0 0.0
      %6272 = vmatpush1.msra.mxu0 0.0
      %6273 = vmatprep.subr.mxu0 0.0
      %6274 = vmatpush1.msra.mxu0 0.0
      %6275 = vmatprep.subr.mxu0 0.0
      %6276 = vmatpush1.msra.mxu0 0.0
      %6277 = vmatprep.subr.mxu0 0.0
      %6278 = vmatpush1.msra.mxu0 0.0
      %6279 = vmatprep.subr.mxu0 0.0
      %6280 = vmatpush1.msra.mxu0 0.0
      %6281 = vmatprep.subr.mxu0 0.0
      %6282 = vmatpush1.msra.mxu0 0.0
      %6283 = vmatprep.subr.mxu0 0.0
      %6284 = vmatpush1.msra.mxu0 0.0
      %6285 = vmatprep.subr.mxu0 0.0
      %6286 = vmatpush1.msra.mxu0 0.0
      %6287 = vmatprep.subr.mxu0 0.0
      %6288 = vmatpush1.msra.mxu0 0.0
      %6289 = vmatprep.subr.mxu0 0.0
      %6290 = vmatpush1.msra.mxu0 0.0
      %6291 = vmatprep.subr.mxu0 0.0
      %6292 = vmatpush1.msra.mxu0 0.0
      %6293 = vmatprep.subr.mxu0 0.0
      %6294 = vmatpush1.msra.mxu0 0.0
      %6295 = vmatprep.subr.mxu0 0.0
      %6296 = vmatpush1.msra.mxu0 0.0
      %6297 = vmatprep.subr.mxu0 0.0
      %6298 = vmatpush1.msra.mxu0 0.0
      %6299 = vmatprep.subr.mxu0 0.0
      %6300 = vmatpush1.msra.mxu0 0.0
      %6301 = vmatprep.mubr.f32.mxu0 0.0
      %6302 = vmatmul.mubr.f32.gmra.mrb[0].mxu0 %v6210
      %v6303 = vpop.f32.mrb[0].mxu0
      %v6304 = vadd.f32 %v6235, %v6303
      %v6305 = vpop.f32.mrb[0].mxu0
      %6306 = vmatprep.mubr.f32.mxu0 0.0
      %6307 = vmatmul.mubr.f32.gmra.mrb[0].mxu0 %v6211
      %v6308 = vpop.f32.mrb[0].mxu0
      %v6309 = vadd.f32 %v6235, %v6308
      %v6310 = vpop.f32.mrb[0].mxu0
      %6311 = vmatprep.mubr.f32.mxu0 0.0
      %6312 = vmatmul.mubr.f32.gmra.mrb[0].mxu0 %v6212
      %v6313 = vpop.f32.mrb[0].mxu0
      %v6314 = vadd.f32 %v6235, %v6313
      %v6315 = vpop.f32.mrb[0].mxu0
      %6316 = vmatprep.mubr.f32.mxu0 0.0
      %6317 = vmatmul.mubr.f32.gmra.mrb[0].mxu0 %v6213
      %v6318 = vpop.f32.mrb[0].mxu0
      %v6319 = vadd.f32 %v6235, %v6318
      %v6320 = vpop.f32.mrb[0].mxu0
      %6321 = vdwg.mxu0
      %v6322 = vmax.f32 %v6304, 0.0
      %v6323 = vmax.f32 %v6309, 0.0
      %v6324 = vmax.f32 %v6314, 0.0
      %v6325 = vmax.f32 %v6319, 0.0
      %v6326 = vld [vmem:[%s9] sm:$0xff]
      %v6327 = vld [vmem:[%s9 + $0x8] sm:$0xff]
      %v6328 = vld [vmem:[%s9 + $0x10] sm:$0xff]
      %v6329 = vld [vmem:[%s9 + $0x18] sm:$0xff]
      %v6330 = vld [vmem:[%s9 + $0x20] sm:$0xff]
      %v6331 = vld [vmem:[%s9 + $0x28] sm:$0xff]
      %v6332 = vld [vmem:[%s9 + $0x30] sm:$0xff]
      %v6333 = vld [vmem:[%s9 + $0x38] sm:$0xff]
      %v6334 = vld [vmem:[%s9 + $0x40] sm:$0xff]
      %v6335 = vld [vmem:[%s9 + $0x48] sm:$0xff]
      %v6336 = vld [vmem:[%s9 + $0x50] sm:$0xff]
      %v6337 = vld [vmem:[%s9 + $0x58] sm:$0xff]
      %v6338 = vld [vmem:[%s9 + $0x60] sm:$0xff]
      %v6339 = vld [vmem:[%s9 + $0x68] sm:$0xff]
      %v6340 = vld [vmem:[%s9 + $0x70] sm:$0xff]
      %v6341 = vld [vmem:[%s9 + $0x78] sm:$0xff]
      %v6342 = vld [vmem:[%s10] sm:$0x1]
      %v6344 = vlaneseq
      %v6345 = vshrl.u32 %v6344, 7
      %v6346 = vsub.s32 0, %v6345
      %v6347 = vrot.slane %v6342, %v6346
      %6349 = vmatprep.subr.mxu0 0.0
      %6350 = vmatpush1.msra.mxu0 %v6326
      %6351 = vmatprep.subr.mxu0 0.0
      %6352 = vmatpush1.msra.mxu0 %v6327
      %6353 = vmatprep.subr.mxu0 0.0
      %6354 = vmatpush1.msra.mxu0 %v6328
      %6355 = vmatprep.subr.mxu0 0.0
      %6356 = vmatpush1.msra.mxu0 %v6329
      %6357 = vmatprep.subr.mxu0 0.0
      %6358 = vmatpush1.msra.mxu0 %v6330
      %6359 = vmatprep.subr.mxu0 0.0
      %6360 = vmatpush1.msra.mxu0 %v6331
      %6361 = vmatprep.subr.mxu0 0.0
      %6362 = vmatpush1.msra.mxu0 %v6332
      %6363 = vmatprep.subr.mxu0 0.0
      %6364 = vmatpush1.msra.mxu0 %v6333
      %6365 = vmatprep.subr.mxu0 0.0
      %6366 = vmatpush1.msra.mxu0 %v6334
      %6367 = vmatprep.subr.mxu0 0.0
      %6368 = vmatpush1.msra.mxu0 %v6335
      %6369 = vmatprep.subr.mxu0 0.0
      %6370 = vmatpush1.msra.mxu0 %v6336
      %6371 = vmatprep.subr.mxu0 0.0
      %6372 = vmatpush1.msra.mxu0 %v6337
      %6373 = vmatprep.subr.mxu0 0.0
      %6374 = vmatpush1.msra.mxu0 %v6338
      %6375 = vmatprep.subr.mxu0 0.0
      %6376 = vmatpush1.msra.mxu0 %v6339
      %6377 = vmatprep.subr.mxu0 0.0
      %6378 = vmatpush1.msra.mxu0 %v6340
      %6379 = vmatprep.subr.mxu0 0.0
      %6380 = vmatpush1.msra.mxu0 %v6341
      %6381 = vmatprep.subr.mxu0 0.0
      %6382 = vmatpush1.msra.mxu0 0.0
      %6383 = vmatprep.subr.mxu0 0.0
      %6384 = vmatpush1.msra.mxu0 0.0
      %6385 = vmatprep.subr.mxu0 0.0
      %6386 = vmatpush1.msra.mxu0 0.0
      %6387 = vmatprep.subr.mxu0 0.0
      %6388 = vmatpush1.msra.mxu0 0.0
      %6389 = vmatprep.subr.mxu0 0.0
      %6390 = vmatpush1.msra.mxu0 0.0
      %6391 = vmatprep.subr.mxu0 0.0
      %6392 = vmatpush1.msra.mxu0 0.0
      %6393 = vmatprep.subr.mxu0 0.0
      %6394 = vmatpush1.msra.mxu0 0.0
      %6395 = vmatprep.subr.mxu0 0.0
      %6396 = vmatpush1.msra.mxu0 0.0
      %6397 = vmatprep.subr.mxu0 0.0
      %6398 = vmatpush1.msra.mxu0 0.0
      %6399 = vmatprep.subr.mxu0 0.0
      %6400 = vmatpush1.msra.mxu0 0.0
      %6401 = vmatprep.subr.mxu0 0.0
      %6402 = vmatpush1.msra.mxu0 0.0
      %6403 = vmatprep.subr.mxu0 0.0
      %6404 = vmatpush1.msra.mxu0 0.0
      %6405 = vmatprep.subr.mxu0 0.0
      %6406 = vmatpush1.msra.mxu0 0.0
      %6407 = vmatprep.subr.mxu0 0.0
      %6408 = vmatpush1.msra.mxu0 0.0
      %6409 = vmatprep.subr.mxu0 0.0
      %6410 = vmatpush1.msra.mxu0 0.0
      %6411 = vmatprep.subr.mxu0 0.0
      %6412 = vmatpush1.msra.mxu0 0.0
      %6413 = vmatprep.mubr.f32.mxu0 0.0
      %6414 = vmatmul.mubr.f32.gmra.mrb[0].mxu0 %v6322
      %v6415 = vpop.f32.mrb[0].mxu0
      %v6416 = vadd.f32 %v6347, %v6415
      %v6417 = vpop.f32.mrb[0].mxu0
      %6418 = vmatprep.mubr.f32.mxu0 0.0
      %6419 = vmatmul.mubr.f32.gmra.mrb[0].mxu0 %v6323
      %v6420 = vpop.f32.mrb[0].mxu0
      %v6421 = vadd.f32 %v6347, %v6420
      %v6422 = vpop.f32.mrb[0].mxu0
      %6423 = vmatprep.mubr.f32.mxu0 0.0
      %6424 = vmatmul.mubr.f32.gmra.mrb[0].mxu0 %v6324
      %v6425 = vpop.f32.mrb[0].mxu0
      %v6426 = vadd.f32 %v6347, %v6425
      %v6427 = vpop.f32.mrb[0].mxu0
      %6428 = vmatprep.mubr.f32.mxu0 0.0
      %6429 = vmatmul.mubr.f32.gmra.mrb[0].mxu0 %v6325
      %v6430 = vpop.f32.mrb[0].mxu0
      %v6431 = vadd.f32 %v6347, %v6430
      %v6432 = vpop.f32.mrb[0].mxu0
      %6433 = vdwg.mxu0
      %6434 = vst [vmem:[%s388] sm:$0xff] %v6416
      %6435 = vst [vmem:[%s388 + $0x8] sm:$0xff] %v6421
      %6436 = vst [vmem:[%s388 + $0x10] sm:$0xff] %v6426
      %6437 = vst [vmem:[%s388 + $0x18] sm:$0xff] %v6431
      %s6438 = smul.u32 4, %s22
      %p6439 = scmp.lt.s32.totalorder %s6438, 7
      %s6440 = scalar_select %p6439, %s6438, 7
      %s6441 = smul.addr %s6440, 8
      %s6442 = scalar_lea.vmem %s11, %s6441
      // Predicated region
      $region65: #{garment_classifier_forward.1} parent=63 // pred_check
        %p6443 = pneg %p276
      $region66: #{garment_classifier_forward.1} parent=63 // pred_check_branch
        %6445 = sbr.rel (%p6443) target = $region68
      $region67: #{garment_classifier_forward.1} parent=63 // pred_region
        %s6446 = smul.u32 4, %s22
      $region68: #{garment_classifier_forward.1} parent=63 // pred_fallthru
        _
    $region64: #{garment_classifier_forward.1} parent=5 // pred_fallthru
      _
    %p6447 = scmp.le.s32.totalorder 2, %s17
    // Predicated region
    $region69: #{garment_classifier_forward.1} parent=5 // pred_check
      %p6448 = pneg %p6447
    $region70: #{garment_classifier_forward.1} parent=5 // pred_check_branch
      %6450 = sbr.rel (%p6448) target = $region72
    $region71: #{garment_classifier_forward.1} parent=5 // pred_region
      %s6451 = ssub.s32 %s17, 2
      // Predicated region
      $region73: #{garment_classifier_forward.1} parent=71 // pred_check
        %p6452 = pneg %p282
      $region74: #{garment_classifier_forward.1} parent=71 // pred_check_branch
        %6454 = sbr.rel (%p6452) target = $region76
      $region75: #{garment_classifier_forward.1} parent=71 // pred_region
        %s6455 = smul.u32 4, %s23
        %p6456 = scmp.lt.s32.totalorder %s6455, 7
        %s6457 = scalar_select %p6456, %s6455, 7
        %s6458 = smul.addr %s6457, 8
        %s6459 = scalar_lea.vmem %s11, %s6458
      $region76: #{garment_classifier_forward.1} parent=71 // pred_fallthru
        _
    $region72: #{garment_classifier_forward.1} parent=5 // pred_fallthru
      _
  $region6: #{garment_classifier_forward.1} parent=0 // loop_footer
    %s21 = sadd.s32 1, %s17
  $region7: #{garment_classifier_forward.1} parent=0 // loop_footer_branch
    %16 = sbr.rel target = $region3
  $region8: #{garment_classifier_forward.1} parent=0 // loop_exit
    _

</llo_original>
